<compile_context>
chip_gen: v7x
topology: tpu7x:2x2x1
jax: 0.10.0
libtpu: 0.0.40
codegen_flags: <defaults>
</compile_context>

<pallas_src>
import math

import jax
import jax.numpy as jnp
import numpy as np
from jax.experimental import pallas as pl
from jax.experimental.pallas import tpu as pltpu

# ---------------- configuration (consistent with the module) -----------------
B = 2
IN_C = 4
OUT_C = 4
IMG = 16
PATCH = 4
NUM_HEADS = 4
MODE = "discrepancy"

N1 = IMG // PATCH                      # patches per side = 4
N_PATCH = N1 * N1                      # 16 tokens
E = IN_C * PATCH * PATCH               # hidden_dim = 64
DEPTH = E // NUM_HEADS                 # 16
PP = PATCH * PATCH                     # 16 within-patch pixels
HW = IMG * IMG                         # 256 pixels per image
BHW = B * HW                           # 512 (lane-stacked images for both batches)
SCALE = E ** (-0.5)                    # module uses e**-0.5 (not depth**-0.5)

assert IN_C == OUT_C                   # same im2col shape for both convs

# conv taps (dy, dx) and their flat lane offsets within one 256-pixel image
_TAPS = [(dy, dx) for dy in range(3) for dx in range(3)]
_TAP_OFF = [(dy - 1) * IMG + (dx - 1) for dy, dx in _TAPS]


# ---------------- host-side constant tables (numpy, data independent) --------
def _build_constants():
    hw = np.arange(HW)
    h, w = hw // IMG, hw % IMG
    n_idx = (h // PATCH) * N1 + (w // PATCH)      # source token per pixel
    s_idx = (h % PATCH) * PATCH + (w % PATCH)     # source within-patch index per pixel
    s_scatter = (np.arange(PP)[:, None] == s_idx[None, :]).astype(np.float32)       # (16, 256)
    m_select = (np.arange(N_PATCH)[:, None] == n_idx[None, :]).astype(np.float32)   # (16, 256)
    masks = []
    for dy, dx in _TAPS:   # zero-padding validity mask per conv tap
        valid = ((h + dy - 1 >= 0) & (h + dy - 1 < IMG) &
                 (w + dx - 1 >= 0) & (w + dx - 1 < IMG))
        masks.append(valid.astype(np.float32))
    cmask = np.stack(masks)                                                          # (9, 256)
    # sinusoidal positional-encoding table (scaled by the learned p outside)
    position = np.arange(N_PATCH, dtype=np.float32)[:, None]
    div_term = np.exp(np.arange(0, E, 2, dtype=np.float32) * (-math.log(10000.0) / E))
    pe = np.zeros((N_PATCH, E), np.float32)
    pe[:, 0::2] = np.sin(position * div_term)
    pe[:, 1::2] = np.cos(position * div_term)
    # pack: scatter + select into one constant; masks tiled for the B lane-stacked images
    smm = np.concatenate([s_scatter, m_select], axis=0)          # (32, 256)
    cmask_b = np.concatenate([cmask] * B, axis=1)                # (9, B*256)
    return jnp.asarray(smm), jnp.asarray(cmask_b), jnp.asarray(pe)


SMM_MAT, CMASK_B, PE_TABLE = _build_constants()


# ---------------- the fused Pallas kernel ------------------------------------
def _roll_lanes(x, off):
    """result[:, j] = x[:, (j + off) % n]; static lane rotation via slices.

    Rolls over the full B*HW lane axis; cross-image / cross-row wraps only
    happen at positions where the boundary mask is zero, so they are harmless.
    """
    n = x.shape[-1]
    s = (-off) % n
    if s == 0:
        return x
    return jnp.concatenate([x[:, n - s:], x[:, :n - s]], axis=-1)


def fused_kernel(kqv_ref, pwl_ref, smm_ref, cm_ref, convw_ref, o_ref):
    # ---- unpack packed parameter / constant slabs (register values) ----------
    pwl = pwl_ref[...]                                 # (16+64+1, 64)
    pe = pwl[0:N_PATCH, :]                             # (16, 64) positional emb * p
    wt = pwl[N_PATCH:N_PATCH + E, :]                   # (64, 64) linear weight (transposed)
    lb = pwl[N_PATCH + E:N_PATCH + E + 1, :]           # (1, 64)  linear bias

    smm = smm_ref[...]                                 # (32, 256)
    s_scatter = smm[0:PP, :]                           # (16, 256) within-patch one-hot
    m_select = smm[PP:PP + N_PATCH, :]                 # (16, 256) token one-hot

    cmask = cm_ref[...]                                # (9, B*256) conv boundary masks

    cw = convw_ref[...]                                # (4, 74)
    w1 = cw[:, 0:9 * IN_C]                             # (4, 36) conv1 im2col weight
    b1 = cw[:, 9 * IN_C:9 * IN_C + 1]                  # (4, 1)
    w2 = cw[:, 9 * IN_C + 1:9 * IN_C + 1 + 9 * OUT_C]  # (4, 36) conv2 im2col weight
    b2 = cw[:, 9 * IN_C + 1 + 9 * OUT_C:9 * IN_C + 2 + 9 * OUT_C]  # (4, 1)

    # ---- pos-emb + MHA + discrepancy + linear + residual + comb rearrange ----
    imgs = []
    for b in range(B):                                 # B = 2: fully unrolled
        kb = kqv_ref[0 * B + b] + pe                   # (16, 64)
        qb = kqv_ref[1 * B + b] + pe
        vb = kqv_ref[2 * B + b] + pe
        qs = qb * SCALE                                # fold softmax scale into q once

        t_parts = []
        for h in range(NUM_HEADS):
            lo = h * DEPTH
            qh = qs[:, lo:lo + DEPTH]
            kh = kb[:, lo:lo + DEPTH]
            vh = vb[:, lo:lo + DEPTH]
            sc = jnp.dot(qh, kh.T, preferred_element_type=jnp.float32)
            sc = sc - jnp.max(sc, axis=-1, keepdims=True)
            p = jnp.exp(sc)
            p = p * pl.reciprocal(jnp.sum(p, axis=-1, keepdims=True), approx=True)
            t_parts.append(jnp.dot(p, vh, preferred_element_type=jnp.float32))
        t_full = jnp.concatenate(t_parts, axis=-1)     # (16, 64) all heads
        d_full = vb - t_full if MODE == "discrepancy" else t_full
        # single (16,64)@(64,64) linear + residual + bias
        out = jnp.dot(d_full, wt, preferred_element_type=jnp.float32) + (qb + lb)

        # comb rearrange: (N, E) tokens -> (C, 256) image, as a register value
        rows = []
        for c in range(IN_C):
            oc = out[:, c * PP:(c + 1) * PP]                                  # (16, 16)
            ocs = jnp.dot(oc, s_scatter, preferred_element_type=jnp.float32)  # (16, 256)
            rows.append(jnp.sum(m_select * ocs, axis=0, keepdims=True))       # (1, 256)
        imgs.append(jnp.concatenate(rows, axis=0))                            # (4, 256)

    # lane-stack both batches: (C, B*HW) = (4, 512) — full lane-dense slab
    img = jnp.concatenate(imgs, axis=-1) if B > 1 else imgs[0]

    # ---- conv3x3 -> LayerNorm(C,H,W) -> Swish -> conv3x3, on (C, B*HW) -------
    def conv3x3(x, w, bias):
        # im2col via 9 static lane rotations + boundary masks (register values),
        # then ONE (Cout, 9*Cin) x (9*Cin, B*HW) MXU matmul covering both batches.
        cols = [_roll_lanes(x, off) * cmask[i:i + 1, :]
                for i, off in enumerate(_TAP_OFF)]
        col = jnp.concatenate(cols, axis=0)            # (9*Cin, B*HW)
        return jnp.dot(w, col, preferred_element_type=jnp.float32) + bias

    y = conv3x3(img, w1, b1)                           # (4, 512)

    # LayerNorm over (C, H, W) per batch element (lane half), eps=1e-6, no affine.
    # Single-pass stats: sum and sum-of-squares overlap on the XLU.
    inv_n = 1.0 / (OUT_C * HW)
    halves = []
    for b in range(B):
        yb = y[:, b * HW:(b + 1) * HW]
        mu = jnp.sum(yb) * inv_n
        ex2 = jnp.sum(yb * yb) * inv_n
        halves.append((yb - mu) * jax.lax.rsqrt(ex2 - mu * mu + 1e-6))
    y = jnp.concatenate(halves, axis=-1) if B > 1 else halves[0]

    # Swish (exp runs on the EUP)
    y = y * (1.0 / (1.0 + jnp.exp(-y)))

    y = conv3x3(y, w2, b2)                             # (4, 512)
    o_ref[...] = y                                     # one full lane-dense store


def run_fused(kqv, pwl, convw):
    # Single grid step: both batches handled in-kernel (no per-step pipeline
    # overhead on single-TC v5e/v6e; footprint < 200 KB so VMEM is a non-issue).
    return pl.pallas_call(
        fused_kernel,
        out_shape=jax.ShapeDtypeStruct((OUT_C, BHW), jnp.float32),
        grid=(1,),
        in_specs=[
            pl.BlockSpec((3 * B, N_PATCH, E), lambda i: (0, 0, 0)),       # packed k/q/v
            pl.BlockSpec((N_PATCH + E + 1, E), lambda i: (0, 0)),         # pe | W^T | bias
            pl.BlockSpec((PP + N_PATCH, HW), lambda i: (0, 0)),           # scatter | select
            pl.BlockSpec((9, BHW), lambda i: (0, 0)),                     # conv boundary masks
            pl.BlockSpec((OUT_C, 9 * IN_C + 9 * OUT_C + 2), lambda i: (0, 0)),  # conv w/b packed
        ],
        out_specs=pl.BlockSpec((OUT_C, BHW), lambda i: (0, 0)),
        compiler_params=pltpu.CompilerParams(dimension_semantics=("arbitrary",)),
    )(kqv, pwl, SMM_MAT, CMASK_B, convw)


# ---------------- glue ---------------------------------------------------------
def comb(x):  # (B, N, E) -> (B, C, H, W)   (used by the reference only)
    return (x.reshape(B, N1, N1, IN_C, PATCH, PATCH)
             .transpose(0, 3, 1, 4, 2, 5)
             .reshape(B, IN_C, IMG, IMG))


def seg(x):  # (B, C, H, W) -> (B, N, C*patch*patch)
    c = x.shape[1]
    return (x.reshape(B, c, N1, PATCH, N1, PATCH)
             .transpose(0, 2, 4, 1, 3, 5)
             .reshape(B, N1 * N1, c * PATCH * PATCH))


@jax.jit
def forward_pallas(k, q, v, params):
    pe = PE_TABLE * params["p"]
    wt = params["lin_w"].T                                 # nn.Linear: y = x @ W.T + b
    lb = params["lin_b"].reshape(1, E)
    pwl = jnp.concatenate([pe, wt, lb], axis=0)            # (81, 64)
    kqv = jnp.stack([k, q, v], axis=0).reshape(3 * B, N_PATCH, E)
    # im2col weight layout: [co, (dy*3+dx)*Cin + ci]
    w1f = params["w1"].transpose(0, 2, 3, 1).reshape(OUT_C, 9 * IN_C)
    w2f = params["w2"].transpose(0, 2, 3, 1).reshape(OUT_C, 9 * OUT_C)
    convw = jnp.concatenate([w1f, params["b1"].reshape(OUT_C, 1),
                             w2f, params["b2"].reshape(OUT_C, 1)], axis=1)   # (4, 74)
    y = run_fused(kqv, pwl, convw)                         # (C, B*H*W) lane-dense
    y = y.reshape(OUT_C, B, IMG, IMG).transpose(1, 0, 2, 3)  # (B, C, H, W)
    return seg(y)                                          # (B, N, C*P*P)


# ---------------- pure-JAX reference (for verification) ------------------------
@jax.jit
def forward_ref(k, q, v, params):
    pe = PE_TABLE * params["p"]
    kb, qb, vb = k + pe, q + pe, v + pe

    def split(x):
        return x.reshape(B, N_PATCH, NUM_HEADS, DEPTH).transpose(0, 2, 1, 3)

    qh, kh, vh = split(qb), split(kb), split(vb)
    s = jnp.einsum("bhnd,bhmd->bhnm", qh, kh) * SCALE
    p = jax.nn.softmax(s, axis=-1)
    t = jnp.einsum("bhnm,bhmd->bhnd", p, vh).transpose(0, 2, 1, 3).reshape(B, N_PATCH, E)
    vout = vb - t if MODE == "discrepancy" else t
    x = vout @ params["lin_w"].T + params["lin_b"] + qb
    img = comb(x)
    dn = ("NCHW", "OIHW", "NCHW")
    y = jax.lax.conv_general_dilated(img, params["w1"], (1, 1), "SAME",
                                     dimension_numbers=dn) + params["b1"][None, :, None, None]
    mu = jnp.mean(y, axis=(1, 2, 3), keepdims=True)
    var = jnp.mean((y - mu) ** 2, axis=(1, 2, 3), keepdims=True)
    y = (y - mu) / jnp.sqrt(var + 1e-6)
    y = y * jax.nn.sigmoid(y)
    y = jax.lax.conv_general_dilated(y, params["w2"], (1, 1), "SAME",
                                     dimension_numbers=dn) + params["b2"][None, :, None, None]
    return seg(y)


# ---------------- main ----------------------------------------------------------
if __name__ == "__main__":
    key = jax.random.PRNGKey(0)
    ks = jax.random.split(key, 9)
    params = {
        "p": jnp.float32(1.0),
        "lin_w": jax.random.normal(ks[0], (E, E), jnp.float32) * 0.05,
        "lin_b": jax.random.normal(ks[1], (E,), jnp.float32) * 0.05,
        "w1": jax.random.normal(ks[2], (OUT_C, IN_C, 3, 3), jnp.float32) * 0.1,
        "b1": jax.random.normal(ks[3], (OUT_C,), jnp.float32) * 0.1,
        "w2": jax.random.normal(ks[4], (OUT_C, OUT_C, 3, 3), jnp.float32) * 0.1,
        "b2": jax.random.normal(ks[5], (OUT_C,), jnp.float32) * 0.1,
    }
    k_in = jax.random.normal(ks[6], (B, N_PATCH, E), jnp.float32)
    q_in = jax.random.normal(ks[7], (B, N_PATCH, E), jnp.float32)
    v_in = jax.random.normal(ks[8], (B, N_PATCH, E), jnp.float32)

    out = jax.block_until_ready(forward_pallas(k_in, q_in, v_in, params))
    ref = jax.block_until_ready(forward_ref(k_in, q_in, v_in, params))

    np.testing.assert_allclose(np.asarray(out), np.asarray(ref), rtol=2e-3, atol=2e-3)
    print("KERNEL_OK")
</pallas_src>

<mosaic_0001>
module attributes {stable_mosaic.version = 11 : i64} {
  func.func @fused_kernel(%arg0: i32, %arg1: memref<6x16x64xf32, #tpu.memory_space<vmem>>, %arg2: memref<81x64xf32, #tpu.memory_space<vmem>>, %arg3: memref<32x256xf32, #tpu.memory_space<vmem>>, %arg4: memref<9x512xf32, #tpu.memory_space<vmem>>, %arg5: memref<4x74xf32, #tpu.memory_space<vmem>>, %arg6: memref<4x512xf32, #tpu.memory_space<vmem>>) attributes {dimension_semantics = [#tpu.dimension_semantics<arbitrary>], iteration_bounds = array<i64: 1>, scalar_prefetch = 0 : i64, scratch_operands = 0 : i64, tpu.core_type = #tpu.core_type<tc>, window_params = [{pipeline_mode = #tpu.pipeline_mode<synchronous>, transform_indices = @transform_0, window_bounds = array<i64: 6, 16, 64>}, {pipeline_mode = #tpu.pipeline_mode<synchronous>, transform_indices = @transform_1, window_bounds = array<i64: 81, 64>}, {pipeline_mode = #tpu.pipeline_mode<synchronous>, transform_indices = @transform_2, window_bounds = array<i64: 32, 256>}, {pipeline_mode = #tpu.pipeline_mode<synchronous>, transform_indices = @transform_3, window_bounds = array<i64: 9, 512>}, {pipeline_mode = #tpu.pipeline_mode<synchronous>, transform_indices = @transform_4, window_bounds = array<i64: 4, 74>}, {pipeline_mode = #tpu.pipeline_mode<synchronous>, transform_indices = @transform_5, window_bounds = array<i64: 4, 512>}]} {
    %c0 = arith.constant 0 : index
    %c0_0 = arith.constant 0 : index
    %0 = vector.load %arg2[%c0, %c0_0] : memref<81x64xf32, #tpu.memory_space<vmem>>, vector<81x64xf32>
    %1 = vector.extract_strided_slice %0 {offsets = [0, 0], sizes = [16, 64], strides = [1, 1]} : vector<81x64xf32> to vector<16x64xf32>
    %2 = vector.extract_strided_slice %0 {offsets = [16, 0], sizes = [64, 64], strides = [1, 1]} : vector<81x64xf32> to vector<64x64xf32>
    %3 = vector.extract_strided_slice %0 {offsets = [80, 0], sizes = [1, 64], strides = [1, 1]} : vector<81x64xf32> to vector<1x64xf32>
    %c0_1 = arith.constant 0 : index
    %c0_2 = arith.constant 0 : index
    %4 = vector.load %arg3[%c0_1, %c0_2] : memref<32x256xf32, #tpu.memory_space<vmem>>, vector<32x256xf32>
    %5 = vector.extract_strided_slice %4 {offsets = [0, 0], sizes = [16, 256], strides = [1, 1]} : vector<32x256xf32> to vector<16x256xf32>
    %6 = vector.extract_strided_slice %4 {offsets = [16, 0], sizes = [16, 256], strides = [1, 1]} : vector<32x256xf32> to vector<16x256xf32>
    %c0_3 = arith.constant 0 : index
    %c0_4 = arith.constant 0 : index
    %7 = vector.load %arg4[%c0_3, %c0_4] : memref<9x512xf32, #tpu.memory_space<vmem>>, vector<9x512xf32>
    %c0_5 = arith.constant 0 : index
    %c0_6 = arith.constant 0 : index
    %8 = vector.load %arg5[%c0_5, %c0_6] : memref<4x74xf32, #tpu.memory_space<vmem>>, vector<4x74xf32>
    %9 = vector.extract_strided_slice %8 {offsets = [0, 0], sizes = [4, 36], strides = [1, 1]} : vector<4x74xf32> to vector<4x36xf32>
    %10 = vector.extract_strided_slice %8 {offsets = [0, 36], sizes = [4, 1], strides = [1, 1]} : vector<4x74xf32> to vector<4x1xf32>
    %11 = vector.extract_strided_slice %8 {offsets = [0, 37], sizes = [4, 36], strides = [1, 1]} : vector<4x74xf32> to vector<4x36xf32>
    %12 = vector.extract_strided_slice %8 {offsets = [0, 73], sizes = [4, 1], strides = [1, 1]} : vector<4x74xf32> to vector<4x1xf32>
    %c0_7 = arith.constant 0 : index
    %c0_8 = arith.constant 0 : index
    %c0_9 = arith.constant 0 : index
    %13 = vector.load %arg1[%c0_7, %c0_8, %c0_9] : memref<6x16x64xf32, #tpu.memory_space<vmem>>, vector<1x16x64xf32>
    %14 = vector.shape_cast %13 : vector<1x16x64xf32> to vector<16x64xf32>
    %15 = arith.addf %14, %1 : vector<16x64xf32>
    %c2 = arith.constant 2 : index
    %c0_10 = arith.constant 0 : index
    %c0_11 = arith.constant 0 : index
    %16 = vector.load %arg1[%c2, %c0_10, %c0_11] : memref<6x16x64xf32, #tpu.memory_space<vmem>>, vector<1x16x64xf32>
    %17 = vector.shape_cast %16 : vector<1x16x64xf32> to vector<16x64xf32>
    %18 = arith.addf %17, %1 : vector<16x64xf32>
    %c4 = arith.constant 4 : index
    %c0_12 = arith.constant 0 : index
    %c0_13 = arith.constant 0 : index
    %19 = vector.load %arg1[%c4, %c0_12, %c0_13] : memref<6x16x64xf32, #tpu.memory_space<vmem>>, vector<1x16x64xf32>
    %20 = vector.shape_cast %19 : vector<1x16x64xf32> to vector<16x64xf32>
    %21 = arith.addf %20, %1 : vector<16x64xf32>
    %cst = arith.constant 1.250000e-01 : f32
    %22 = vector.broadcast %cst : f32 to vector<16x64xf32>
    %23 = arith.mulf %18, %22 : vector<16x64xf32>
    %24 = vector.extract_strided_slice %23 {offsets = [0, 0], sizes = [16, 16], strides = [1, 1]} : vector<16x64xf32> to vector<16x16xf32>
    %25 = vector.extract_strided_slice %15 {offsets = [0, 0], sizes = [16, 16], strides = [1, 1]} : vector<16x64xf32> to vector<16x16xf32>
    %26 = vector.extract_strided_slice %21 {offsets = [0, 0], sizes = [16, 16], strides = [1, 1]} : vector<16x64xf32> to vector<16x16xf32>
    %27 = tpu.transpose %25, [1, 0] : vector<16x16xf32> -> vector<16x16xf32>
    %cst_14 = arith.constant dense<0.000000e+00> : vector<16x16xf32>
    %28 = tpu.matmul %24, %27, %cst_14 {dimension_numbers = #tpu.dot_dimension_numbers<[1], [0], [0], [1], [0, 0, 1, 1], [], []>} : vector<16x16xf32>, vector<16x16xf32>, vector<16x16xf32> -> vector<16x16xf32>
    %cst_15 = arith.constant dense<0xFF800000> : vector<16xf32>
    %29 = vector.multi_reduction <maximumf>, %28, %cst_15 [1] : vector<16x16xf32> to vector<16xf32>
    %30 = vector.shape_cast %29 : vector<16xf32> to vector<16x1xf32>
    %31 = vector.broadcast %30 : vector<16x1xf32> to vector<16x16xf32>
    %32 = arith.subf %28, %31 : vector<16x16xf32>
    %33 = math.exp %32 : vector<16x16xf32>
    %cst_16 = arith.constant dense<0.000000e+00> : vector<16xf32>
    %34 = vector.multi_reduction <add>, %33, %cst_16 [1] : vector<16x16xf32> to vector<16xf32>
    %35 = vector.shape_cast %34 : vector<16xf32> to vector<16x1xf32>
    %36 = tpu.reciprocal %35 {approx = true} : vector<16x1xf32> -> vector<16x1xf32>
    %37 = vector.broadcast %36 : vector<16x1xf32> to vector<16x16xf32>
    %38 = arith.mulf %33, %37 : vector<16x16xf32>
    %cst_17 = arith.constant dense<0.000000e+00> : vector<16x16xf32>
    %39 = tpu.matmul %38, %26, %cst_17 {dimension_numbers = #tpu.dot_dimension_numbers<[1], [0], [0], [1], [0, 0, 1, 1], [], []>} : vector<16x16xf32>, vector<16x16xf32>, vector<16x16xf32> -> vector<16x16xf32>
    %40 = vector.extract_strided_slice %23 {offsets = [0, 16], sizes = [16, 16], strides = [1, 1]} : vector<16x64xf32> to vector<16x16xf32>
    %41 = vector.extract_strided_slice %15 {offsets = [0, 16], sizes = [16, 16], strides = [1, 1]} : vector<16x64xf32> to vector<16x16xf32>
    %42 = vector.extract_strided_slice %21 {offsets = [0, 16], sizes = [16, 16], strides = [1, 1]} : vector<16x64xf32> to vector<16x16xf32>
    %43 = tpu.transpose %41, [1, 0] : vector<16x16xf32> -> vector<16x16xf32>
    %cst_18 = arith.constant dense<0.000000e+00> : vector<16x16xf32>
    %44 = tpu.matmul %40, %43, %cst_18 {dimension_numbers = #tpu.dot_dimension_numbers<[1], [0], [0], [1], [0, 0, 1, 1], [], []>} : vector<16x16xf32>, vector<16x16xf32>, vector<16x16xf32> -> vector<16x16xf32>
    %cst_19 = arith.constant dense<0xFF800000> : vector<16xf32>
    %45 = vector.multi_reduction <maximumf>, %44, %cst_19 [1] : vector<16x16xf32> to vector<16xf32>
    %46 = vector.shape_cast %45 : vector<16xf32> to vector<16x1xf32>
    %47 = vector.broadcast %46 : vector<16x1xf32> to vector<16x16xf32>
    %48 = arith.subf %44, %47 : vector<16x16xf32>
    %49 = math.exp %48 : vector<16x16xf32>
    %cst_20 = arith.constant dense<0.000000e+00> : vector<16xf32>
    %50 = vector.multi_reduction <add>, %49, %cst_20 [1] : vector<16x16xf32> to vector<16xf32>
    %51 = vector.shape_cast %50 : vector<16xf32> to vector<16x1xf32>
    %52 = tpu.reciprocal %51 {approx = true} : vector<16x1xf32> -> vector<16x1xf32>
    %53 = vector.broadcast %52 : vector<16x1xf32> to vector<16x16xf32>
    %54 = arith.mulf %49, %53 : vector<16x16xf32>
    %cst_21 = arith.constant dense<0.000000e+00> : vector<16x16xf32>
    %55 = tpu.matmul %54, %42, %cst_21 {dimension_numbers = #tpu.dot_dimension_numbers<[1], [0], [0], [1], [0, 0, 1, 1], [], []>} : vector<16x16xf32>, vector<16x16xf32>, vector<16x16xf32> -> vector<16x16xf32>
    %56 = vector.extract_strided_slice %23 {offsets = [0, 32], sizes = [16, 16], strides = [1, 1]} : vector<16x64xf32> to vector<16x16xf32>
    %57 = vector.extract_strided_slice %15 {offsets = [0, 32], sizes = [16, 16], strides = [1, 1]} : vector<16x64xf32> to vector<16x16xf32>
    %58 = vector.extract_strided_slice %21 {offsets = [0, 32], sizes = [16, 16], strides = [1, 1]} : vector<16x64xf32> to vector<16x16xf32>
    %59 = tpu.transpose %57, [1, 0] : vector<16x16xf32> -> vector<16x16xf32>
    %cst_22 = arith.constant dense<0.000000e+00> : vector<16x16xf32>
    %60 = tpu.matmul %56, %59, %cst_22 {dimension_numbers = #tpu.dot_dimension_numbers<[1], [0], [0], [1], [0, 0, 1, 1], [], []>} : vector<16x16xf32>, vector<16x16xf32>, vector<16x16xf32> -> vector<16x16xf32>
    %cst_23 = arith.constant dense<0xFF800000> : vector<16xf32>
    %61 = vector.multi_reduction <maximumf>, %60, %cst_23 [1] : vector<16x16xf32> to vector<16xf32>
    %62 = vector.shape_cast %61 : vector<16xf32> to vector<16x1xf32>
    %63 = vector.broadcast %62 : vector<16x1xf32> to vector<16x16xf32>
    %64 = arith.subf %60, %63 : vector<16x16xf32>
    %65 = math.exp %64 : vector<16x16xf32>
    %cst_24 = arith.constant dense<0.000000e+00> : vector<16xf32>
    %66 = vector.multi_reduction <add>, %65, %cst_24 [1] : vector<16x16xf32> to vector<16xf32>
    %67 = vector.shape_cast %66 : vector<16xf32> to vector<16x1xf32>
    %68 = tpu.reciprocal %67 {approx = true} : vector<16x1xf32> -> vector<16x1xf32>
    %69 = vector.broadcast %68 : vector<16x1xf32> to vector<16x16xf32>
    %70 = arith.mulf %65, %69 : vector<16x16xf32>
    %cst_25 = arith.constant dense<0.000000e+00> : vector<16x16xf32>
    %71 = tpu.matmul %70, %58, %cst_25 {dimension_numbers = #tpu.dot_dimension_numbers<[1], [0], [0], [1], [0, 0, 1, 1], [], []>} : vector<16x16xf32>, vector<16x16xf32>, vector<16x16xf32> -> vector<16x16xf32>
    %72 = vector.extract_strided_slice %23 {offsets = [0, 48], sizes = [16, 16], strides = [1, 1]} : vector<16x64xf32> to vector<16x16xf32>
    %73 = vector.extract_strided_slice %15 {offsets = [0, 48], sizes = [16, 16], strides = [1, 1]} : vector<16x64xf32> to vector<16x16xf32>
    %74 = vector.extract_strided_slice %21 {offsets = [0, 48], sizes = [16, 16], strides = [1, 1]} : vector<16x64xf32> to vector<16x16xf32>
    %75 = tpu.transpose %73, [1, 0] : vector<16x16xf32> -> vector<16x16xf32>
    %cst_26 = arith.constant dense<0.000000e+00> : vector<16x16xf32>
    %76 = tpu.matmul %72, %75, %cst_26 {dimension_numbers = #tpu.dot_dimension_numbers<[1], [0], [0], [1], [0, 0, 1, 1], [], []>} : vector<16x16xf32>, vector<16x16xf32>, vector<16x16xf32> -> vector<16x16xf32>
    %cst_27 = arith.constant dense<0xFF800000> : vector<16xf32>
    %77 = vector.multi_reduction <maximumf>, %76, %cst_27 [1] : vector<16x16xf32> to vector<16xf32>
    %78 = vector.shape_cast %77 : vector<16xf32> to vector<16x1xf32>
    %79 = vector.broadcast %78 : vector<16x1xf32> to vector<16x16xf32>
    %80 = arith.subf %76, %79 : vector<16x16xf32>
    %81 = math.exp %80 : vector<16x16xf32>
    %cst_28 = arith.constant dense<0.000000e+00> : vector<16xf32>
    %82 = vector.multi_reduction <add>, %81, %cst_28 [1] : vector<16x16xf32> to vector<16xf32>
    %83 = vector.shape_cast %82 : vector<16xf32> to vector<16x1xf32>
    %84 = tpu.reciprocal %83 {approx = true} : vector<16x1xf32> -> vector<16x1xf32>
    %85 = vector.broadcast %84 : vector<16x1xf32> to vector<16x16xf32>
    %86 = arith.mulf %81, %85 : vector<16x16xf32>
    %cst_29 = arith.constant dense<0.000000e+00> : vector<16x16xf32>
    %87 = tpu.matmul %86, %74, %cst_29 {dimension_numbers = #tpu.dot_dimension_numbers<[1], [0], [0], [1], [0, 0, 1, 1], [], []>} : vector<16x16xf32>, vector<16x16xf32>, vector<16x16xf32> -> vector<16x16xf32>
    %88 = tpu.concatenate %39, %55, %71, %87 in 1 : vector<16x16xf32>, vector<16x16xf32>, vector<16x16xf32>, vector<16x16xf32> -> vector<16x64xf32>
    %89 = arith.subf %21, %88 : vector<16x64xf32>
    %cst_30 = arith.constant dense<0.000000e+00> : vector<16x64xf32>
    %90 = tpu.matmul %89, %2, %cst_30 {dimension_numbers = #tpu.dot_dimension_numbers<[1], [0], [0], [1], [0, 0, 1, 1], [], []>} : vector<16x64xf32>, vector<64x64xf32>, vector<16x64xf32> -> vector<16x64xf32>
    %91 = vector.broadcast %3 : vector<1x64xf32> to vector<16x64xf32>
    %92 = arith.addf %18, %91 : vector<16x64xf32>
    %93 = arith.addf %90, %92 : vector<16x64xf32>
    %94 = vector.extract_strided_slice %93 {offsets = [0, 0], sizes = [16, 16], strides = [1, 1]} : vector<16x64xf32> to vector<16x16xf32>
    %cst_31 = arith.constant dense<0.000000e+00> : vector<16x256xf32>
    %95 = tpu.matmul %94, %5, %cst_31 {dimension_numbers = #tpu.dot_dimension_numbers<[1], [0], [0], [1], [0, 0, 1, 1], [], []>} : vector<16x16xf32>, vector<16x256xf32>, vector<16x256xf32> -> vector<16x256xf32>
    %96 = arith.mulf %6, %95 : vector<16x256xf32>
    %cst_32 = arith.constant dense<0.000000e+00> : vector<256xf32>
    %97 = vector.multi_reduction <add>, %96, %cst_32 [0] : vector<16x256xf32> to vector<256xf32>
    %98 = vector.shape_cast %97 : vector<256xf32> to vector<1x256xf32>
    %99 = vector.extract_strided_slice %93 {offsets = [0, 16], sizes = [16, 16], strides = [1, 1]} : vector<16x64xf32> to vector<16x16xf32>
    %cst_33 = arith.constant dense<0.000000e+00> : vector<16x256xf32>
    %100 = tpu.matmul %99, %5, %cst_33 {dimension_numbers = #tpu.dot_dimension_numbers<[1], [0], [0], [1], [0, 0, 1, 1], [], []>} : vector<16x16xf32>, vector<16x256xf32>, vector<16x256xf32> -> vector<16x256xf32>
    %101 = arith.mulf %6, %100 : vector<16x256xf32>
    %cst_34 = arith.constant dense<0.000000e+00> : vector<256xf32>
    %102 = vector.multi_reduction <add>, %101, %cst_34 [0] : vector<16x256xf32> to vector<256xf32>
    %103 = vector.shape_cast %102 : vector<256xf32> to vector<1x256xf32>
    %104 = vector.extract_strided_slice %93 {offsets = [0, 32], sizes = [16, 16], strides = [1, 1]} : vector<16x64xf32> to vector<16x16xf32>
    %cst_35 = arith.constant dense<0.000000e+00> : vector<16x256xf32>
    %105 = tpu.matmul %104, %5, %cst_35 {dimension_numbers = #tpu.dot_dimension_numbers<[1], [0], [0], [1], [0, 0, 1, 1], [], []>} : vector<16x16xf32>, vector<16x256xf32>, vector<16x256xf32> -> vector<16x256xf32>
    %106 = arith.mulf %6, %105 : vector<16x256xf32>
    %cst_36 = arith.constant dense<0.000000e+00> : vector<256xf32>
    %107 = vector.multi_reduction <add>, %106, %cst_36 [0] : vector<16x256xf32> to vector<256xf32>
    %108 = vector.shape_cast %107 : vector<256xf32> to vector<1x256xf32>
    %109 = vector.extract_strided_slice %93 {offsets = [0, 48], sizes = [16, 16], strides = [1, 1]} : vector<16x64xf32> to vector<16x16xf32>
    %cst_37 = arith.constant dense<0.000000e+00> : vector<16x256xf32>
    %110 = tpu.matmul %109, %5, %cst_37 {dimension_numbers = #tpu.dot_dimension_numbers<[1], [0], [0], [1], [0, 0, 1, 1], [], []>} : vector<16x16xf32>, vector<16x256xf32>, vector<16x256xf32> -> vector<16x256xf32>
    %111 = arith.mulf %6, %110 : vector<16x256xf32>
    %cst_38 = arith.constant dense<0.000000e+00> : vector<256xf32>
    %112 = vector.multi_reduction <add>, %111, %cst_38 [0] : vector<16x256xf32> to vector<256xf32>
    %113 = vector.shape_cast %112 : vector<256xf32> to vector<1x256xf32>
    %114 = tpu.concatenate %98, %103, %108, %113 in 0 : vector<1x256xf32>, vector<1x256xf32>, vector<1x256xf32>, vector<1x256xf32> -> vector<4x256xf32>
    %c1 = arith.constant 1 : index
    %c0_39 = arith.constant 0 : index
    %c0_40 = arith.constant 0 : index
    %115 = vector.load %arg1[%c1, %c0_39, %c0_40] : memref<6x16x64xf32, #tpu.memory_space<vmem>>, vector<1x16x64xf32>
    %116 = vector.shape_cast %115 : vector<1x16x64xf32> to vector<16x64xf32>
    %117 = arith.addf %116, %1 : vector<16x64xf32>
    %c3 = arith.constant 3 : index
    %c0_41 = arith.constant 0 : index
    %c0_42 = arith.constant 0 : index
    %118 = vector.load %arg1[%c3, %c0_41, %c0_42] : memref<6x16x64xf32, #tpu.memory_space<vmem>>, vector<1x16x64xf32>
    %119 = vector.shape_cast %118 : vector<1x16x64xf32> to vector<16x64xf32>
    %120 = arith.addf %119, %1 : vector<16x64xf32>
    %c5 = arith.constant 5 : index
    %c0_43 = arith.constant 0 : index
    %c0_44 = arith.constant 0 : index
    %121 = vector.load %arg1[%c5, %c0_43, %c0_44] : memref<6x16x64xf32, #tpu.memory_space<vmem>>, vector<1x16x64xf32>
    %122 = vector.shape_cast %121 : vector<1x16x64xf32> to vector<16x64xf32>
    %123 = arith.addf %122, %1 : vector<16x64xf32>
    %cst_45 = arith.constant 1.250000e-01 : f32
    %124 = vector.broadcast %cst_45 : f32 to vector<16x64xf32>
    %125 = arith.mulf %120, %124 : vector<16x64xf32>
    %126 = vector.extract_strided_slice %125 {offsets = [0, 0], sizes = [16, 16], strides = [1, 1]} : vector<16x64xf32> to vector<16x16xf32>
    %127 = vector.extract_strided_slice %117 {offsets = [0, 0], sizes = [16, 16], strides = [1, 1]} : vector<16x64xf32> to vector<16x16xf32>
    %128 = vector.extract_strided_slice %123 {offsets = [0, 0], sizes = [16, 16], strides = [1, 1]} : vector<16x64xf32> to vector<16x16xf32>
    %129 = tpu.transpose %127, [1, 0] : vector<16x16xf32> -> vector<16x16xf32>
    %cst_46 = arith.constant dense<0.000000e+00> : vector<16x16xf32>
    %130 = tpu.matmul %126, %129, %cst_46 {dimension_numbers = #tpu.dot_dimension_numbers<[1], [0], [0], [1], [0, 0, 1, 1], [], []>} : vector<16x16xf32>, vector<16x16xf32>, vector<16x16xf32> -> vector<16x16xf32>
    %cst_47 = arith.constant dense<0xFF800000> : vector<16xf32>
    %131 = vector.multi_reduction <maximumf>, %130, %cst_47 [1] : vector<16x16xf32> to vector<16xf32>
    %132 = vector.shape_cast %131 : vector<16xf32> to vector<16x1xf32>
    %133 = vector.broadcast %132 : vector<16x1xf32> to vector<16x16xf32>
    %134 = arith.subf %130, %133 : vector<16x16xf32>
    %135 = math.exp %134 : vector<16x16xf32>
    %cst_48 = arith.constant dense<0.000000e+00> : vector<16xf32>
    %136 = vector.multi_reduction <add>, %135, %cst_48 [1] : vector<16x16xf32> to vector<16xf32>
    %137 = vector.shape_cast %136 : vector<16xf32> to vector<16x1xf32>
    %138 = tpu.reciprocal %137 {approx = true} : vector<16x1xf32> -> vector<16x1xf32>
    %139 = vector.broadcast %138 : vector<16x1xf32> to vector<16x16xf32>
    %140 = arith.mulf %135, %139 : vector<16x16xf32>
    %cst_49 = arith.constant dense<0.000000e+00> : vector<16x16xf32>
    %141 = tpu.matmul %140, %128, %cst_49 {dimension_numbers = #tpu.dot_dimension_numbers<[1], [0], [0], [1], [0, 0, 1, 1], [], []>} : vector<16x16xf32>, vector<16x16xf32>, vector<16x16xf32> -> vector<16x16xf32>
    %142 = vector.extract_strided_slice %125 {offsets = [0, 16], sizes = [16, 16], strides = [1, 1]} : vector<16x64xf32> to vector<16x16xf32>
    %143 = vector.extract_strided_slice %117 {offsets = [0, 16], sizes = [16, 16], strides = [1, 1]} : vector<16x64xf32> to vector<16x16xf32>
    %144 = vector.extract_strided_slice %123 {offsets = [0, 16], sizes = [16, 16], strides = [1, 1]} : vector<16x64xf32> to vector<16x16xf32>
    %145 = tpu.transpose %143, [1, 0] : vector<16x16xf32> -> vector<16x16xf32>
    %cst_50 = arith.constant dense<0.000000e+00> : vector<16x16xf32>
    %146 = tpu.matmul %142, %145, %cst_50 {dimension_numbers = #tpu.dot_dimension_numbers<[1], [0], [0], [1], [0, 0, 1, 1], [], []>} : vector<16x16xf32>, vector<16x16xf32>, vector<16x16xf32> -> vector<16x16xf32>
    %cst_51 = arith.constant dense<0xFF800000> : vector<16xf32>
    %147 = vector.multi_reduction <maximumf>, %146, %cst_51 [1] : vector<16x16xf32> to vector<16xf32>
    %148 = vector.shape_cast %147 : vector<16xf32> to vector<16x1xf32>
    %149 = vector.broadcast %148 : vector<16x1xf32> to vector<16x16xf32>
    %150 = arith.subf %146, %149 : vector<16x16xf32>
    %151 = math.exp %150 : vector<16x16xf32>
    %cst_52 = arith.constant dense<0.000000e+00> : vector<16xf32>
    %152 = vector.multi_reduction <add>, %151, %cst_52 [1] : vector<16x16xf32> to vector<16xf32>
    %153 = vector.shape_cast %152 : vector<16xf32> to vector<16x1xf32>
    %154 = tpu.reciprocal %153 {approx = true} : vector<16x1xf32> -> vector<16x1xf32>
    %155 = vector.broadcast %154 : vector<16x1xf32> to vector<16x16xf32>
    %156 = arith.mulf %151, %155 : vector<16x16xf32>
    %cst_53 = arith.constant dense<0.000000e+00> : vector<16x16xf32>
    %157 = tpu.matmul %156, %144, %cst_53 {dimension_numbers = #tpu.dot_dimension_numbers<[1], [0], [0], [1], [0, 0, 1, 1], [], []>} : vector<16x16xf32>, vector<16x16xf32>, vector<16x16xf32> -> vector<16x16xf32>
    %158 = vector.extract_strided_slice %125 {offsets = [0, 32], sizes = [16, 16], strides = [1, 1]} : vector<16x64xf32> to vector<16x16xf32>
    %159 = vector.extract_strided_slice %117 {offsets = [0, 32], sizes = [16, 16], strides = [1, 1]} : vector<16x64xf32> to vector<16x16xf32>
    %160 = vector.extract_strided_slice %123 {offsets = [0, 32], sizes = [16, 16], strides = [1, 1]} : vector<16x64xf32> to vector<16x16xf32>
    %161 = tpu.transpose %159, [1, 0] : vector<16x16xf32> -> vector<16x16xf32>
    %cst_54 = arith.constant dense<0.000000e+00> : vector<16x16xf32>
    %162 = tpu.matmul %158, %161, %cst_54 {dimension_numbers = #tpu.dot_dimension_numbers<[1], [0], [0], [1], [0, 0, 1, 1], [], []>} : vector<16x16xf32>, vector<16x16xf32>, vector<16x16xf32> -> vector<16x16xf32>
    %cst_55 = arith.constant dense<0xFF800000> : vector<16xf32>
    %163 = vector.multi_reduction <maximumf>, %162, %cst_55 [1] : vector<16x16xf32> to vector<16xf32>
    %164 = vector.shape_cast %163 : vector<16xf32> to vector<16x1xf32>
    %165 = vector.broadcast %164 : vector<16x1xf32> to vector<16x16xf32>
    %166 = arith.subf %162, %165 : vector<16x16xf32>
    %167 = math.exp %166 : vector<16x16xf32>
    %cst_56 = arith.constant dense<0.000000e+00> : vector<16xf32>
    %168 = vector.multi_reduction <add>, %167, %cst_56 [1] : vector<16x16xf32> to vector<16xf32>
    %169 = vector.shape_cast %168 : vector<16xf32> to vector<16x1xf32>
    %170 = tpu.reciprocal %169 {approx = true} : vector<16x1xf32> -> vector<16x1xf32>
    %171 = vector.broadcast %170 : vector<16x1xf32> to vector<16x16xf32>
    %172 = arith.mulf %167, %171 : vector<16x16xf32>
    %cst_57 = arith.constant dense<0.000000e+00> : vector<16x16xf32>
    %173 = tpu.matmul %172, %160, %cst_57 {dimension_numbers = #tpu.dot_dimension_numbers<[1], [0], [0], [1], [0, 0, 1, 1], [], []>} : vector<16x16xf32>, vector<16x16xf32>, vector<16x16xf32> -> vector<16x16xf32>
    %174 = vector.extract_strided_slice %125 {offsets = [0, 48], sizes = [16, 16], strides = [1, 1]} : vector<16x64xf32> to vector<16x16xf32>
    %175 = vector.extract_strided_slice %117 {offsets = [0, 48], sizes = [16, 16], strides = [1, 1]} : vector<16x64xf32> to vector<16x16xf32>
    %176 = vector.extract_strided_slice %123 {offsets = [0, 48], sizes = [16, 16], strides = [1, 1]} : vector<16x64xf32> to vector<16x16xf32>
    %177 = tpu.transpose %175, [1, 0] : vector<16x16xf32> -> vector<16x16xf32>
    %cst_58 = arith.constant dense<0.000000e+00> : vector<16x16xf32>
    %178 = tpu.matmul %174, %177, %cst_58 {dimension_numbers = #tpu.dot_dimension_numbers<[1], [0], [0], [1], [0, 0, 1, 1], [], []>} : vector<16x16xf32>, vector<16x16xf32>, vector<16x16xf32> -> vector<16x16xf32>
    %cst_59 = arith.constant dense<0xFF800000> : vector<16xf32>
    %179 = vector.multi_reduction <maximumf>, %178, %cst_59 [1] : vector<16x16xf32> to vector<16xf32>
    %180 = vector.shape_cast %179 : vector<16xf32> to vector<16x1xf32>
    %181 = vector.broadcast %180 : vector<16x1xf32> to vector<16x16xf32>
    %182 = arith.subf %178, %181 : vector<16x16xf32>
    %183 = math.exp %182 : vector<16x16xf32>
    %cst_60 = arith.constant dense<0.000000e+00> : vector<16xf32>
    %184 = vector.multi_reduction <add>, %183, %cst_60 [1] : vector<16x16xf32> to vector<16xf32>
    %185 = vector.shape_cast %184 : vector<16xf32> to vector<16x1xf32>
    %186 = tpu.reciprocal %185 {approx = true} : vector<16x1xf32> -> vector<16x1xf32>
    %187 = vector.broadcast %186 : vector<16x1xf32> to vector<16x16xf32>
    %188 = arith.mulf %183, %187 : vector<16x16xf32>
    %cst_61 = arith.constant dense<0.000000e+00> : vector<16x16xf32>
    %189 = tpu.matmul %188, %176, %cst_61 {dimension_numbers = #tpu.dot_dimension_numbers<[1], [0], [0], [1], [0, 0, 1, 1], [], []>} : vector<16x16xf32>, vector<16x16xf32>, vector<16x16xf32> -> vector<16x16xf32>
    %190 = tpu.concatenate %141, %157, %173, %189 in 1 : vector<16x16xf32>, vector<16x16xf32>, vector<16x16xf32>, vector<16x16xf32> -> vector<16x64xf32>
    %191 = arith.subf %123, %190 : vector<16x64xf32>
    %cst_62 = arith.constant dense<0.000000e+00> : vector<16x64xf32>
    %192 = tpu.matmul %191, %2, %cst_62 {dimension_numbers = #tpu.dot_dimension_numbers<[1], [0], [0], [1], [0, 0, 1, 1], [], []>} : vector<16x64xf32>, vector<64x64xf32>, vector<16x64xf32> -> vector<16x64xf32>
    %193 = vector.broadcast %3 : vector<1x64xf32> to vector<16x64xf32>
    %194 = arith.addf %120, %193 : vector<16x64xf32>
    %195 = arith.addf %192, %194 : vector<16x64xf32>
    %196 = vector.extract_strided_slice %195 {offsets = [0, 0], sizes = [16, 16], strides = [1, 1]} : vector<16x64xf32> to vector<16x16xf32>
    %cst_63 = arith.constant dense<0.000000e+00> : vector<16x256xf32>
    %197 = tpu.matmul %196, %5, %cst_63 {dimension_numbers = #tpu.dot_dimension_numbers<[1], [0], [0], [1], [0, 0, 1, 1], [], []>} : vector<16x16xf32>, vector<16x256xf32>, vector<16x256xf32> -> vector<16x256xf32>
    %198 = arith.mulf %6, %197 : vector<16x256xf32>
    %cst_64 = arith.constant dense<0.000000e+00> : vector<256xf32>
    %199 = vector.multi_reduction <add>, %198, %cst_64 [0] : vector<16x256xf32> to vector<256xf32>
    %200 = vector.shape_cast %199 : vector<256xf32> to vector<1x256xf32>
    %201 = vector.extract_strided_slice %195 {offsets = [0, 16], sizes = [16, 16], strides = [1, 1]} : vector<16x64xf32> to vector<16x16xf32>
    %cst_65 = arith.constant dense<0.000000e+00> : vector<16x256xf32>
    %202 = tpu.matmul %201, %5, %cst_65 {dimension_numbers = #tpu.dot_dimension_numbers<[1], [0], [0], [1], [0, 0, 1, 1], [], []>} : vector<16x16xf32>, vector<16x256xf32>, vector<16x256xf32> -> vector<16x256xf32>
    %203 = arith.mulf %6, %202 : vector<16x256xf32>
    %cst_66 = arith.constant dense<0.000000e+00> : vector<256xf32>
    %204 = vector.multi_reduction <add>, %203, %cst_66 [0] : vector<16x256xf32> to vector<256xf32>
    %205 = vector.shape_cast %204 : vector<256xf32> to vector<1x256xf32>
    %206 = vector.extract_strided_slice %195 {offsets = [0, 32], sizes = [16, 16], strides = [1, 1]} : vector<16x64xf32> to vector<16x16xf32>
    %cst_67 = arith.constant dense<0.000000e+00> : vector<16x256xf32>
    %207 = tpu.matmul %206, %5, %cst_67 {dimension_numbers = #tpu.dot_dimension_numbers<[1], [0], [0], [1], [0, 0, 1, 1], [], []>} : vector<16x16xf32>, vector<16x256xf32>, vector<16x256xf32> -> vector<16x256xf32>
    %208 = arith.mulf %6, %207 : vector<16x256xf32>
    %cst_68 = arith.constant dense<0.000000e+00> : vector<256xf32>
    %209 = vector.multi_reduction <add>, %208, %cst_68 [0] : vector<16x256xf32> to vector<256xf32>
    %210 = vector.shape_cast %209 : vector<256xf32> to vector<1x256xf32>
    %211 = vector.extract_strided_slice %195 {offsets = [0, 48], sizes = [16, 16], strides = [1, 1]} : vector<16x64xf32> to vector<16x16xf32>
    %cst_69 = arith.constant dense<0.000000e+00> : vector<16x256xf32>
    %212 = tpu.matmul %211, %5, %cst_69 {dimension_numbers = #tpu.dot_dimension_numbers<[1], [0], [0], [1], [0, 0, 1, 1], [], []>} : vector<16x16xf32>, vector<16x256xf32>, vector<16x256xf32> -> vector<16x256xf32>
    %213 = arith.mulf %6, %212 : vector<16x256xf32>
    %cst_70 = arith.constant dense<0.000000e+00> : vector<256xf32>
    %214 = vector.multi_reduction <add>, %213, %cst_70 [0] : vector<16x256xf32> to vector<256xf32>
    %215 = vector.shape_cast %214 : vector<256xf32> to vector<1x256xf32>
    %216 = tpu.concatenate %200, %205, %210, %215 in 0 : vector<1x256xf32>, vector<1x256xf32>, vector<1x256xf32>, vector<1x256xf32> -> vector<4x256xf32>
    %217 = tpu.concatenate %114, %216 in 1 : vector<4x256xf32>, vector<4x256xf32> -> vector<4x512xf32>
    %218 = vector.extract_strided_slice %217 {offsets = [0, 495], sizes = [4, 17], strides = [1, 1]} : vector<4x512xf32> to vector<4x17xf32>
    %219 = vector.extract_strided_slice %217 {offsets = [0, 0], sizes = [4, 495], strides = [1, 1]} : vector<4x512xf32> to vector<4x495xf32>
    %220 = tpu.concatenate %218, %219 in 1 : vector<4x17xf32>, vector<4x495xf32> -> vector<4x512xf32>
    %221 = vector.extract_strided_slice %7 {offsets = [0, 0], sizes = [1, 512], strides = [1, 1]} : vector<9x512xf32> to vector<1x512xf32>
    %222 = vector.broadcast %221 : vector<1x512xf32> to vector<4x512xf32>
    %223 = arith.mulf %220, %222 : vector<4x512xf32>
    %224 = vector.extract_strided_slice %217 {offsets = [0, 496], sizes = [4, 16], strides = [1, 1]} : vector<4x512xf32> to vector<4x16xf32>
    %225 = vector.extract_strided_slice %217 {offsets = [0, 0], sizes = [4, 496], strides = [1, 1]} : vector<4x512xf32> to vector<4x496xf32>
    %226 = tpu.concatenate %224, %225 in 1 : vector<4x16xf32>, vector<4x496xf32> -> vector<4x512xf32>
    %227 = vector.extract_strided_slice %7 {offsets = [1, 0], sizes = [1, 512], strides = [1, 1]} : vector<9x512xf32> to vector<1x512xf32>
    %228 = vector.broadcast %227 : vector<1x512xf32> to vector<4x512xf32>
    %229 = arith.mulf %226, %228 : vector<4x512xf32>
    %230 = vector.extract_strided_slice %217 {offsets = [0, 497], sizes = [4, 15], strides = [1, 1]} : vector<4x512xf32> to vector<4x15xf32>
    %231 = vector.extract_strided_slice %217 {offsets = [0, 0], sizes = [4, 497], strides = [1, 1]} : vector<4x512xf32> to vector<4x497xf32>
    %232 = tpu.concatenate %230, %231 in 1 : vector<4x15xf32>, vector<4x497xf32> -> vector<4x512xf32>
    %233 = vector.extract_strided_slice %7 {offsets = [2, 0], sizes = [1, 512], strides = [1, 1]} : vector<9x512xf32> to vector<1x512xf32>
    %234 = vector.broadcast %233 : vector<1x512xf32> to vector<4x512xf32>
    %235 = arith.mulf %232, %234 : vector<4x512xf32>
    %236 = vector.extract_strided_slice %217 {offsets = [0, 511], sizes = [4, 1], strides = [1, 1]} : vector<4x512xf32> to vector<4x1xf32>
    %237 = vector.extract_strided_slice %217 {offsets = [0, 0], sizes = [4, 511], strides = [1, 1]} : vector<4x512xf32> to vector<4x511xf32>
    %238 = tpu.concatenate %236, %237 in 1 : vector<4x1xf32>, vector<4x511xf32> -> vector<4x512xf32>
    %239 = vector.extract_strided_slice %7 {offsets = [3, 0], sizes = [1, 512], strides = [1, 1]} : vector<9x512xf32> to vector<1x512xf32>
    %240 = vector.broadcast %239 : vector<1x512xf32> to vector<4x512xf32>
    %241 = arith.mulf %238, %240 : vector<4x512xf32>
    %242 = vector.extract_strided_slice %7 {offsets = [4, 0], sizes = [1, 512], strides = [1, 1]} : vector<9x512xf32> to vector<1x512xf32>
    %243 = vector.broadcast %242 : vector<1x512xf32> to vector<4x512xf32>
    %244 = arith.mulf %217, %243 : vector<4x512xf32>
    %245 = vector.extract_strided_slice %217 {offsets = [0, 1], sizes = [4, 511], strides = [1, 1]} : vector<4x512xf32> to vector<4x511xf32>
    %246 = vector.extract_strided_slice %217 {offsets = [0, 0], sizes = [4, 1], strides = [1, 1]} : vector<4x512xf32> to vector<4x1xf32>
    %247 = tpu.concatenate %245, %246 in 1 : vector<4x511xf32>, vector<4x1xf32> -> vector<4x512xf32>
    %248 = vector.extract_strided_slice %7 {offsets = [5, 0], sizes = [1, 512], strides = [1, 1]} : vector<9x512xf32> to vector<1x512xf32>
    %249 = vector.broadcast %248 : vector<1x512xf32> to vector<4x512xf32>
    %250 = arith.mulf %247, %249 : vector<4x512xf32>
    %251 = vector.extract_strided_slice %217 {offsets = [0, 15], sizes = [4, 497], strides = [1, 1]} : vector<4x512xf32> to vector<4x497xf32>
    %252 = vector.extract_strided_slice %217 {offsets = [0, 0], sizes = [4, 15], strides = [1, 1]} : vector<4x512xf32> to vector<4x15xf32>
    %253 = tpu.concatenate %251, %252 in 1 : vector<4x497xf32>, vector<4x15xf32> -> vector<4x512xf32>
    %254 = vector.extract_strided_slice %7 {offsets = [6, 0], sizes = [1, 512], strides = [1, 1]} : vector<9x512xf32> to vector<1x512xf32>
    %255 = vector.broadcast %254 : vector<1x512xf32> to vector<4x512xf32>
    %256 = arith.mulf %253, %255 : vector<4x512xf32>
    %257 = vector.extract_strided_slice %217 {offsets = [0, 16], sizes = [4, 496], strides = [1, 1]} : vector<4x512xf32> to vector<4x496xf32>
    %258 = vector.extract_strided_slice %217 {offsets = [0, 0], sizes = [4, 16], strides = [1, 1]} : vector<4x512xf32> to vector<4x16xf32>
    %259 = tpu.concatenate %257, %258 in 1 : vector<4x496xf32>, vector<4x16xf32> -> vector<4x512xf32>
    %260 = vector.extract_strided_slice %7 {offsets = [7, 0], sizes = [1, 512], strides = [1, 1]} : vector<9x512xf32> to vector<1x512xf32>
    %261 = vector.broadcast %260 : vector<1x512xf32> to vector<4x512xf32>
    %262 = arith.mulf %259, %261 : vector<4x512xf32>
    %263 = vector.extract_strided_slice %217 {offsets = [0, 17], sizes = [4, 495], strides = [1, 1]} : vector<4x512xf32> to vector<4x495xf32>
    %264 = vector.extract_strided_slice %217 {offsets = [0, 0], sizes = [4, 17], strides = [1, 1]} : vector<4x512xf32> to vector<4x17xf32>
    %265 = tpu.concatenate %263, %264 in 1 : vector<4x495xf32>, vector<4x17xf32> -> vector<4x512xf32>
    %266 = vector.extract_strided_slice %7 {offsets = [8, 0], sizes = [1, 512], strides = [1, 1]} : vector<9x512xf32> to vector<1x512xf32>
    %267 = vector.broadcast %266 : vector<1x512xf32> to vector<4x512xf32>
    %268 = arith.mulf %265, %267 : vector<4x512xf32>
    %269 = tpu.concatenate %223, %229, %235, %241, %244, %250, %256, %262, %268 in 0 : vector<4x512xf32>, vector<4x512xf32>, vector<4x512xf32>, vector<4x512xf32>, vector<4x512xf32>, vector<4x512xf32>, vector<4x512xf32>, vector<4x512xf32>, vector<4x512xf32> -> vector<36x512xf32>
    %cst_71 = arith.constant dense<0.000000e+00> : vector<4x512xf32>
    %270 = tpu.matmul %9, %269, %cst_71 {dimension_numbers = #tpu.dot_dimension_numbers<[1], [0], [0], [1], [0, 0, 1, 1], [], []>} : vector<4x36xf32>, vector<36x512xf32>, vector<4x512xf32> -> vector<4x512xf32>
    %271 = vector.broadcast %10 : vector<4x1xf32> to vector<4x512xf32>
    %272 = arith.addf %270, %271 : vector<4x512xf32>
    %273 = vector.extract_strided_slice %272 {offsets = [0, 0], sizes = [4, 256], strides = [1, 1]} : vector<4x512xf32> to vector<4x256xf32>
    %274 = vector.shape_cast %273 : vector<4x256xf32> to vector<1x4x256xf32>
    %cst_72 = arith.constant dense<0.000000e+00> : vector<1xf32>
    %275 = vector.multi_reduction <add>, %274, %cst_72 [1, 2] : vector<1x4x256xf32> to vector<1xf32>
    %276 = vector.shape_cast %275 : vector<1xf32> to vector<1x1x1xf32>
    %277 = vector.extract %276[0, 0, 0] : f32 from vector<1x1x1xf32>
    %cst_73 = arith.constant 9.765625E-4 : f32
    %278 = arith.mulf %277, %cst_73 : f32
    %279 = arith.mulf %273, %273 : vector<4x256xf32>
    %280 = vector.shape_cast %279 : vector<4x256xf32> to vector<1x4x256xf32>
    %cst_74 = arith.constant dense<0.000000e+00> : vector<1xf32>
    %281 = vector.multi_reduction <add>, %280, %cst_74 [1, 2] : vector<1x4x256xf32> to vector<1xf32>
    %282 = vector.shape_cast %281 : vector<1xf32> to vector<1x1x1xf32>
    %283 = vector.extract %282[0, 0, 0] : f32 from vector<1x1x1xf32>
    %cst_75 = arith.constant 9.765625E-4 : f32
    %284 = arith.mulf %283, %cst_75 : f32
    %285 = vector.broadcast %278 : f32 to vector<4x256xf32>
    %286 = arith.subf %273, %285 : vector<4x256xf32>
    %287 = arith.mulf %278, %278 : f32
    %288 = arith.subf %284, %287 : f32
    %cst_76 = arith.constant 9.99999997E-7 : f32
    %289 = arith.addf %288, %cst_76 : f32
    %290 = math.rsqrt %289 : f32
    %291 = vector.broadcast %290 : f32 to vector<4x256xf32>
    %292 = arith.mulf %286, %291 : vector<4x256xf32>
    %293 = vector.extract_strided_slice %272 {offsets = [0, 256], sizes = [4, 256], strides = [1, 1]} : vector<4x512xf32> to vector<4x256xf32>
    %294 = vector.shape_cast %293 : vector<4x256xf32> to vector<1x4x256xf32>
    %cst_77 = arith.constant dense<0.000000e+00> : vector<1xf32>
    %295 = vector.multi_reduction <add>, %294, %cst_77 [1, 2] : vector<1x4x256xf32> to vector<1xf32>
    %296 = vector.shape_cast %295 : vector<1xf32> to vector<1x1x1xf32>
    %297 = vector.extract %296[0, 0, 0] : f32 from vector<1x1x1xf32>
    %cst_78 = arith.constant 9.765625E-4 : f32
    %298 = arith.mulf %297, %cst_78 : f32
    %299 = arith.mulf %293, %293 : vector<4x256xf32>
    %300 = vector.shape_cast %299 : vector<4x256xf32> to vector<1x4x256xf32>
    %cst_79 = arith.constant dense<0.000000e+00> : vector<1xf32>
    %301 = vector.multi_reduction <add>, %300, %cst_79 [1, 2] : vector<1x4x256xf32> to vector<1xf32>
    %302 = vector.shape_cast %301 : vector<1xf32> to vector<1x1x1xf32>
    %303 = vector.extract %302[0, 0, 0] : f32 from vector<1x1x1xf32>
    %cst_80 = arith.constant 9.765625E-4 : f32
    %304 = arith.mulf %303, %cst_80 : f32
    %305 = vector.broadcast %298 : f32 to vector<4x256xf32>
    %306 = arith.subf %293, %305 : vector<4x256xf32>
    %307 = arith.mulf %298, %298 : f32
    %308 = arith.subf %304, %307 : f32
    %cst_81 = arith.constant 9.99999997E-7 : f32
    %309 = arith.addf %308, %cst_81 : f32
    %310 = math.rsqrt %309 : f32
    %311 = vector.broadcast %310 : f32 to vector<4x256xf32>
    %312 = arith.mulf %306, %311 : vector<4x256xf32>
    %313 = tpu.concatenate %292, %312 in 1 : vector<4x256xf32>, vector<4x256xf32> -> vector<4x512xf32>
    %cst_82 = arith.constant 0.000000e+00 : f32
    %314 = vector.broadcast %cst_82 : f32 to vector<4x512xf32>
    %315 = arith.subf %314, %313 : vector<4x512xf32>
    %316 = math.exp %315 : vector<4x512xf32>
    %cst_83 = arith.constant 1.000000e+00 : f32
    %317 = vector.broadcast %cst_83 : f32 to vector<4x512xf32>
    %318 = arith.addf %317, %316 : vector<4x512xf32>
    %cst_84 = arith.constant 1.000000e+00 : f32
    %319 = vector.broadcast %cst_84 : f32 to vector<4x512xf32>
    %320 = arith.divf %319, %318 : vector<4x512xf32>
    %321 = arith.mulf %313, %320 : vector<4x512xf32>
    %322 = vector.extract_strided_slice %321 {offsets = [0, 495], sizes = [4, 17], strides = [1, 1]} : vector<4x512xf32> to vector<4x17xf32>
    %323 = vector.extract_strided_slice %321 {offsets = [0, 0], sizes = [4, 495], strides = [1, 1]} : vector<4x512xf32> to vector<4x495xf32>
    %324 = tpu.concatenate %322, %323 in 1 : vector<4x17xf32>, vector<4x495xf32> -> vector<4x512xf32>
    %325 = vector.extract_strided_slice %7 {offsets = [0, 0], sizes = [1, 512], strides = [1, 1]} : vector<9x512xf32> to vector<1x512xf32>
    %326 = vector.broadcast %325 : vector<1x512xf32> to vector<4x512xf32>
    %327 = arith.mulf %324, %326 : vector<4x512xf32>
    %328 = vector.extract_strided_slice %321 {offsets = [0, 496], sizes = [4, 16], strides = [1, 1]} : vector<4x512xf32> to vector<4x16xf32>
    %329 = vector.extract_strided_slice %321 {offsets = [0, 0], sizes = [4, 496], strides = [1, 1]} : vector<4x512xf32> to vector<4x496xf32>
    %330 = tpu.concatenate %328, %329 in 1 : vector<4x16xf32>, vector<4x496xf32> -> vector<4x512xf32>
    %331 = vector.extract_strided_slice %7 {offsets = [1, 0], sizes = [1, 512], strides = [1, 1]} : vector<9x512xf32> to vector<1x512xf32>
    %332 = vector.broadcast %331 : vector<1x512xf32> to vector<4x512xf32>
    %333 = arith.mulf %330, %332 : vector<4x512xf32>
    %334 = vector.extract_strided_slice %321 {offsets = [0, 497], sizes = [4, 15], strides = [1, 1]} : vector<4x512xf32> to vector<4x15xf32>
    %335 = vector.extract_strided_slice %321 {offsets = [0, 0], sizes = [4, 497], strides = [1, 1]} : vector<4x512xf32> to vector<4x497xf32>
    %336 = tpu.concatenate %334, %335 in 1 : vector<4x15xf32>, vector<4x497xf32> -> vector<4x512xf32>
    %337 = vector.extract_strided_slice %7 {offsets = [2, 0], sizes = [1, 512], strides = [1, 1]} : vector<9x512xf32> to vector<1x512xf32>
    %338 = vector.broadcast %337 : vector<1x512xf32> to vector<4x512xf32>
    %339 = arith.mulf %336, %338 : vector<4x512xf32>
    %340 = vector.extract_strided_slice %321 {offsets = [0, 511], sizes = [4, 1], strides = [1, 1]} : vector<4x512xf32> to vector<4x1xf32>
    %341 = vector.extract_strided_slice %321 {offsets = [0, 0], sizes = [4, 511], strides = [1, 1]} : vector<4x512xf32> to vector<4x511xf32>
    %342 = tpu.concatenate %340, %341 in 1 : vector<4x1xf32>, vector<4x511xf32> -> vector<4x512xf32>
    %343 = vector.extract_strided_slice %7 {offsets = [3, 0], sizes = [1, 512], strides = [1, 1]} : vector<9x512xf32> to vector<1x512xf32>
    %344 = vector.broadcast %343 : vector<1x512xf32> to vector<4x512xf32>
    %345 = arith.mulf %342, %344 : vector<4x512xf32>
    %346 = vector.extract_strided_slice %7 {offsets = [4, 0], sizes = [1, 512], strides = [1, 1]} : vector<9x512xf32> to vector<1x512xf32>
    %347 = vector.broadcast %346 : vector<1x512xf32> to vector<4x512xf32>
    %348 = arith.mulf %321, %347 : vector<4x512xf32>
    %349 = vector.extract_strided_slice %321 {offsets = [0, 1], sizes = [4, 511], strides = [1, 1]} : vector<4x512xf32> to vector<4x511xf32>
    %350 = vector.extract_strided_slice %321 {offsets = [0, 0], sizes = [4, 1], strides = [1, 1]} : vector<4x512xf32> to vector<4x1xf32>
    %351 = tpu.concatenate %349, %350 in 1 : vector<4x511xf32>, vector<4x1xf32> -> vector<4x512xf32>
    %352 = vector.extract_strided_slice %7 {offsets = [5, 0], sizes = [1, 512], strides = [1, 1]} : vector<9x512xf32> to vector<1x512xf32>
    %353 = vector.broadcast %352 : vector<1x512xf32> to vector<4x512xf32>
    %354 = arith.mulf %351, %353 : vector<4x512xf32>
    %355 = vector.extract_strided_slice %321 {offsets = [0, 15], sizes = [4, 497], strides = [1, 1]} : vector<4x512xf32> to vector<4x497xf32>
    %356 = vector.extract_strided_slice %321 {offsets = [0, 0], sizes = [4, 15], strides = [1, 1]} : vector<4x512xf32> to vector<4x15xf32>
    %357 = tpu.concatenate %355, %356 in 1 : vector<4x497xf32>, vector<4x15xf32> -> vector<4x512xf32>
    %358 = vector.extract_strided_slice %7 {offsets = [6, 0], sizes = [1, 512], strides = [1, 1]} : vector<9x512xf32> to vector<1x512xf32>
    %359 = vector.broadcast %358 : vector<1x512xf32> to vector<4x512xf32>
    %360 = arith.mulf %357, %359 : vector<4x512xf32>
    %361 = vector.extract_strided_slice %321 {offsets = [0, 16], sizes = [4, 496], strides = [1, 1]} : vector<4x512xf32> to vector<4x496xf32>
    %362 = vector.extract_strided_slice %321 {offsets = [0, 0], sizes = [4, 16], strides = [1, 1]} : vector<4x512xf32> to vector<4x16xf32>
    %363 = tpu.concatenate %361, %362 in 1 : vector<4x496xf32>, vector<4x16xf32> -> vector<4x512xf32>
    %364 = vector.extract_strided_slice %7 {offsets = [7, 0], sizes = [1, 512], strides = [1, 1]} : vector<9x512xf32> to vector<1x512xf32>
    %365 = vector.broadcast %364 : vector<1x512xf32> to vector<4x512xf32>
    %366 = arith.mulf %363, %365 : vector<4x512xf32>
    %367 = vector.extract_strided_slice %321 {offsets = [0, 17], sizes = [4, 495], strides = [1, 1]} : vector<4x512xf32> to vector<4x495xf32>
    %368 = vector.extract_strided_slice %321 {offsets = [0, 0], sizes = [4, 17], strides = [1, 1]} : vector<4x512xf32> to vector<4x17xf32>
    %369 = tpu.concatenate %367, %368 in 1 : vector<4x495xf32>, vector<4x17xf32> -> vector<4x512xf32>
    %370 = vector.extract_strided_slice %7 {offsets = [8, 0], sizes = [1, 512], strides = [1, 1]} : vector<9x512xf32> to vector<1x512xf32>
    %371 = vector.broadcast %370 : vector<1x512xf32> to vector<4x512xf32>
    %372 = arith.mulf %369, %371 : vector<4x512xf32>
    %373 = tpu.concatenate %327, %333, %339, %345, %348, %354, %360, %366, %372 in 0 : vector<4x512xf32>, vector<4x512xf32>, vector<4x512xf32>, vector<4x512xf32>, vector<4x512xf32>, vector<4x512xf32>, vector<4x512xf32>, vector<4x512xf32>, vector<4x512xf32> -> vector<36x512xf32>
    %cst_85 = arith.constant dense<0.000000e+00> : vector<4x512xf32>
    %374 = tpu.matmul %11, %373, %cst_85 {dimension_numbers = #tpu.dot_dimension_numbers<[1], [0], [0], [1], [0, 0, 1, 1], [], []>} : vector<4x36xf32>, vector<36x512xf32>, vector<4x512xf32> -> vector<4x512xf32>
    %375 = vector.broadcast %12 : vector<4x1xf32> to vector<4x512xf32>
    %376 = arith.addf %374, %375 : vector<4x512xf32>
    %c0_86 = arith.constant 0 : index
    %c0_87 = arith.constant 0 : index
    %377 = vector.load %arg6[%c0_86, %c0_87] : memref<4x512xf32, #tpu.memory_space<vmem>>, vector<4x512xf32>
    tpu.vector_store %arg6[%c0_86, %c0_87], %376 {strides = array<i32>} : memref<4x512xf32, #tpu.memory_space<vmem>>, vector<4x512xf32>,
    return
  }
  func.func @transform_0(%arg0: i32) -> (i32, i32, i32) {
    %c0_i32 = arith.constant 0 : i32
    %c0_i32_0 = arith.constant 0 : i32
    %c0_i32_1 = arith.constant 0 : i32
    %c0_i32_2 = arith.constant 0 : i32
    return %c0_i32, %c0_i32_0, %c0_i32_1 : i32, i32, i32
  }
  func.func @transform_1(%arg0: i32) -> (i32, i32) {
    %c0_i32 = arith.constant 0 : i32
    %c0_i32_0 = arith.constant 0 : i32
    %c0_i32_1 = arith.constant 0 : i32
    return %c0_i32, %c0_i32_0 : i32, i32
  }
  func.func @transform_2(%arg0: i32) -> (i32, i32) {
    %c0_i32 = arith.constant 0 : i32
    %c0_i32_0 = arith.constant 0 : i32
    %c0_i32_1 = arith.constant 0 : i32
    return %c0_i32, %c0_i32_0 : i32, i32
  }
  func.func @transform_3(%arg0: i32) -> (i32, i32) {
    %c0_i32 = arith.constant 0 : i32
    %c0_i32_0 = arith.constant 0 : i32
    %c0_i32_1 = arith.constant 0 : i32
    return %c0_i32, %c0_i32_0 : i32, i32
  }
  func.func @transform_4(%arg0: i32) -> (i32, i32) {
    %c0_i32 = arith.constant 0 : i32
    %c0_i32_0 = arith.constant 0 : i32
    %c0_i32_1 = arith.constant 0 : i32
    return %c0_i32, %c0_i32_0 : i32, i32
  }
  func.func @transform_5(%arg0: i32) -> (i32, i32) {
    %c0_i32 = arith.constant 0 : i32
    %c0_i32_0 = arith.constant 0 : i32
    %c0_i32_1 = arith.constant 0 : i32
    return %c0_i32, %c0_i32_0 : i32, i32
  }
}

</mosaic_0001>

<llo_original>
// kernel: forward_pallas.1
$region0: #{forward_pallas.1}
  #allocation0 [shape = 'u32[]', space=smem, size = 0x4, offset = 0x4, fixed_abs, tag = 'smem constant byte address 0x4 - core index']
  #allocation1 [shape = 'u32[144,128]{1,0:T(1,128)}', space=vmem, size = 0x12000, scoped, tag = 'internal scratch']
  %s0 = inlined_call_operand.vmem [shape: f32[6,16,64], index: 0, kind: input, shape index: {}]
  %s1 = inlined_call_operand.vmem [shape: f32[81,64], index: 1, kind: input, shape index: {}]
  %s2 = inlined_call_operand.vmem [shape: f32[32,256], index: 2, kind: input, shape index: {}]
  %s3 = inlined_call_operand.vmem [shape: f32[9,512], index: 3, kind: input, shape index: {}]
  %s4 = inlined_call_operand.vmem [shape: f32[4,74], index: 4, kind: input, shape index: {}]
  %s5 = inlined_call_operand.vmem [shape: f32[4,512], index: 5, kind: output, shape index: {}]
  %s6 = sld [smem:[#allocation0]]
  $region30: #{forward_pallas.1} parent=0
    _
  %s8 = ssub.s32 1, %s6
  %s9 = scalar_select 0, %s8, %s6
  // Predicated region
  $region2: #{forward_pallas.1} parent=0 // pred_check
    _
  $region3: #{forward_pallas.1} parent=0 // pred_check_branch
    %11 = sbr.rel (0) target = $region5
  $region4: #{forward_pallas.1} parent=0 // pred_region
    _
  $region5: #{forward_pallas.1} parent=0 // pred_fallthru
    _
  // Predicated region
  $region6: #{forward_pallas.1} parent=0 // pred_check
    _
  $region7: #{forward_pallas.1} parent=0 // pred_check_branch
    %13 = sbr.rel (0) target = $region9
  $region8: #{forward_pallas.1} parent=0 // pred_region
    _
  $region9: #{forward_pallas.1} parent=0 // pred_fallthru
    _
  // Predicated region
  $region10: #{forward_pallas.1} parent=0 // pred_check
    _
  $region11: #{forward_pallas.1} parent=0 // pred_check_branch
    %15 = sbr.rel (0) target = $region13
  $region12: #{forward_pallas.1} parent=0 // pred_region
    _
  $region13: #{forward_pallas.1} parent=0 // pred_fallthru
    _
  // Predicated region
  $region14: #{forward_pallas.1} parent=0 // pred_check
    _
  $region15: #{forward_pallas.1} parent=0 // pred_check_branch
    %17 = sbr.rel (0) target = $region17
  $region16: #{forward_pallas.1} parent=0 // pred_region
    _
  $region17: #{forward_pallas.1} parent=0 // pred_fallthru
    _
  // Predicated region
  $region18: #{forward_pallas.1} parent=0 // pred_check
    _
  $region19: #{forward_pallas.1} parent=0 // pred_check_branch
    %19 = sbr.rel (0) target = $region21
  $region20: #{forward_pallas.1} parent=0 // pred_region
    _
  $region21: #{forward_pallas.1} parent=0 // pred_fallthru
    _
  %v20 = vld [vmem:[%s1] sm:$0xff]
  %v21 = vld [vmem:[%s1 + $0x8] sm:$0xff]
  %v22 = vld [vmem:[%s1 + $0x10] sm:$0xff]
  %v23 = vld [vmem:[%s1 + $0x18] sm:$0xff]
  %v24 = vld [vmem:[%s1 + $0x20] sm:$0xff]
  %v25 = vld [vmem:[%s1 + $0x28] sm:$0xff]
  %v26 = vld [vmem:[%s1 + $0x30] sm:$0xff]
  %v27 = vld [vmem:[%s1 + $0x38] sm:$0xff]
  %v28 = vld [vmem:[%s1 + $0x40] sm:$0xff]
  %v29 = vld [vmem:[%s1 + $0x48] sm:$0xff]
  %v30 = vld [vmem:[%s1 + $0x50] sm:$0x1]
  %v31 = vld [vmem:[%s2] sm:$0xff]
  %v32 = vld [vmem:[%s2 + $0x8] sm:$0xff]
  %v33 = vld [vmem:[%s2 + $0x10] sm:$0xff]
  %v34 = vld [vmem:[%s2 + $0x18] sm:$0xff]
  %v35 = vld [vmem:[%s2 + $0x20] sm:$0xff]
  %v36 = vld [vmem:[%s2 + $0x28] sm:$0xff]
  %v37 = vld [vmem:[%s2 + $0x30] sm:$0xff]
  %v38 = vld [vmem:[%s2 + $0x38] sm:$0xff]
  %v39 = vld [vmem:[%s3] sm:$0xff]
  %v40 = vld [vmem:[%s3 + $0x8] sm:$0xff]
  %v41 = vld [vmem:[%s3 + $0x10] sm:$0xff]
  %v42 = vld [vmem:[%s3 + $0x18] sm:$0xff]
  %v43 = vld [vmem:[%s3 + $0x20] sm:$0x1]
  %v44 = vld [vmem:[%s3 + $0x28] sm:$0x1]
  %v45 = vld [vmem:[%s3 + $0x30] sm:$0x1]
  %v46 = vld [vmem:[%s3 + $0x38] sm:$0x1]
  %v47 = vld [vmem:[%s4] sm:$0xf]
  %v48 = vld [vmem:[%s0] sm:$0xff]
  %v49 = vld [vmem:[%s0 + $0x8] sm:$0xff]
  %v50 = vadd.f32 %v48, %v20
  %v51 = vadd.f32 %v49, %v21
  %s52 = scalar_lea.vmem %s0, 32
  %v53 = vld [vmem:[%s52] sm:$0xff]
  %v54 = vld [vmem:[%s52 + $0x8] sm:$0xff]
  %v55 = vadd.f32 %v53, %v20
  %v56 = vadd.f32 %v54, %v21
  %s57 = scalar_lea.vmem %s0, 64
  %v58 = vld [vmem:[%s57] sm:$0xff]
  %v59 = vld [vmem:[%s57 + $0x8] sm:$0xff]
  %v60 = vadd.f32 %v58, %v20
  %v61 = vadd.f32 %v59, %v21
  %v62 = vmul.f32 %v55, 0.125
  %v63 = vmul.f32 %v56, 0.125
  %vm64 = vcmask 130048
  %v66 = vsel %vm64, %v62, 0
  %v69 = vsel %vm64, %v63, 0
  %v72 = vsel %vm64, %v50, 0
  %v75 = vsel %vm64, %v51, 0
  %77 = vmatprep.subr.mxu0 0.0
  %78 = vmatpush1.xpose.msra.mxu0 %v72
  %79 = vmatprep.subr.mxu0 0.0
  %80 = vmatpush1.xpose.msra.mxu0 %v75
  %81 = vmatprep.subr.mxu0 0.0
  %82 = vmatpush1.xpose.msra.mxu0 0.0
  %83 = vmatprep.subr.mxu0 0.0
  %84 = vmatpush1.xpose.msra.mxu0 0.0
  %85 = vmatprep.subr.mxu0 0.0
  %86 = vmatpush1.xpose.msra.mxu0 0.0
  %87 = vmatprep.subr.mxu0 0.0
  %88 = vmatpush1.xpose.msra.mxu0 0.0
  %89 = vmatprep.subr.mxu0 0.0
  %90 = vmatpush1.xpose.msra.mxu0 0.0
  %91 = vmatprep.subr.mxu0 0.0
  %92 = vmatpush1.xpose.msra.mxu0 0.0
  %93 = vmatprep.subr.mxu0 0.0
  %94 = vmatpush1.xpose.msra.mxu0 0.0
  %95 = vmatprep.subr.mxu0 0.0
  %96 = vmatpush1.xpose.msra.mxu0 0.0
  %97 = vmatprep.subr.mxu0 0.0
  %98 = vmatpush1.xpose.msra.mxu0 0.0
  %99 = vmatprep.subr.mxu0 0.0
  %100 = vmatpush1.xpose.msra.mxu0 0.0
  %101 = vmatprep.subr.mxu0 0.0
  %102 = vmatpush1.xpose.msra.mxu0 0.0
  %103 = vmatprep.subr.mxu0 0.0
  %104 = vmatpush1.xpose.msra.mxu0 0.0
  %105 = vmatprep.subr.mxu0 0.0
  %106 = vmatpush1.xpose.msra.mxu0 0.0
  %107 = vmatprep.subr.mxu0 0.0
  %108 = vmatpush1.xpose.msra.mxu0 0.0
  %109 = vmatprep.subr.mxu0 0.0
  %110 = vmatpush1.xpose.msra.mxu0 0.0
  %111 = vmatprep.subr.mxu0 0.0
  %112 = vmatpush1.xpose.msra.mxu0 0.0
  %113 = vmatprep.subr.mxu0 0.0
  %114 = vmatpush1.xpose.msra.mxu0 0.0
  %115 = vmatprep.subr.mxu0 0.0
  %116 = vmatpush1.xpose.msra.mxu0 0.0
  %117 = vmatprep.subr.mxu0 0.0
  %118 = vmatpush1.xpose.msra.mxu0 0.0
  %119 = vmatprep.subr.mxu0 0.0
  %120 = vmatpush1.xpose.msra.mxu0 0.0
  %121 = vmatprep.subr.mxu0 0.0
  %122 = vmatpush1.xpose.msra.mxu0 0.0
  %123 = vmatprep.subr.mxu0 0.0
  %124 = vmatpush1.xpose.msra.mxu0 0.0
  %125 = vmatprep.subr.mxu0 0.0
  %126 = vmatpush1.xpose.msra.mxu0 0.0
  %127 = vmatprep.subr.mxu0 0.0
  %128 = vmatpush1.xpose.msra.mxu0 0.0
  %129 = vmatprep.subr.mxu0 0.0
  %130 = vmatpush1.xpose.msra.mxu0 0.0
  %131 = vmatprep.subr.mxu0 0.0
  %132 = vmatpush1.xpose.msra.mxu0 0.0
  %133 = vmatprep.subr.mxu0 0.0
  %134 = vmatpush1.xpose.msra.mxu0 0.0
  %135 = vmatprep.subr.mxu0 0.0
  %136 = vmatpush1.xpose.msra.mxu0 0.0
  %137 = vmatprep.subr.mxu0 0.0
  %138 = vmatpush1.xpose.msra.mxu0 0.0
  %139 = vmatprep.subr.mxu0 0.0
  %140 = vmatpush1.xpose.msra.mxu0 0.0
  %141 = vmatprep.mubr.f32.mxu0 0.0
  %142 = vmatmul.mubr.f32.gmra.mrb[0].mxu0 %v66
  %v143 = vpop.f32.mrb[0].mxu0
  %v144 = vadd.f32 0.0, %v143
  %v145 = vpop.f32.mrb[0].mxu0
  %146 = vmatprep.mubr.f32.mxu0 0.0
  %147 = vmatmul.mubr.f32.gmra.mrb[0].mxu0 %v69
  %v148 = vpop.f32.mrb[0].mxu0
  %v149 = vadd.f32 0.0, %v148
  %v150 = vpop.f32.mrb[0].mxu0
  %151 = vdwg.mxu0
  %v152 = vsel %vm64, %v144, -inf
  %153 = vmax.xlane.f32.xlu0 %v152
  %v154 = vpop.xlane.xlu0 %153
  %v155 = vsel %vm64, %v149, -inf
  %156 = vmax.xlane.f32.xlu0 %v155
  %v157 = vpop.xlane.xlu0 %156
  %v158 = vsub.f32 %v144, %v154
  %v159 = vsub.f32 %v149, %v157
  %v160 = vmul.f32 %v158, 1.442695
  %v161 = vpow.pop %v160
  %v162 = vmul.f32 %v159, 1.442695
  %v163 = vpow.pop %v162
  %v164 = vsel %vm64, %v161, 0.0
  %165 = vadd.xlane.f32.xlu0 %v164
  %v166 = vpop.xlane.xlu0 %165
  %v167 = vsel %vm64, %v163, 0.0
  %168 = vadd.xlane.f32.xlu0 %v167
  %v169 = vpop.xlane.xlu0 %168
  %v170 = vrcp.pop %v166
  %v171 = vrcp.pop %v169
  %v172 = vmul.f32 %v161, %v170
  %v173 = vmul.f32 %v163, %v171
  %v175 = vsel %vm64, %v172, 0
  %v178 = vsel %vm64, %v173, 0
  %180 = vmatprep.subr.mxu0 0.0
  %181 = vmatpush1.msra.mxu0 %v60
  %182 = vmatprep.subr.mxu0 0.0
  %183 = vmatpush1.msra.mxu0 %v61
  %184 = vmatprep.subr.mxu0 0.0
  %185 = vmatpush1.msra.mxu0 0.0
  %186 = vmatprep.subr.mxu0 0.0
  %187 = vmatpush1.msra.mxu0 0.0
  %188 = vmatprep.subr.mxu0 0.0
  %189 = vmatpush1.msra.mxu0 0.0
  %190 = vmatprep.subr.mxu0 0.0
  %191 = vmatpush1.msra.mxu0 0.0
  %192 = vmatprep.subr.mxu0 0.0
  %193 = vmatpush1.msra.mxu0 0.0
  %194 = vmatprep.subr.mxu0 0.0
  %195 = vmatpush1.msra.mxu0 0.0
  %196 = vmatprep.subr.mxu0 0.0
  %197 = vmatpush1.msra.mxu0 0.0
  %198 = vmatprep.subr.mxu0 0.0
  %199 = vmatpush1.msra.mxu0 0.0
  %200 = vmatprep.subr.mxu0 0.0
  %201 = vmatpush1.msra.mxu0 0.0
  %202 = vmatprep.subr.mxu0 0.0
  %203 = vmatpush1.msra.mxu0 0.0
  %204 = vmatprep.subr.mxu0 0.0
  %205 = vmatpush1.msra.mxu0 0.0
  %206 = vmatprep.subr.mxu0 0.0
  %207 = vmatpush1.msra.mxu0 0.0
  %208 = vmatprep.subr.mxu0 0.0
  %209 = vmatpush1.msra.mxu0 0.0
  %210 = vmatprep.subr.mxu0 0.0
  %211 = vmatpush1.msra.mxu0 0.0
  %212 = vmatprep.subr.mxu0 0.0
  %213 = vmatpush1.msra.mxu0 0.0
  %214 = vmatprep.subr.mxu0 0.0
  %215 = vmatpush1.msra.mxu0 0.0
  %216 = vmatprep.subr.mxu0 0.0
  %217 = vmatpush1.msra.mxu0 0.0
  %218 = vmatprep.subr.mxu0 0.0
  %219 = vmatpush1.msra.mxu0 0.0
  %220 = vmatprep.subr.mxu0 0.0
  %221 = vmatpush1.msra.mxu0 0.0
  %222 = vmatprep.subr.mxu0 0.0
  %223 = vmatpush1.msra.mxu0 0.0
  %224 = vmatprep.subr.mxu0 0.0
  %225 = vmatpush1.msra.mxu0 0.0
  %226 = vmatprep.subr.mxu0 0.0
  %227 = vmatpush1.msra.mxu0 0.0
  %228 = vmatprep.subr.mxu0 0.0
  %229 = vmatpush1.msra.mxu0 0.0
  %230 = vmatprep.subr.mxu0 0.0
  %231 = vmatpush1.msra.mxu0 0.0
  %232 = vmatprep.subr.mxu0 0.0
  %233 = vmatpush1.msra.mxu0 0.0
  %234 = vmatprep.subr.mxu0 0.0
  %235 = vmatpush1.msra.mxu0 0.0
  %236 = vmatprep.subr.mxu0 0.0
  %237 = vmatpush1.msra.mxu0 0.0
  %238 = vmatprep.subr.mxu0 0.0
  %239 = vmatpush1.msra.mxu0 0.0
  %240 = vmatprep.subr.mxu0 0.0
  %241 = vmatpush1.msra.mxu0 0.0
  %242 = vmatprep.subr.mxu0 0.0
  %243 = vmatpush1.msra.mxu0 0.0
  %244 = vmatprep.mubr.f32.mxu0 0.0
  %245 = vmatmul.mubr.f32.gmra.mrb[0].mxu0 %v175
  %v246 = vpop.f32.mrb[0].mxu0
  %v247 = vadd.f32 0.0, %v246
  %v248 = vpop.f32.mrb[0].mxu0
  %249 = vmatprep.mubr.f32.mxu0 0.0
  %250 = vmatmul.mubr.f32.gmra.mrb[0].mxu0 %v178
  %v251 = vpop.f32.mrb[0].mxu0
  %v252 = vadd.f32 0.0, %v251
  %v253 = vpop.f32.mrb[0].mxu0
  %254 = vdwg.mxu0
  %255 = vrot.lane.b32.xlu0 %v62, 112
  %v256 = vpop.permute.xlu0 %255
  %257 = vrot.lane.b32.xlu0 %v63, 112
  %v258 = vpop.permute.xlu0 %257
  %259 = vrot.lane.b32.xlu0 %v50, 112
  %v260 = vpop.permute.xlu0 %259
  %261 = vrot.lane.b32.xlu0 %v51, 112
  %v262 = vpop.permute.xlu0 %261
  %v263 = vsel %vm64, %v256, 0
  %v265 = vsel %vm64, %v258, 0
  %v267 = vsel %vm64, %v260, 0
  %v269 = vsel %vm64, %v262, 0
  %271 = vmatprep.subr.mxu0 0.0
  %272 = vmatpush1.xpose.msra.mxu0 %v267
  %273 = vmatprep.subr.mxu0 0.0
  %274 = vmatpush1.xpose.msra.mxu0 %v269
  %275 = vmatprep.subr.mxu0 0.0
  %276 = vmatpush1.xpose.msra.mxu0 0.0
  %277 = vmatprep.subr.mxu0 0.0
  %278 = vmatpush1.xpose.msra.mxu0 0.0
  %279 = vmatprep.subr.mxu0 0.0
  %280 = vmatpush1.xpose.msra.mxu0 0.0
  %281 = vmatprep.subr.mxu0 0.0
  %282 = vmatpush1.xpose.msra.mxu0 0.0
  %283 = vmatprep.subr.mxu0 0.0
  %284 = vmatpush1.xpose.msra.mxu0 0.0
  %285 = vmatprep.subr.mxu0 0.0
  %286 = vmatpush1.xpose.msra.mxu0 0.0
  %287 = vmatprep.subr.mxu0 0.0
  %288 = vmatpush1.xpose.msra.mxu0 0.0
  %289 = vmatprep.subr.mxu0 0.0
  %290 = vmatpush1.xpose.msra.mxu0 0.0
  %291 = vmatprep.subr.mxu0 0.0
  %292 = vmatpush1.xpose.msra.mxu0 0.0
  %293 = vmatprep.subr.mxu0 0.0
  %294 = vmatpush1.xpose.msra.mxu0 0.0
  %295 = vmatprep.subr.mxu0 0.0
  %296 = vmatpush1.xpose.msra.mxu0 0.0
  %297 = vmatprep.subr.mxu0 0.0
  %298 = vmatpush1.xpose.msra.mxu0 0.0
  %299 = vmatprep.subr.mxu0 0.0
  %300 = vmatpush1.xpose.msra.mxu0 0.0
  %301 = vmatprep.subr.mxu0 0.0
  %302 = vmatpush1.xpose.msra.mxu0 0.0
  %303 = vmatprep.subr.mxu0 0.0
  %304 = vmatpush1.xpose.msra.mxu0 0.0
  %305 = vmatprep.subr.mxu0 0.0
  %306 = vmatpush1.xpose.msra.mxu0 0.0
  %307 = vmatprep.subr.mxu0 0.0
  %308 = vmatpush1.xpose.msra.mxu0 0.0
  %309 = vmatprep.subr.mxu0 0.0
  %310 = vmatpush1.xpose.msra.mxu0 0.0
  %311 = vmatprep.subr.mxu0 0.0
  %312 = vmatpush1.xpose.msra.mxu0 0.0
  %313 = vmatprep.subr.mxu0 0.0
  %314 = vmatpush1.xpose.msra.mxu0 0.0
  %315 = vmatprep.subr.mxu0 0.0
  %316 = vmatpush1.xpose.msra.mxu0 0.0
  %317 = vmatprep.subr.mxu0 0.0
  %318 = vmatpush1.xpose.msra.mxu0 0.0
  %319 = vmatprep.subr.mxu0 0.0
  %320 = vmatpush1.xpose.msra.mxu0 0.0
  %321 = vmatprep.subr.mxu0 0.0
  %322 = vmatpush1.xpose.msra.mxu0 0.0
  %323 = vmatprep.subr.mxu0 0.0
  %324 = vmatpush1.xpose.msra.mxu0 0.0
  %325 = vmatprep.subr.mxu0 0.0
  %326 = vmatpush1.xpose.msra.mxu0 0.0
  %327 = vmatprep.subr.mxu0 0.0
  %328 = vmatpush1.xpose.msra.mxu0 0.0
  %329 = vmatprep.subr.mxu0 0.0
  %330 = vmatpush1.xpose.msra.mxu0 0.0
  %331 = vmatprep.subr.mxu0 0.0
  %332 = vmatpush1.xpose.msra.mxu0 0.0
  %333 = vmatprep.subr.mxu0 0.0
  %334 = vmatpush1.xpose.msra.mxu0 0.0
  %335 = vmatprep.mubr.f32.mxu0 0.0
  %336 = vmatmul.mubr.f32.gmra.mrb[0].mxu0 %v263
  %v337 = vpop.f32.mrb[0].mxu0
  %v338 = vadd.f32 0.0, %v337
  %v339 = vpop.f32.mrb[0].mxu0
  %340 = vmatprep.mubr.f32.mxu0 0.0
  %341 = vmatmul.mubr.f32.gmra.mrb[0].mxu0 %v265
  %v342 = vpop.f32.mrb[0].mxu0
  %v343 = vadd.f32 0.0, %v342
  %v344 = vpop.f32.mrb[0].mxu0
  %345 = vdwg.mxu0
  %v346 = vsel %vm64, %v338, -inf
  %347 = vmax.xlane.f32.xlu0 %v346
  %v348 = vpop.xlane.xlu0 %347
  %v349 = vsel %vm64, %v343, -inf
  %350 = vmax.xlane.f32.xlu0 %v349
  %v351 = vpop.xlane.xlu0 %350
  %v352 = vsub.f32 %v338, %v348
  %v353 = vsub.f32 %v343, %v351
  %v354 = vmul.f32 %v352, 1.442695
  %v355 = vpow.pop %v354
  %v356 = vmul.f32 %v353, 1.442695
  %v357 = vpow.pop %v356
  %v358 = vsel %vm64, %v355, 0.0
  %359 = vadd.xlane.f32.xlu0 %v358
  %v360 = vpop.xlane.xlu0 %359
  %v361 = vsel %vm64, %v357, 0.0
  %362 = vadd.xlane.f32.xlu0 %v361
  %v363 = vpop.xlane.xlu0 %362
  %v364 = vrcp.pop %v360
  %v365 = vrcp.pop %v363
  %v366 = vmul.f32 %v355, %v364
  %v367 = vmul.f32 %v357, %v365
  %370 = vrot.lane.b32.xlu0 %v60, 112
  %v371 = vpop.permute.xlu0 %370
  %372 = vrot.lane.b32.xlu0 %v61, 112
  %v373 = vpop.permute.xlu0 %372
  %v377 = vsel %vm64, %v366, 0
  %v380 = vsel %vm64, %v367, 0
  %382 = vmatprep.subr.mxu0 0.0
  %383 = vmatpush1.msra.mxu0 %v371
  %384 = vmatprep.subr.mxu0 0.0
  %385 = vmatpush1.msra.mxu0 %v373
  %386 = vmatprep.subr.mxu0 0.0
  %387 = vmatpush1.msra.mxu0 0.0
  %388 = vmatprep.subr.mxu0 0.0
  %389 = vmatpush1.msra.mxu0 0.0
  %390 = vmatprep.subr.mxu0 0.0
  %391 = vmatpush1.msra.mxu0 0.0
  %392 = vmatprep.subr.mxu0 0.0
  %393 = vmatpush1.msra.mxu0 0.0
  %394 = vmatprep.subr.mxu0 0.0
  %395 = vmatpush1.msra.mxu0 0.0
  %396 = vmatprep.subr.mxu0 0.0
  %397 = vmatpush1.msra.mxu0 0.0
  %398 = vmatprep.subr.mxu0 0.0
  %399 = vmatpush1.msra.mxu0 0.0
  %400 = vmatprep.subr.mxu0 0.0
  %401 = vmatpush1.msra.mxu0 0.0
  %402 = vmatprep.subr.mxu0 0.0
  %403 = vmatpush1.msra.mxu0 0.0
  %404 = vmatprep.subr.mxu0 0.0
  %405 = vmatpush1.msra.mxu0 0.0
  %406 = vmatprep.subr.mxu0 0.0
  %407 = vmatpush1.msra.mxu0 0.0
  %408 = vmatprep.subr.mxu0 0.0
  %409 = vmatpush1.msra.mxu0 0.0
  %410 = vmatprep.subr.mxu0 0.0
  %411 = vmatpush1.msra.mxu0 0.0
  %412 = vmatprep.subr.mxu0 0.0
  %413 = vmatpush1.msra.mxu0 0.0
  %414 = vmatprep.subr.mxu0 0.0
  %415 = vmatpush1.msra.mxu0 0.0
  %416 = vmatprep.subr.mxu0 0.0
  %417 = vmatpush1.msra.mxu0 0.0
  %418 = vmatprep.subr.mxu0 0.0
  %419 = vmatpush1.msra.mxu0 0.0
  %420 = vmatprep.subr.mxu0 0.0
  %421 = vmatpush1.msra.mxu0 0.0
  %422 = vmatprep.subr.mxu0 0.0
  %423 = vmatpush1.msra.mxu0 0.0
  %424 = vmatprep.subr.mxu0 0.0
  %425 = vmatpush1.msra.mxu0 0.0
  %426 = vmatprep.subr.mxu0 0.0
  %427 = vmatpush1.msra.mxu0 0.0
  %428 = vmatprep.subr.mxu0 0.0
  %429 = vmatpush1.msra.mxu0 0.0
  %430 = vmatprep.subr.mxu0 0.0
  %431 = vmatpush1.msra.mxu0 0.0
  %432 = vmatprep.subr.mxu0 0.0
  %433 = vmatpush1.msra.mxu0 0.0
  %434 = vmatprep.subr.mxu0 0.0
  %435 = vmatpush1.msra.mxu0 0.0
  %436 = vmatprep.subr.mxu0 0.0
  %437 = vmatpush1.msra.mxu0 0.0
  %438 = vmatprep.subr.mxu0 0.0
  %439 = vmatpush1.msra.mxu0 0.0
  %440 = vmatprep.subr.mxu0 0.0
  %441 = vmatpush1.msra.mxu0 0.0
  %442 = vmatprep.subr.mxu0 0.0
  %443 = vmatpush1.msra.mxu0 0.0
  %444 = vmatprep.subr.mxu0 0.0
  %445 = vmatpush1.msra.mxu0 0.0
  %446 = vmatprep.mubr.f32.mxu0 0.0
  %447 = vmatmul.mubr.f32.gmra.mrb[0].mxu0 %v377
  %v448 = vpop.f32.mrb[0].mxu0
  %v449 = vadd.f32 0.0, %v448
  %v450 = vpop.f32.mrb[0].mxu0
  %451 = vmatprep.mubr.f32.mxu0 0.0
  %452 = vmatmul.mubr.f32.gmra.mrb[0].mxu0 %v380
  %v453 = vpop.f32.mrb[0].mxu0
  %v454 = vadd.f32 0.0, %v453
  %v455 = vpop.f32.mrb[0].mxu0
  %456 = vdwg.mxu0
  %457 = vrot.lane.b32.xlu0 %v62, 96
  %v458 = vpop.permute.xlu0 %457
  %459 = vrot.lane.b32.xlu0 %v63, 96
  %v460 = vpop.permute.xlu0 %459
  %461 = vrot.lane.b32.xlu0 %v50, 96
  %v462 = vpop.permute.xlu0 %461
  %463 = vrot.lane.b32.xlu0 %v51, 96
  %v464 = vpop.permute.xlu0 %463
  %v465 = vsel %vm64, %v458, 0
  %v467 = vsel %vm64, %v460, 0
  %v469 = vsel %vm64, %v462, 0
  %v471 = vsel %vm64, %v464, 0
  %473 = vmatprep.subr.mxu0 0.0
  %474 = vmatpush1.xpose.msra.mxu0 %v469
  %475 = vmatprep.subr.mxu0 0.0
  %476 = vmatpush1.xpose.msra.mxu0 %v471
  %477 = vmatprep.subr.mxu0 0.0
  %478 = vmatpush1.xpose.msra.mxu0 0.0
  %479 = vmatprep.subr.mxu0 0.0
  %480 = vmatpush1.xpose.msra.mxu0 0.0
  %481 = vmatprep.subr.mxu0 0.0
  %482 = vmatpush1.xpose.msra.mxu0 0.0
  %483 = vmatprep.subr.mxu0 0.0
  %484 = vmatpush1.xpose.msra.mxu0 0.0
  %485 = vmatprep.subr.mxu0 0.0
  %486 = vmatpush1.xpose.msra.mxu0 0.0
  %487 = vmatprep.subr.mxu0 0.0
  %488 = vmatpush1.xpose.msra.mxu0 0.0
  %489 = vmatprep.subr.mxu0 0.0
  %490 = vmatpush1.xpose.msra.mxu0 0.0
  %491 = vmatprep.subr.mxu0 0.0
  %492 = vmatpush1.xpose.msra.mxu0 0.0
  %493 = vmatprep.subr.mxu0 0.0
  %494 = vmatpush1.xpose.msra.mxu0 0.0
  %495 = vmatprep.subr.mxu0 0.0
  %496 = vmatpush1.xpose.msra.mxu0 0.0
  %497 = vmatprep.subr.mxu0 0.0
  %498 = vmatpush1.xpose.msra.mxu0 0.0
  %499 = vmatprep.subr.mxu0 0.0
  %500 = vmatpush1.xpose.msra.mxu0 0.0
  %501 = vmatprep.subr.mxu0 0.0
  %502 = vmatpush1.xpose.msra.mxu0 0.0
  %503 = vmatprep.subr.mxu0 0.0
  %504 = vmatpush1.xpose.msra.mxu0 0.0
  %505 = vmatprep.subr.mxu0 0.0
  %506 = vmatpush1.xpose.msra.mxu0 0.0
  %507 = vmatprep.subr.mxu0 0.0
  %508 = vmatpush1.xpose.msra.mxu0 0.0
  %509 = vmatprep.subr.mxu0 0.0
  %510 = vmatpush1.xpose.msra.mxu0 0.0
  %511 = vmatprep.subr.mxu0 0.0
  %512 = vmatpush1.xpose.msra.mxu0 0.0
  %513 = vmatprep.subr.mxu0 0.0
  %514 = vmatpush1.xpose.msra.mxu0 0.0
  %515 = vmatprep.subr.mxu0 0.0
  %516 = vmatpush1.xpose.msra.mxu0 0.0
  %517 = vmatprep.subr.mxu0 0.0
  %518 = vmatpush1.xpose.msra.mxu0 0.0
  %519 = vmatprep.subr.mxu0 0.0
  %520 = vmatpush1.xpose.msra.mxu0 0.0
  %521 = vmatprep.subr.mxu0 0.0
  %522 = vmatpush1.xpose.msra.mxu0 0.0
  %523 = vmatprep.subr.mxu0 0.0
  %524 = vmatpush1.xpose.msra.mxu0 0.0
  %525 = vmatprep.subr.mxu0 0.0
  %526 = vmatpush1.xpose.msra.mxu0 0.0
  %527 = vmatprep.subr.mxu0 0.0
  %528 = vmatpush1.xpose.msra.mxu0 0.0
  %529 = vmatprep.subr.mxu0 0.0
  %530 = vmatpush1.xpose.msra.mxu0 0.0
  %531 = vmatprep.subr.mxu0 0.0
  %532 = vmatpush1.xpose.msra.mxu0 0.0
  %533 = vmatprep.subr.mxu0 0.0
  %534 = vmatpush1.xpose.msra.mxu0 0.0
  %535 = vmatprep.subr.mxu0 0.0
  %536 = vmatpush1.xpose.msra.mxu0 0.0
  %537 = vmatprep.mubr.f32.mxu0 0.0
  %538 = vmatmul.mubr.f32.gmra.mrb[0].mxu0 %v465
  %v539 = vpop.f32.mrb[0].mxu0
  %v540 = vadd.f32 0.0, %v539
  %v541 = vpop.f32.mrb[0].mxu0
  %542 = vmatprep.mubr.f32.mxu0 0.0
  %543 = vmatmul.mubr.f32.gmra.mrb[0].mxu0 %v467
  %v544 = vpop.f32.mrb[0].mxu0
  %v545 = vadd.f32 0.0, %v544
  %v546 = vpop.f32.mrb[0].mxu0
  %547 = vdwg.mxu0
  %v548 = vsel %vm64, %v540, -inf
  %549 = vmax.xlane.f32.xlu0 %v548
  %v550 = vpop.xlane.xlu0 %549
  %v551 = vsel %vm64, %v545, -inf
  %552 = vmax.xlane.f32.xlu0 %v551
  %v553 = vpop.xlane.xlu0 %552
  %v554 = vsub.f32 %v540, %v550
  %v555 = vsub.f32 %v545, %v553
  %v556 = vmul.f32 %v554, 1.442695
  %v557 = vpow.pop %v556
  %v558 = vmul.f32 %v555, 1.442695
  %v559 = vpow.pop %v558
  %v560 = vsel %vm64, %v557, 0.0
  %561 = vadd.xlane.f32.xlu0 %v560
  %v562 = vpop.xlane.xlu0 %561
  %v563 = vsel %vm64, %v559, 0.0
  %564 = vadd.xlane.f32.xlu0 %v563
  %v565 = vpop.xlane.xlu0 %564
  %v566 = vrcp.pop %v562
  %v567 = vrcp.pop %v565
  %v568 = vmul.f32 %v557, %v566
  %v569 = vmul.f32 %v559, %v567
  %570 = vrot.lane.b32.xlu0 %v60, 96
  %v571 = vpop.permute.xlu0 %570
  %572 = vrot.lane.b32.xlu0 %v61, 96
  %v573 = vpop.permute.xlu0 %572
  %v577 = vsel %vm64, %v568, 0
  %v580 = vsel %vm64, %v569, 0
  %582 = vmatprep.subr.mxu0 0.0
  %583 = vmatpush1.msra.mxu0 %v571
  %584 = vmatprep.subr.mxu0 0.0
  %585 = vmatpush1.msra.mxu0 %v573
  %586 = vmatprep.subr.mxu0 0.0
  %587 = vmatpush1.msra.mxu0 0.0
  %588 = vmatprep.subr.mxu0 0.0
  %589 = vmatpush1.msra.mxu0 0.0
  %590 = vmatprep.subr.mxu0 0.0
  %591 = vmatpush1.msra.mxu0 0.0
  %592 = vmatprep.subr.mxu0 0.0
  %593 = vmatpush1.msra.mxu0 0.0
  %594 = vmatprep.subr.mxu0 0.0
  %595 = vmatpush1.msra.mxu0 0.0
  %596 = vmatprep.subr.mxu0 0.0
  %597 = vmatpush1.msra.mxu0 0.0
  %598 = vmatprep.subr.mxu0 0.0
  %599 = vmatpush1.msra.mxu0 0.0
  %600 = vmatprep.subr.mxu0 0.0
  %601 = vmatpush1.msra.mxu0 0.0
  %602 = vmatprep.subr.mxu0 0.0
  %603 = vmatpush1.msra.mxu0 0.0
  %604 = vmatprep.subr.mxu0 0.0
  %605 = vmatpush1.msra.mxu0 0.0
  %606 = vmatprep.subr.mxu0 0.0
  %607 = vmatpush1.msra.mxu0 0.0
  %608 = vmatprep.subr.mxu0 0.0
  %609 = vmatpush1.msra.mxu0 0.0
  %610 = vmatprep.subr.mxu0 0.0
  %611 = vmatpush1.msra.mxu0 0.0
  %612 = vmatprep.subr.mxu0 0.0
  %613 = vmatpush1.msra.mxu0 0.0
  %614 = vmatprep.subr.mxu0 0.0
  %615 = vmatpush1.msra.mxu0 0.0
  %616 = vmatprep.subr.mxu0 0.0
  %617 = vmatpush1.msra.mxu0 0.0
  %618 = vmatprep.subr.mxu0 0.0
  %619 = vmatpush1.msra.mxu0 0.0
  %620 = vmatprep.subr.mxu0 0.0
  %621 = vmatpush1.msra.mxu0 0.0
  %622 = vmatprep.subr.mxu0 0.0
  %623 = vmatpush1.msra.mxu0 0.0
  %624 = vmatprep.subr.mxu0 0.0
  %625 = vmatpush1.msra.mxu0 0.0
  %626 = vmatprep.subr.mxu0 0.0
  %627 = vmatpush1.msra.mxu0 0.0
  %628 = vmatprep.subr.mxu0 0.0
  %629 = vmatpush1.msra.mxu0 0.0
  %630 = vmatprep.subr.mxu0 0.0
  %631 = vmatpush1.msra.mxu0 0.0
  %632 = vmatprep.subr.mxu0 0.0
  %633 = vmatpush1.msra.mxu0 0.0
  %634 = vmatprep.subr.mxu0 0.0
  %635 = vmatpush1.msra.mxu0 0.0
  %636 = vmatprep.subr.mxu0 0.0
  %637 = vmatpush1.msra.mxu0 0.0
  %638 = vmatprep.subr.mxu0 0.0
  %639 = vmatpush1.msra.mxu0 0.0
  %640 = vmatprep.subr.mxu0 0.0
  %641 = vmatpush1.msra.mxu0 0.0
  %642 = vmatprep.subr.mxu0 0.0
  %643 = vmatpush1.msra.mxu0 0.0
  %644 = vmatprep.subr.mxu0 0.0
  %645 = vmatpush1.msra.mxu0 0.0
  %646 = vmatprep.mubr.f32.mxu0 0.0
  %647 = vmatmul.mubr.f32.gmra.mrb[0].mxu0 %v577
  %v648 = vpop.f32.mrb[0].mxu0
  %v649 = vadd.f32 0.0, %v648
  %v650 = vpop.f32.mrb[0].mxu0
  %651 = vmatprep.mubr.f32.mxu0 0.0
  %652 = vmatmul.mubr.f32.gmra.mrb[0].mxu0 %v580
  %v653 = vpop.f32.mrb[0].mxu0
  %v654 = vadd.f32 0.0, %v653
  %v655 = vpop.f32.mrb[0].mxu0
  %656 = vdwg.mxu0
  %657 = vrot.lane.b32.xlu0 %v62, 80
  %v658 = vpop.permute.xlu0 %657
  %659 = vrot.lane.b32.xlu0 %v63, 80
  %v660 = vpop.permute.xlu0 %659
  %661 = vrot.lane.b32.xlu0 %v50, 80
  %v662 = vpop.permute.xlu0 %661
  %663 = vrot.lane.b32.xlu0 %v51, 80
  %v664 = vpop.permute.xlu0 %663
  %v665 = vsel %vm64, %v658, 0
  %v667 = vsel %vm64, %v660, 0
  %v669 = vsel %vm64, %v662, 0
  %v671 = vsel %vm64, %v664, 0
  %673 = vmatprep.subr.mxu0 0.0
  %674 = vmatpush1.xpose.msra.mxu0 %v669
  %675 = vmatprep.subr.mxu0 0.0
  %676 = vmatpush1.xpose.msra.mxu0 %v671
  %677 = vmatprep.subr.mxu0 0.0
  %678 = vmatpush1.xpose.msra.mxu0 0.0
  %679 = vmatprep.subr.mxu0 0.0
  %680 = vmatpush1.xpose.msra.mxu0 0.0
  %681 = vmatprep.subr.mxu0 0.0
  %682 = vmatpush1.xpose.msra.mxu0 0.0
  %683 = vmatprep.subr.mxu0 0.0
  %684 = vmatpush1.xpose.msra.mxu0 0.0
  %685 = vmatprep.subr.mxu0 0.0
  %686 = vmatpush1.xpose.msra.mxu0 0.0
  %687 = vmatprep.subr.mxu0 0.0
  %688 = vmatpush1.xpose.msra.mxu0 0.0
  %689 = vmatprep.subr.mxu0 0.0
  %690 = vmatpush1.xpose.msra.mxu0 0.0
  %691 = vmatprep.subr.mxu0 0.0
  %692 = vmatpush1.xpose.msra.mxu0 0.0
  %693 = vmatprep.subr.mxu0 0.0
  %694 = vmatpush1.xpose.msra.mxu0 0.0
  %695 = vmatprep.subr.mxu0 0.0
  %696 = vmatpush1.xpose.msra.mxu0 0.0
  %697 = vmatprep.subr.mxu0 0.0
  %698 = vmatpush1.xpose.msra.mxu0 0.0
  %699 = vmatprep.subr.mxu0 0.0
  %700 = vmatpush1.xpose.msra.mxu0 0.0
  %701 = vmatprep.subr.mxu0 0.0
  %702 = vmatpush1.xpose.msra.mxu0 0.0
  %703 = vmatprep.subr.mxu0 0.0
  %704 = vmatpush1.xpose.msra.mxu0 0.0
  %705 = vmatprep.subr.mxu0 0.0
  %706 = vmatpush1.xpose.msra.mxu0 0.0
  %707 = vmatprep.subr.mxu0 0.0
  %708 = vmatpush1.xpose.msra.mxu0 0.0
  %709 = vmatprep.subr.mxu0 0.0
  %710 = vmatpush1.xpose.msra.mxu0 0.0
  %711 = vmatprep.subr.mxu0 0.0
  %712 = vmatpush1.xpose.msra.mxu0 0.0
  %713 = vmatprep.subr.mxu0 0.0
  %714 = vmatpush1.xpose.msra.mxu0 0.0
  %715 = vmatprep.subr.mxu0 0.0
  %716 = vmatpush1.xpose.msra.mxu0 0.0
  %717 = vmatprep.subr.mxu0 0.0
  %718 = vmatpush1.xpose.msra.mxu0 0.0
  %719 = vmatprep.subr.mxu0 0.0
  %720 = vmatpush1.xpose.msra.mxu0 0.0
  %721 = vmatprep.subr.mxu0 0.0
  %722 = vmatpush1.xpose.msra.mxu0 0.0
  %723 = vmatprep.subr.mxu0 0.0
  %724 = vmatpush1.xpose.msra.mxu0 0.0
  %725 = vmatprep.subr.mxu0 0.0
  %726 = vmatpush1.xpose.msra.mxu0 0.0
  %727 = vmatprep.subr.mxu0 0.0
  %728 = vmatpush1.xpose.msra.mxu0 0.0
  %729 = vmatprep.subr.mxu0 0.0
  %730 = vmatpush1.xpose.msra.mxu0 0.0
  %731 = vmatprep.subr.mxu0 0.0
  %732 = vmatpush1.xpose.msra.mxu0 0.0
  %733 = vmatprep.subr.mxu0 0.0
  %734 = vmatpush1.xpose.msra.mxu0 0.0
  %735 = vmatprep.subr.mxu0 0.0
  %736 = vmatpush1.xpose.msra.mxu0 0.0
  %737 = vmatprep.mubr.f32.mxu0 0.0
  %738 = vmatmul.mubr.f32.gmra.mrb[0].mxu0 %v665
  %v739 = vpop.f32.mrb[0].mxu0
  %v740 = vadd.f32 0.0, %v739
  %v741 = vpop.f32.mrb[0].mxu0
  %742 = vmatprep.mubr.f32.mxu0 0.0
  %743 = vmatmul.mubr.f32.gmra.mrb[0].mxu0 %v667
  %v744 = vpop.f32.mrb[0].mxu0
  %v745 = vadd.f32 0.0, %v744
  %v746 = vpop.f32.mrb[0].mxu0
  %747 = vdwg.mxu0
  %v748 = vsel %vm64, %v740, -inf
  %749 = vmax.xlane.f32.xlu0 %v748
  %v750 = vpop.xlane.xlu0 %749
  %v751 = vsel %vm64, %v745, -inf
  %752 = vmax.xlane.f32.xlu0 %v751
  %v753 = vpop.xlane.xlu0 %752
  %v754 = vsub.f32 %v740, %v750
  %v755 = vsub.f32 %v745, %v753
  %v756 = vmul.f32 %v754, 1.442695
  %v757 = vpow.pop %v756
  %v758 = vmul.f32 %v755, 1.442695
  %v759 = vpow.pop %v758
  %v760 = vsel %vm64, %v757, 0.0
  %761 = vadd.xlane.f32.xlu0 %v760
  %v762 = vpop.xlane.xlu0 %761
  %v763 = vsel %vm64, %v759, 0.0
  %764 = vadd.xlane.f32.xlu0 %v763
  %v765 = vpop.xlane.xlu0 %764
  %v766 = vrcp.pop %v762
  %v767 = vrcp.pop %v765
  %v768 = vmul.f32 %v757, %v766
  %v769 = vmul.f32 %v759, %v767
  %770 = vrot.lane.b32.xlu0 %v60, 80
  %v771 = vpop.permute.xlu0 %770
  %772 = vrot.lane.b32.xlu0 %v61, 80
  %v773 = vpop.permute.xlu0 %772
  %v777 = vsel %vm64, %v768, 0
  %v780 = vsel %vm64, %v769, 0
  %782 = vmatprep.subr.mxu0 0.0
  %783 = vmatpush1.msra.mxu0 %v771
  %784 = vmatprep.subr.mxu0 0.0
  %785 = vmatpush1.msra.mxu0 %v773
  %786 = vmatprep.subr.mxu0 0.0
  %787 = vmatpush1.msra.mxu0 0.0
  %788 = vmatprep.subr.mxu0 0.0
  %789 = vmatpush1.msra.mxu0 0.0
  %790 = vmatprep.subr.mxu0 0.0
  %791 = vmatpush1.msra.mxu0 0.0
  %792 = vmatprep.subr.mxu0 0.0
  %793 = vmatpush1.msra.mxu0 0.0
  %794 = vmatprep.subr.mxu0 0.0
  %795 = vmatpush1.msra.mxu0 0.0
  %796 = vmatprep.subr.mxu0 0.0
  %797 = vmatpush1.msra.mxu0 0.0
  %798 = vmatprep.subr.mxu0 0.0
  %799 = vmatpush1.msra.mxu0 0.0
  %800 = vmatprep.subr.mxu0 0.0
  %801 = vmatpush1.msra.mxu0 0.0
  %802 = vmatprep.subr.mxu0 0.0
  %803 = vmatpush1.msra.mxu0 0.0
  %804 = vmatprep.subr.mxu0 0.0
  %805 = vmatpush1.msra.mxu0 0.0
  %806 = vmatprep.subr.mxu0 0.0
  %807 = vmatpush1.msra.mxu0 0.0
  %808 = vmatprep.subr.mxu0 0.0
  %809 = vmatpush1.msra.mxu0 0.0
  %810 = vmatprep.subr.mxu0 0.0
  %811 = vmatpush1.msra.mxu0 0.0
  %812 = vmatprep.subr.mxu0 0.0
  %813 = vmatpush1.msra.mxu0 0.0
  %814 = vmatprep.subr.mxu0 0.0
  %815 = vmatpush1.msra.mxu0 0.0
  %816 = vmatprep.subr.mxu0 0.0
  %817 = vmatpush1.msra.mxu0 0.0
  %818 = vmatprep.subr.mxu0 0.0
  %819 = vmatpush1.msra.mxu0 0.0
  %820 = vmatprep.subr.mxu0 0.0
  %821 = vmatpush1.msra.mxu0 0.0
  %822 = vmatprep.subr.mxu0 0.0
  %823 = vmatpush1.msra.mxu0 0.0
  %824 = vmatprep.subr.mxu0 0.0
  %825 = vmatpush1.msra.mxu0 0.0
  %826 = vmatprep.subr.mxu0 0.0
  %827 = vmatpush1.msra.mxu0 0.0
  %828 = vmatprep.subr.mxu0 0.0
  %829 = vmatpush1.msra.mxu0 0.0
  %830 = vmatprep.subr.mxu0 0.0
  %831 = vmatpush1.msra.mxu0 0.0
  %832 = vmatprep.subr.mxu0 0.0
  %833 = vmatpush1.msra.mxu0 0.0
  %834 = vmatprep.subr.mxu0 0.0
  %835 = vmatpush1.msra.mxu0 0.0
  %836 = vmatprep.subr.mxu0 0.0
  %837 = vmatpush1.msra.mxu0 0.0
  %838 = vmatprep.subr.mxu0 0.0
  %839 = vmatpush1.msra.mxu0 0.0
  %840 = vmatprep.subr.mxu0 0.0
  %841 = vmatpush1.msra.mxu0 0.0
  %842 = vmatprep.subr.mxu0 0.0
  %843 = vmatpush1.msra.mxu0 0.0
  %844 = vmatprep.subr.mxu0 0.0
  %845 = vmatpush1.msra.mxu0 0.0
  %846 = vmatprep.mubr.f32.mxu0 0.0
  %847 = vmatmul.mubr.f32.gmra.mrb[0].mxu0 %v777
  %v848 = vpop.f32.mrb[0].mxu0
  %v849 = vadd.f32 0.0, %v848
  %v850 = vpop.f32.mrb[0].mxu0
  %851 = vmatprep.mubr.f32.mxu0 0.0
  %852 = vmatmul.mubr.f32.gmra.mrb[0].mxu0 %v780
  %v853 = vpop.f32.mrb[0].mxu0
  %v854 = vadd.f32 0.0, %v853
  %v855 = vpop.f32.mrb[0].mxu0
  %856 = vdwg.mxu0
  %859 = vrot.lane.b32.xlu0 %v449, 16
  %v860 = vpop.permute.xlu0 %859
  %861 = vrot.lane.b32.xlu0 %v454, 16
  %v862 = vpop.permute.xlu0 %861
  %867 = vrot.lane.b32.xlu0 %v649, 32
  %v868 = vpop.permute.xlu0 %867
  %869 = vrot.lane.b32.xlu0 %v654, 32
  %v870 = vpop.permute.xlu0 %869
  %875 = vrot.lane.b32.xlu0 %v849, 48
  %v876 = vpop.permute.xlu0 %875
  %877 = vrot.lane.b32.xlu0 %v854, 48
  %v878 = vpop.permute.xlu0 %877
  %v881 = vsel %vm64, %v247, %v860
  %v882 = vsel %vm64, %v252, %v862
  %vm883 = vcmask 261120
  %v884 = vsel %vm883, %v881, %v868
  %v885 = vsel %vm883, %v882, %v870
  %vm886 = vcmask 392192
  %v887 = vsel %vm886, %v884, %v876
  %v888 = vsel %vm886, %v885, %v878
  %v889 = vsub.f32 %v60, %v887
  %v890 = vsub.f32 %v61, %v888
  %v891 = vlaneseq
  %v892 = vshrl.u32 %v891, 7
  %v893 = vsub.s32 0, %v892
  %v894 = vrot.slane %v30, %v893
  %v895 = vadd.f32 %v55, %v894
  %v896 = vadd.f32 %v56, %v894
  %vm897 = vcmask 523264
  %v899 = vsel %vm897, %v889, 0
  %v902 = vsel %vm897, %v890, 0
  %904 = vmatprep.subr.mxu0 0.0
  %905 = vmatpush1.msra.mxu0 %v22
  %906 = vmatprep.subr.mxu0 0.0
  %907 = vmatpush1.msra.mxu0 %v23
  %908 = vmatprep.subr.mxu0 0.0
  %909 = vmatpush1.msra.mxu0 %v24
  %910 = vmatprep.subr.mxu0 0.0
  %911 = vmatpush1.msra.mxu0 %v25
  %912 = vmatprep.subr.mxu0 0.0
  %913 = vmatpush1.msra.mxu0 %v26
  %914 = vmatprep.subr.mxu0 0.0
  %915 = vmatpush1.msra.mxu0 %v27
  %916 = vmatprep.subr.mxu0 0.0
  %917 = vmatpush1.msra.mxu0 %v28
  %918 = vmatprep.subr.mxu0 0.0
  %919 = vmatpush1.msra.mxu0 %v29
  %920 = vmatprep.subr.mxu0 0.0
  %921 = vmatpush1.msra.mxu0 0.0
  %922 = vmatprep.subr.mxu0 0.0
  %923 = vmatpush1.msra.mxu0 0.0
  %924 = vmatprep.subr.mxu0 0.0
  %925 = vmatpush1.msra.mxu0 0.0
  %926 = vmatprep.subr.mxu0 0.0
  %927 = vmatpush1.msra.mxu0 0.0
  %928 = vmatprep.subr.mxu0 0.0
  %929 = vmatpush1.msra.mxu0 0.0
  %930 = vmatprep.subr.mxu0 0.0
  %931 = vmatpush1.msra.mxu0 0.0
  %932 = vmatprep.subr.mxu0 0.0
  %933 = vmatpush1.msra.mxu0 0.0
  %934 = vmatprep.subr.mxu0 0.0
  %935 = vmatpush1.msra.mxu0 0.0
  %936 = vmatprep.subr.mxu0 0.0
  %937 = vmatpush1.msra.mxu0 0.0
  %938 = vmatprep.subr.mxu0 0.0
  %939 = vmatpush1.msra.mxu0 0.0
  %940 = vmatprep.subr.mxu0 0.0
  %941 = vmatpush1.msra.mxu0 0.0
  %942 = vmatprep.subr.mxu0 0.0
  %943 = vmatpush1.msra.mxu0 0.0
  %944 = vmatprep.subr.mxu0 0.0
  %945 = vmatpush1.msra.mxu0 0.0
  %946 = vmatprep.subr.mxu0 0.0
  %947 = vmatpush1.msra.mxu0 0.0
  %948 = vmatprep.subr.mxu0 0.0
  %949 = vmatpush1.msra.mxu0 0.0
  %950 = vmatprep.subr.mxu0 0.0
  %951 = vmatpush1.msra.mxu0 0.0
  %952 = vmatprep.subr.mxu0 0.0
  %953 = vmatpush1.msra.mxu0 0.0
  %954 = vmatprep.subr.mxu0 0.0
  %955 = vmatpush1.msra.mxu0 0.0
  %956 = vmatprep.subr.mxu0 0.0
  %957 = vmatpush1.msra.mxu0 0.0
  %958 = vmatprep.subr.mxu0 0.0
  %959 = vmatpush1.msra.mxu0 0.0
  %960 = vmatprep.subr.mxu0 0.0
  %961 = vmatpush1.msra.mxu0 0.0
  %962 = vmatprep.subr.mxu0 0.0
  %963 = vmatpush1.msra.mxu0 0.0
  %964 = vmatprep.subr.mxu0 0.0
  %965 = vmatpush1.msra.mxu0 0.0
  %966 = vmatprep.subr.mxu0 0.0
  %967 = vmatpush1.msra.mxu0 0.0
  %968 = vmatprep.mubr.f32.mxu0 0.0
  %969 = vmatmul.mubr.f32.gmra.mrb[0].mxu0 %v899
  %v970 = vpop.f32.mrb[0].mxu0
  %v971 = vadd.f32 %v895, %v970
  %v972 = vpop.f32.mrb[0].mxu0
  %973 = vmatprep.mubr.f32.mxu0 0.0
  %974 = vmatmul.mubr.f32.gmra.mrb[0].mxu0 %v902
  %v975 = vpop.f32.mrb[0].mxu0
  %v976 = vadd.f32 %v896, %v975
  %v977 = vpop.f32.mrb[0].mxu0
  %978 = vdwg.mxu0
  %v980 = vsel %vm64, %v971, 0
  %v983 = vsel %vm64, %v976, 0
  %985 = vmatprep.subr.mxu0 %v32
  %986 = vmatpush1.msra.mxu0 %v31
  %987 = vmatprep.subr.mxu0 %v34
  %988 = vmatpush1.msra.mxu0 %v33
  %989 = vmatprep.subr.mxu0 0.0
  %990 = vmatpush1.msra.mxu0 0.0
  %991 = vmatprep.subr.mxu0 0.0
  %992 = vmatpush1.msra.mxu0 0.0
  %993 = vmatprep.subr.mxu0 0.0
  %994 = vmatpush1.msra.mxu0 0.0
  %995 = vmatprep.subr.mxu0 0.0
  %996 = vmatpush1.msra.mxu0 0.0
  %997 = vmatprep.subr.mxu0 0.0
  %998 = vmatpush1.msra.mxu0 0.0
  %999 = vmatprep.subr.mxu0 0.0
  %1000 = vmatpush1.msra.mxu0 0.0
  %1001 = vmatprep.subr.mxu0 0.0
  %1002 = vmatpush1.msra.mxu0 0.0
  %1003 = vmatprep.subr.mxu0 0.0
  %1004 = vmatpush1.msra.mxu0 0.0
  %1005 = vmatprep.subr.mxu0 0.0
  %1006 = vmatpush1.msra.mxu0 0.0
  %1007 = vmatprep.subr.mxu0 0.0
  %1008 = vmatpush1.msra.mxu0 0.0
  %1009 = vmatprep.subr.mxu0 0.0
  %1010 = vmatpush1.msra.mxu0 0.0
  %1011 = vmatprep.subr.mxu0 0.0
  %1012 = vmatpush1.msra.mxu0 0.0
  %1013 = vmatprep.subr.mxu0 0.0
  %1014 = vmatpush1.msra.mxu0 0.0
  %1015 = vmatprep.subr.mxu0 0.0
  %1016 = vmatpush1.msra.mxu0 0.0
  %1017 = vmatprep.subr.mxu0 0.0
  %1018 = vmatpush1.msra.mxu0 0.0
  %1019 = vmatprep.subr.mxu0 0.0
  %1020 = vmatpush1.msra.mxu0 0.0
  %1021 = vmatprep.subr.mxu0 0.0
  %1022 = vmatpush1.msra.mxu0 0.0
  %1023 = vmatprep.subr.mxu0 0.0
  %1024 = vmatpush1.msra.mxu0 0.0
  %1025 = vmatprep.subr.mxu0 0.0
  %1026 = vmatpush1.msra.mxu0 0.0
  %1027 = vmatprep.subr.mxu0 0.0
  %1028 = vmatpush1.msra.mxu0 0.0
  %1029 = vmatprep.subr.mxu0 0.0
  %1030 = vmatpush1.msra.mxu0 0.0
  %1031 = vmatprep.subr.mxu0 0.0
  %1032 = vmatpush1.msra.mxu0 0.0
  %1033 = vmatprep.subr.mxu0 0.0
  %1034 = vmatpush1.msra.mxu0 0.0
  %1035 = vmatprep.subr.mxu0 0.0
  %1036 = vmatpush1.msra.mxu0 0.0
  %1037 = vmatprep.subr.mxu0 0.0
  %1038 = vmatpush1.msra.mxu0 0.0
  %1039 = vmatprep.subr.mxu0 0.0
  %1040 = vmatpush1.msra.mxu0 0.0
  %1041 = vmatprep.subr.mxu0 0.0
  %1042 = vmatpush1.msra.mxu0 0.0
  %1043 = vmatprep.subr.mxu0 0.0
  %1044 = vmatpush1.msra.mxu0 0.0
  %1045 = vmatprep.subr.mxu0 0.0
  %1046 = vmatpush1.msra.mxu0 0.0
  %1047 = vmatprep.subr.mxu0 0.0
  %1048 = vmatpush1.msra.mxu0 0.0
  %1049 = vmatprep.mubr.f32.mxu0 0.0
  %1050 = vmatmul.mubr.f32.gmra.mrb[0].mxu0 %v980
  %v1051 = vpop.f32.mrb[0].mxu0
  %v1052 = vadd.f32 0.0, %v1051
  %v1053 = vpop.f32.mrb[0].mxu0
  %v1054 = vadd.f32 0.0, %v1053
  %1055 = vmatprep.mubr.f32.mxu0 0.0
  %1056 = vmatmul.mubr.f32.gmra.mrb[0].mxu0 %v983
  %v1057 = vpop.f32.mrb[0].mxu0
  %v1058 = vadd.f32 0.0, %v1057
  %v1059 = vpop.f32.mrb[0].mxu0
  %v1060 = vadd.f32 0.0, %v1059
  %1061 = vdwg.mxu0
  %v1062 = vmul.f32 %v35, %v1052
  %v1063 = vmul.f32 %v36, %v1054
  %v1064 = vmul.f32 %v37, %v1058
  %v1065 = vmul.f32 %v38, %v1060
  %v1066 = vadd.f32 %v1062, %v1064
  %v1067 = vrot.slane %v1066, 4
  %v1068 = vadd.f32 %v1066, %v1067
  %v1069 = vrot.slane %v1068, 2
  %v1070 = vadd.f32 %v1068, %v1069
  %v1071 = vrot.slane %v1070, 1
  %v1072 = vadd.f32 %v1070, %v1071
  %v1073 = vadd.f32 %v1063, %v1065
  %v1074 = vrot.slane %v1073, 4
  %v1075 = vadd.f32 %v1073, %v1074
  %v1076 = vrot.slane %v1075, 2
  %v1077 = vadd.f32 %v1075, %v1076
  %v1078 = vrot.slane %v1077, 1
  %v1079 = vadd.f32 %v1077, %v1078
  %1080 = vrot.lane.b32.xlu0 %v971, 112
  %v1081 = vpop.permute.xlu0 %1080
  %1082 = vrot.lane.b32.xlu0 %v976, 112
  %v1083 = vpop.permute.xlu0 %1082
  %v1084 = vsel %vm64, %v1081, 0
  %v1086 = vsel %vm64, %v1083, 0
  %1088 = vmatprep.subr.mxu0 %v32
  %1089 = vmatpush1.msra.mxu0 %v31
  %1090 = vmatprep.subr.mxu0 %v34
  %1091 = vmatpush1.msra.mxu0 %v33
  %1092 = vmatprep.subr.mxu0 0.0
  %1093 = vmatpush1.msra.mxu0 0.0
  %1094 = vmatprep.subr.mxu0 0.0
  %1095 = vmatpush1.msra.mxu0 0.0
  %1096 = vmatprep.subr.mxu0 0.0
  %1097 = vmatpush1.msra.mxu0 0.0
  %1098 = vmatprep.subr.mxu0 0.0
  %1099 = vmatpush1.msra.mxu0 0.0
  %1100 = vmatprep.subr.mxu0 0.0
  %1101 = vmatpush1.msra.mxu0 0.0
  %1102 = vmatprep.subr.mxu0 0.0
  %1103 = vmatpush1.msra.mxu0 0.0
  %1104 = vmatprep.subr.mxu0 0.0
  %1105 = vmatpush1.msra.mxu0 0.0
  %1106 = vmatprep.subr.mxu0 0.0
  %1107 = vmatpush1.msra.mxu0 0.0
  %1108 = vmatprep.subr.mxu0 0.0
  %1109 = vmatpush1.msra.mxu0 0.0
  %1110 = vmatprep.subr.mxu0 0.0
  %1111 = vmatpush1.msra.mxu0 0.0
  %1112 = vmatprep.subr.mxu0 0.0
  %1113 = vmatpush1.msra.mxu0 0.0
  %1114 = vmatprep.subr.mxu0 0.0
  %1115 = vmatpush1.msra.mxu0 0.0
  %1116 = vmatprep.subr.mxu0 0.0
  %1117 = vmatpush1.msra.mxu0 0.0
  %1118 = vmatprep.subr.mxu0 0.0
  %1119 = vmatpush1.msra.mxu0 0.0
  %1120 = vmatprep.subr.mxu0 0.0
  %1121 = vmatpush1.msra.mxu0 0.0
  %1122 = vmatprep.subr.mxu0 0.0
  %1123 = vmatpush1.msra.mxu0 0.0
  %1124 = vmatprep.subr.mxu0 0.0
  %1125 = vmatpush1.msra.mxu0 0.0
  %1126 = vmatprep.subr.mxu0 0.0
  %1127 = vmatpush1.msra.mxu0 0.0
  %1128 = vmatprep.subr.mxu0 0.0
  %1129 = vmatpush1.msra.mxu0 0.0
  %1130 = vmatprep.subr.mxu0 0.0
  %1131 = vmatpush1.msra.mxu0 0.0
  %1132 = vmatprep.subr.mxu0 0.0
  %1133 = vmatpush1.msra.mxu0 0.0
  %1134 = vmatprep.subr.mxu0 0.0
  %1135 = vmatpush1.msra.mxu0 0.0
  %1136 = vmatprep.subr.mxu0 0.0
  %1137 = vmatpush1.msra.mxu0 0.0
  %1138 = vmatprep.subr.mxu0 0.0
  %1139 = vmatpush1.msra.mxu0 0.0
  %1140 = vmatprep.subr.mxu0 0.0
  %1141 = vmatpush1.msra.mxu0 0.0
  %1142 = vmatprep.subr.mxu0 0.0
  %1143 = vmatpush1.msra.mxu0 0.0
  %1144 = vmatprep.subr.mxu0 0.0
  %1145 = vmatpush1.msra.mxu0 0.0
  %1146 = vmatprep.subr.mxu0 0.0
  %1147 = vmatpush1.msra.mxu0 0.0
  %1148 = vmatprep.subr.mxu0 0.0
  %1149 = vmatpush1.msra.mxu0 0.0
  %1150 = vmatprep.subr.mxu0 0.0
  %1151 = vmatpush1.msra.mxu0 0.0
  %1152 = vmatprep.mubr.f32.mxu0 0.0
  %1153 = vmatmul.mubr.f32.gmra.mrb[0].mxu0 %v1084
  %v1154 = vpop.f32.mrb[0].mxu0
  %v1155 = vadd.f32 0.0, %v1154
  %v1156 = vpop.f32.mrb[0].mxu0
  %v1157 = vadd.f32 0.0, %v1156
  %1158 = vmatprep.mubr.f32.mxu0 0.0
  %1159 = vmatmul.mubr.f32.gmra.mrb[0].mxu0 %v1086
  %v1160 = vpop.f32.mrb[0].mxu0
  %v1161 = vadd.f32 0.0, %v1160
  %v1162 = vpop.f32.mrb[0].mxu0
  %v1163 = vadd.f32 0.0, %v1162
  %1164 = vdwg.mxu0
  %v1165 = vmul.f32 %v35, %v1155
  %v1166 = vmul.f32 %v36, %v1157
  %v1167 = vmul.f32 %v37, %v1161
  %v1168 = vmul.f32 %v38, %v1163
  %v1169 = vadd.f32 %v1165, %v1167
  %v1170 = vrot.slane %v1169, 4
  %v1171 = vadd.f32 %v1169, %v1170
  %v1172 = vrot.slane %v1171, 2
  %v1173 = vadd.f32 %v1171, %v1172
  %v1174 = vrot.slane %v1173, 1
  %v1175 = vadd.f32 %v1173, %v1174
  %v1176 = vadd.f32 %v1166, %v1168
  %v1177 = vrot.slane %v1176, 4
  %v1178 = vadd.f32 %v1176, %v1177
  %v1179 = vrot.slane %v1178, 2
  %v1180 = vadd.f32 %v1178, %v1179
  %v1181 = vrot.slane %v1180, 1
  %v1182 = vadd.f32 %v1180, %v1181
  %1183 = vrot.lane.b32.xlu0 %v971, 96
  %v1184 = vpop.permute.xlu0 %1183
  %1185 = vrot.lane.b32.xlu0 %v976, 96
  %v1186 = vpop.permute.xlu0 %1185
  %v1187 = vsel %vm64, %v1184, 0
  %v1189 = vsel %vm64, %v1186, 0
  %1191 = vmatprep.subr.mxu0 %v32
  %1192 = vmatpush1.msra.mxu0 %v31
  %1193 = vmatprep.subr.mxu0 %v34
  %1194 = vmatpush1.msra.mxu0 %v33
  %1195 = vmatprep.subr.mxu0 0.0
  %1196 = vmatpush1.msra.mxu0 0.0
  %1197 = vmatprep.subr.mxu0 0.0
  %1198 = vmatpush1.msra.mxu0 0.0
  %1199 = vmatprep.subr.mxu0 0.0
  %1200 = vmatpush1.msra.mxu0 0.0
  %1201 = vmatprep.subr.mxu0 0.0
  %1202 = vmatpush1.msra.mxu0 0.0
  %1203 = vmatprep.subr.mxu0 0.0
  %1204 = vmatpush1.msra.mxu0 0.0
  %1205 = vmatprep.subr.mxu0 0.0
  %1206 = vmatpush1.msra.mxu0 0.0
  %1207 = vmatprep.subr.mxu0 0.0
  %1208 = vmatpush1.msra.mxu0 0.0
  %1209 = vmatprep.subr.mxu0 0.0
  %1210 = vmatpush1.msra.mxu0 0.0
  %1211 = vmatprep.subr.mxu0 0.0
  %1212 = vmatpush1.msra.mxu0 0.0
  %1213 = vmatprep.subr.mxu0 0.0
  %1214 = vmatpush1.msra.mxu0 0.0
  %1215 = vmatprep.subr.mxu0 0.0
  %1216 = vmatpush1.msra.mxu0 0.0
  %1217 = vmatprep.subr.mxu0 0.0
  %1218 = vmatpush1.msra.mxu0 0.0
  %1219 = vmatprep.subr.mxu0 0.0
  %1220 = vmatpush1.msra.mxu0 0.0
  %1221 = vmatprep.subr.mxu0 0.0
  %1222 = vmatpush1.msra.mxu0 0.0
  %1223 = vmatprep.subr.mxu0 0.0
  %1224 = vmatpush1.msra.mxu0 0.0
  %1225 = vmatprep.subr.mxu0 0.0
  %1226 = vmatpush1.msra.mxu0 0.0
  %1227 = vmatprep.subr.mxu0 0.0
  %1228 = vmatpush1.msra.mxu0 0.0
  %1229 = vmatprep.subr.mxu0 0.0
  %1230 = vmatpush1.msra.mxu0 0.0
  %1231 = vmatprep.subr.mxu0 0.0
  %1232 = vmatpush1.msra.mxu0 0.0
  %1233 = vmatprep.subr.mxu0 0.0
  %1234 = vmatpush1.msra.mxu0 0.0
  %1235 = vmatprep.subr.mxu0 0.0
  %1236 = vmatpush1.msra.mxu0 0.0
  %1237 = vmatprep.subr.mxu0 0.0
  %1238 = vmatpush1.msra.mxu0 0.0
  %1239 = vmatprep.subr.mxu0 0.0
  %1240 = vmatpush1.msra.mxu0 0.0
  %1241 = vmatprep.subr.mxu0 0.0
  %1242 = vmatpush1.msra.mxu0 0.0
  %1243 = vmatprep.subr.mxu0 0.0
  %1244 = vmatpush1.msra.mxu0 0.0
  %1245 = vmatprep.subr.mxu0 0.0
  %1246 = vmatpush1.msra.mxu0 0.0
  %1247 = vmatprep.subr.mxu0 0.0
  %1248 = vmatpush1.msra.mxu0 0.0
  %1249 = vmatprep.subr.mxu0 0.0
  %1250 = vmatpush1.msra.mxu0 0.0
  %1251 = vmatprep.subr.mxu0 0.0
  %1252 = vmatpush1.msra.mxu0 0.0
  %1253 = vmatprep.subr.mxu0 0.0
  %1254 = vmatpush1.msra.mxu0 0.0
  %1255 = vmatprep.mubr.f32.mxu0 0.0
  %1256 = vmatmul.mubr.f32.gmra.mrb[0].mxu0 %v1187
  %v1257 = vpop.f32.mrb[0].mxu0
  %v1258 = vadd.f32 0.0, %v1257
  %v1259 = vpop.f32.mrb[0].mxu0
  %v1260 = vadd.f32 0.0, %v1259
  %1261 = vmatprep.mubr.f32.mxu0 0.0
  %1262 = vmatmul.mubr.f32.gmra.mrb[0].mxu0 %v1189
  %v1263 = vpop.f32.mrb[0].mxu0
  %v1264 = vadd.f32 0.0, %v1263
  %v1265 = vpop.f32.mrb[0].mxu0
  %v1266 = vadd.f32 0.0, %v1265
  %1267 = vdwg.mxu0
  %v1268 = vmul.f32 %v35, %v1258
  %v1269 = vmul.f32 %v36, %v1260
  %v1270 = vmul.f32 %v37, %v1264
  %v1271 = vmul.f32 %v38, %v1266
  %v1272 = vadd.f32 %v1268, %v1270
  %v1273 = vrot.slane %v1272, 4
  %v1274 = vadd.f32 %v1272, %v1273
  %v1275 = vrot.slane %v1274, 2
  %v1276 = vadd.f32 %v1274, %v1275
  %v1277 = vrot.slane %v1276, 1
  %v1278 = vadd.f32 %v1276, %v1277
  %v1279 = vadd.f32 %v1269, %v1271
  %v1280 = vrot.slane %v1279, 4
  %v1281 = vadd.f32 %v1279, %v1280
  %v1282 = vrot.slane %v1281, 2
  %v1283 = vadd.f32 %v1281, %v1282
  %v1284 = vrot.slane %v1283, 1
  %v1285 = vadd.f32 %v1283, %v1284
  %1286 = vrot.lane.b32.xlu0 %v971, 80
  %v1287 = vpop.permute.xlu0 %1286
  %1288 = vrot.lane.b32.xlu0 %v976, 80
  %v1289 = vpop.permute.xlu0 %1288
  %v1290 = vsel %vm64, %v1287, 0
  %v1292 = vsel %vm64, %v1289, 0
  %1294 = vmatprep.subr.mxu0 %v32
  %1295 = vmatpush1.msra.mxu0 %v31
  %1296 = vmatprep.subr.mxu0 %v34
  %1297 = vmatpush1.msra.mxu0 %v33
  %1298 = vmatprep.subr.mxu0 0.0
  %1299 = vmatpush1.msra.mxu0 0.0
  %1300 = vmatprep.subr.mxu0 0.0
  %1301 = vmatpush1.msra.mxu0 0.0
  %1302 = vmatprep.subr.mxu0 0.0
  %1303 = vmatpush1.msra.mxu0 0.0
  %1304 = vmatprep.subr.mxu0 0.0
  %1305 = vmatpush1.msra.mxu0 0.0
  %1306 = vmatprep.subr.mxu0 0.0
  %1307 = vmatpush1.msra.mxu0 0.0
  %1308 = vmatprep.subr.mxu0 0.0
  %1309 = vmatpush1.msra.mxu0 0.0
  %1310 = vmatprep.subr.mxu0 0.0
  %1311 = vmatpush1.msra.mxu0 0.0
  %1312 = vmatprep.subr.mxu0 0.0
  %1313 = vmatpush1.msra.mxu0 0.0
  %1314 = vmatprep.subr.mxu0 0.0
  %1315 = vmatpush1.msra.mxu0 0.0
  %1316 = vmatprep.subr.mxu0 0.0
  %1317 = vmatpush1.msra.mxu0 0.0
  %1318 = vmatprep.subr.mxu0 0.0
  %1319 = vmatpush1.msra.mxu0 0.0
  %1320 = vmatprep.subr.mxu0 0.0
  %1321 = vmatpush1.msra.mxu0 0.0
  %1322 = vmatprep.subr.mxu0 0.0
  %1323 = vmatpush1.msra.mxu0 0.0
  %1324 = vmatprep.subr.mxu0 0.0
  %1325 = vmatpush1.msra.mxu0 0.0
  %1326 = vmatprep.subr.mxu0 0.0
  %1327 = vmatpush1.msra.mxu0 0.0
  %1328 = vmatprep.subr.mxu0 0.0
  %1329 = vmatpush1.msra.mxu0 0.0
  %1330 = vmatprep.subr.mxu0 0.0
  %1331 = vmatpush1.msra.mxu0 0.0
  %1332 = vmatprep.subr.mxu0 0.0
  %1333 = vmatpush1.msra.mxu0 0.0
  %1334 = vmatprep.subr.mxu0 0.0
  %1335 = vmatpush1.msra.mxu0 0.0
  %1336 = vmatprep.subr.mxu0 0.0
  %1337 = vmatpush1.msra.mxu0 0.0
  %1338 = vmatprep.subr.mxu0 0.0
  %1339 = vmatpush1.msra.mxu0 0.0
  %1340 = vmatprep.subr.mxu0 0.0
  %1341 = vmatpush1.msra.mxu0 0.0
  %1342 = vmatprep.subr.mxu0 0.0
  %1343 = vmatpush1.msra.mxu0 0.0
  %1344 = vmatprep.subr.mxu0 0.0
  %1345 = vmatpush1.msra.mxu0 0.0
  %1346 = vmatprep.subr.mxu0 0.0
  %1347 = vmatpush1.msra.mxu0 0.0
  %1348 = vmatprep.subr.mxu0 0.0
  %1349 = vmatpush1.msra.mxu0 0.0
  %1350 = vmatprep.subr.mxu0 0.0
  %1351 = vmatpush1.msra.mxu0 0.0
  %1352 = vmatprep.subr.mxu0 0.0
  %1353 = vmatpush1.msra.mxu0 0.0
  %1354 = vmatprep.subr.mxu0 0.0
  %1355 = vmatpush1.msra.mxu0 0.0
  %1356 = vmatprep.subr.mxu0 0.0
  %1357 = vmatpush1.msra.mxu0 0.0
  %1358 = vmatprep.mubr.f32.mxu0 0.0
  %1359 = vmatmul.mubr.f32.gmra.mrb[0].mxu0 %v1290
  %v1360 = vpop.f32.mrb[0].mxu0
  %v1361 = vadd.f32 0.0, %v1360
  %v1362 = vpop.f32.mrb[0].mxu0
  %v1363 = vadd.f32 0.0, %v1362
  %1364 = vmatprep.mubr.f32.mxu0 0.0
  %1365 = vmatmul.mubr.f32.gmra.mrb[0].mxu0 %v1292
  %v1366 = vpop.f32.mrb[0].mxu0
  %v1367 = vadd.f32 0.0, %v1366
  %v1368 = vpop.f32.mrb[0].mxu0
  %v1369 = vadd.f32 0.0, %v1368
  %1370 = vdwg.mxu0
  %v1371 = vmul.f32 %v35, %v1361
  %v1372 = vmul.f32 %v36, %v1363
  %v1373 = vmul.f32 %v37, %v1367
  %v1374 = vmul.f32 %v38, %v1369
  %v1375 = vadd.f32 %v1371, %v1373
  %v1376 = vrot.slane %v1375, 4
  %v1377 = vadd.f32 %v1375, %v1376
  %v1378 = vrot.slane %v1377, 2
  %v1379 = vadd.f32 %v1377, %v1378
  %v1380 = vrot.slane %v1379, 1
  %v1381 = vadd.f32 %v1379, %v1380
  %v1382 = vadd.f32 %v1372, %v1374
  %v1383 = vrot.slane %v1382, 4
  %v1384 = vadd.f32 %v1382, %v1383
  %v1385 = vrot.slane %v1384, 2
  %v1386 = vadd.f32 %v1384, %v1385
  %v1387 = vrot.slane %v1386, 1
  %v1388 = vadd.f32 %v1386, %v1387
  %vm1389 = vcmask 1040384
  %v1390 = vsel %vm1389, %v1072, %v1175
  %v1391 = vsel %vm1389, %v1079, %v1182
  %vm1392 = vcmask 1041408
  %v1393 = vsel %vm1392, %v1390, %v1278
  %v1394 = vsel %vm1392, %v1391, %v1285
  %vm1395 = vcmask 1042432
  %v1396 = vsel %vm1395, %v1393, %v1381
  %v1397 = vsel %vm1395, %v1394, %v1388
  %s1398 = scalar_lea.vmem %s0, 16
  %v1399 = vld [vmem:[%s1398] sm:$0xff]
  %v1400 = vld [vmem:[%s1398 + $0x8] sm:$0xff]
  %v1401 = vadd.f32 %v1399, %v20
  %v1402 = vadd.f32 %v1400, %v21
  %s1403 = scalar_lea.vmem %s0, 48
  %v1404 = vld [vmem:[%s1403] sm:$0xff]
  %v1405 = vld [vmem:[%s1403 + $0x8] sm:$0xff]
  %v1406 = vadd.f32 %v1404, %v20
  %v1407 = vadd.f32 %v1405, %v21
  %s1408 = scalar_lea.vmem %s0, 80
  %v1409 = vld [vmem:[%s1408] sm:$0xff]
  %v1410 = vld [vmem:[%s1408 + $0x8] sm:$0xff]
  %v1411 = vadd.f32 %v1409, %v20
  %v1412 = vadd.f32 %v1410, %v21
  %v1413 = vmul.f32 %v1406, 0.125
  %v1414 = vmul.f32 %v1407, 0.125
  %v1416 = vsel %vm64, %v1413, 0
  %v1419 = vsel %vm64, %v1414, 0
  %v1422 = vsel %vm64, %v1401, 0
  %v1425 = vsel %vm64, %v1402, 0
  %1427 = vmatprep.subr.mxu0 0.0
  %1428 = vmatpush1.xpose.msra.mxu0 %v1422
  %1429 = vmatprep.subr.mxu0 0.0
  %1430 = vmatpush1.xpose.msra.mxu0 %v1425
  %1431 = vmatprep.subr.mxu0 0.0
  %1432 = vmatpush1.xpose.msra.mxu0 0.0
  %1433 = vmatprep.subr.mxu0 0.0
  %1434 = vmatpush1.xpose.msra.mxu0 0.0
  %1435 = vmatprep.subr.mxu0 0.0
  %1436 = vmatpush1.xpose.msra.mxu0 0.0
  %1437 = vmatprep.subr.mxu0 0.0
  %1438 = vmatpush1.xpose.msra.mxu0 0.0
  %1439 = vmatprep.subr.mxu0 0.0
  %1440 = vmatpush1.xpose.msra.mxu0 0.0
  %1441 = vmatprep.subr.mxu0 0.0
  %1442 = vmatpush1.xpose.msra.mxu0 0.0
  %1443 = vmatprep.subr.mxu0 0.0
  %1444 = vmatpush1.xpose.msra.mxu0 0.0
  %1445 = vmatprep.subr.mxu0 0.0
  %1446 = vmatpush1.xpose.msra.mxu0 0.0
  %1447 = vmatprep.subr.mxu0 0.0
  %1448 = vmatpush1.xpose.msra.mxu0 0.0
  %1449 = vmatprep.subr.mxu0 0.0
  %1450 = vmatpush1.xpose.msra.mxu0 0.0
  %1451 = vmatprep.subr.mxu0 0.0
  %1452 = vmatpush1.xpose.msra.mxu0 0.0
  %1453 = vmatprep.subr.mxu0 0.0
  %1454 = vmatpush1.xpose.msra.mxu0 0.0
  %1455 = vmatprep.subr.mxu0 0.0
  %1456 = vmatpush1.xpose.msra.mxu0 0.0
  %1457 = vmatprep.subr.mxu0 0.0
  %1458 = vmatpush1.xpose.msra.mxu0 0.0
  %1459 = vmatprep.subr.mxu0 0.0
  %1460 = vmatpush1.xpose.msra.mxu0 0.0
  %1461 = vmatprep.subr.mxu0 0.0
  %1462 = vmatpush1.xpose.msra.mxu0 0.0
  %1463 = vmatprep.subr.mxu0 0.0
  %1464 = vmatpush1.xpose.msra.mxu0 0.0
  %1465 = vmatprep.subr.mxu0 0.0
  %1466 = vmatpush1.xpose.msra.mxu0 0.0
  %1467 = vmatprep.subr.mxu0 0.0
  %1468 = vmatpush1.xpose.msra.mxu0 0.0
  %1469 = vmatprep.subr.mxu0 0.0
  %1470 = vmatpush1.xpose.msra.mxu0 0.0
  %1471 = vmatprep.subr.mxu0 0.0
  %1472 = vmatpush1.xpose.msra.mxu0 0.0
  %1473 = vmatprep.subr.mxu0 0.0
  %1474 = vmatpush1.xpose.msra.mxu0 0.0
  %1475 = vmatprep.subr.mxu0 0.0
  %1476 = vmatpush1.xpose.msra.mxu0 0.0
  %1477 = vmatprep.subr.mxu0 0.0
  %1478 = vmatpush1.xpose.msra.mxu0 0.0
  %1479 = vmatprep.subr.mxu0 0.0
  %1480 = vmatpush1.xpose.msra.mxu0 0.0
  %1481 = vmatprep.subr.mxu0 0.0
  %1482 = vmatpush1.xpose.msra.mxu0 0.0
  %1483 = vmatprep.subr.mxu0 0.0
  %1484 = vmatpush1.xpose.msra.mxu0 0.0
  %1485 = vmatprep.subr.mxu0 0.0
  %1486 = vmatpush1.xpose.msra.mxu0 0.0
  %1487 = vmatprep.subr.mxu0 0.0
  %1488 = vmatpush1.xpose.msra.mxu0 0.0
  %1489 = vmatprep.subr.mxu0 0.0
  %1490 = vmatpush1.xpose.msra.mxu0 0.0
  %1491 = vmatprep.mubr.f32.mxu0 0.0
  %1492 = vmatmul.mubr.f32.gmra.mrb[0].mxu0 %v1416
  %v1493 = vpop.f32.mrb[0].mxu0
  %v1494 = vadd.f32 0.0, %v1493
  %v1495 = vpop.f32.mrb[0].mxu0
  %1496 = vmatprep.mubr.f32.mxu0 0.0
  %1497 = vmatmul.mubr.f32.gmra.mrb[0].mxu0 %v1419
  %v1498 = vpop.f32.mrb[0].mxu0
  %v1499 = vadd.f32 0.0, %v1498
  %v1500 = vpop.f32.mrb[0].mxu0
  %1501 = vdwg.mxu0
  %v1502 = vsel %vm64, %v1494, -inf
  %1503 = vmax.xlane.f32.xlu0 %v1502
  %v1504 = vpop.xlane.xlu0 %1503
  %v1505 = vsel %vm64, %v1499, -inf
  %1506 = vmax.xlane.f32.xlu0 %v1505
  %v1507 = vpop.xlane.xlu0 %1506
  %v1508 = vsub.f32 %v1494, %v1504
  %v1509 = vsub.f32 %v1499, %v1507
  %v1510 = vmul.f32 %v1508, 1.442695
  %v1511 = vpow.pop %v1510
  %v1512 = vmul.f32 %v1509, 1.442695
  %v1513 = vpow.pop %v1512
  %v1514 = vsel %vm64, %v1511, 0.0
  %1515 = vadd.xlane.f32.xlu0 %v1514
  %v1516 = vpop.xlane.xlu0 %1515
  %v1517 = vsel %vm64, %v1513, 0.0
  %1518 = vadd.xlane.f32.xlu0 %v1517
  %v1519 = vpop.xlane.xlu0 %1518
  %v1520 = vrcp.pop %v1516
  %v1521 = vrcp.pop %v1519
  %v1522 = vmul.f32 %v1511, %v1520
  %v1523 = vmul.f32 %v1513, %v1521
  %v1525 = vsel %vm64, %v1522, 0
  %v1528 = vsel %vm64, %v1523, 0
  %1530 = vmatprep.subr.mxu0 0.0
  %1531 = vmatpush1.msra.mxu0 %v1411
  %1532 = vmatprep.subr.mxu0 0.0
  %1533 = vmatpush1.msra.mxu0 %v1412
  %1534 = vmatprep.subr.mxu0 0.0
  %1535 = vmatpush1.msra.mxu0 0.0
  %1536 = vmatprep.subr.mxu0 0.0
  %1537 = vmatpush1.msra.mxu0 0.0
  %1538 = vmatprep.subr.mxu0 0.0
  %1539 = vmatpush1.msra.mxu0 0.0
  %1540 = vmatprep.subr.mxu0 0.0
  %1541 = vmatpush1.msra.mxu0 0.0
  %1542 = vmatprep.subr.mxu0 0.0
  %1543 = vmatpush1.msra.mxu0 0.0
  %1544 = vmatprep.subr.mxu0 0.0
  %1545 = vmatpush1.msra.mxu0 0.0
  %1546 = vmatprep.subr.mxu0 0.0
  %1547 = vmatpush1.msra.mxu0 0.0
  %1548 = vmatprep.subr.mxu0 0.0
  %1549 = vmatpush1.msra.mxu0 0.0
  %1550 = vmatprep.subr.mxu0 0.0
  %1551 = vmatpush1.msra.mxu0 0.0
  %1552 = vmatprep.subr.mxu0 0.0
  %1553 = vmatpush1.msra.mxu0 0.0
  %1554 = vmatprep.subr.mxu0 0.0
  %1555 = vmatpush1.msra.mxu0 0.0
  %1556 = vmatprep.subr.mxu0 0.0
  %1557 = vmatpush1.msra.mxu0 0.0
  %1558 = vmatprep.subr.mxu0 0.0
  %1559 = vmatpush1.msra.mxu0 0.0
  %1560 = vmatprep.subr.mxu0 0.0
  %1561 = vmatpush1.msra.mxu0 0.0
  %1562 = vmatprep.subr.mxu0 0.0
  %1563 = vmatpush1.msra.mxu0 0.0
  %1564 = vmatprep.subr.mxu0 0.0
  %1565 = vmatpush1.msra.mxu0 0.0
  %1566 = vmatprep.subr.mxu0 0.0
  %1567 = vmatpush1.msra.mxu0 0.0
  %1568 = vmatprep.subr.mxu0 0.0
  %1569 = vmatpush1.msra.mxu0 0.0
  %1570 = vmatprep.subr.mxu0 0.0
  %1571 = vmatpush1.msra.mxu0 0.0
  %1572 = vmatprep.subr.mxu0 0.0
  %1573 = vmatpush1.msra.mxu0 0.0
  %1574 = vmatprep.subr.mxu0 0.0
  %1575 = vmatpush1.msra.mxu0 0.0
  %1576 = vmatprep.subr.mxu0 0.0
  %1577 = vmatpush1.msra.mxu0 0.0
  %1578 = vmatprep.subr.mxu0 0.0
  %1579 = vmatpush1.msra.mxu0 0.0
  %1580 = vmatprep.subr.mxu0 0.0
  %1581 = vmatpush1.msra.mxu0 0.0
  %1582 = vmatprep.subr.mxu0 0.0
  %1583 = vmatpush1.msra.mxu0 0.0
  %1584 = vmatprep.subr.mxu0 0.0
  %1585 = vmatpush1.msra.mxu0 0.0
  %1586 = vmatprep.subr.mxu0 0.0
  %1587 = vmatpush1.msra.mxu0 0.0
  %1588 = vmatprep.subr.mxu0 0.0
  %1589 = vmatpush1.msra.mxu0 0.0
  %1590 = vmatprep.subr.mxu0 0.0
  %1591 = vmatpush1.msra.mxu0 0.0
  %1592 = vmatprep.subr.mxu0 0.0
  %1593 = vmatpush1.msra.mxu0 0.0
  %1594 = vmatprep.mubr.f32.mxu0 0.0
  %1595 = vmatmul.mubr.f32.gmra.mrb[0].mxu0 %v1525
  %v1596 = vpop.f32.mrb[0].mxu0
  %v1597 = vadd.f32 0.0, %v1596
  %v1598 = vpop.f32.mrb[0].mxu0
  %1599 = vmatprep.mubr.f32.mxu0 0.0
  %1600 = vmatmul.mubr.f32.gmra.mrb[0].mxu0 %v1528
  %v1601 = vpop.f32.mrb[0].mxu0
  %v1602 = vadd.f32 0.0, %v1601
  %v1603 = vpop.f32.mrb[0].mxu0
  %1604 = vdwg.mxu0
  %1605 = vrot.lane.b32.xlu0 %v1413, 112
  %v1606 = vpop.permute.xlu0 %1605
  %1607 = vrot.lane.b32.xlu0 %v1414, 112
  %v1608 = vpop.permute.xlu0 %1607
  %1609 = vrot.lane.b32.xlu0 %v1401, 112
  %v1610 = vpop.permute.xlu0 %1609
  %1611 = vrot.lane.b32.xlu0 %v1402, 112
  %v1612 = vpop.permute.xlu0 %1611
  %v1613 = vsel %vm64, %v1606, 0
  %v1615 = vsel %vm64, %v1608, 0
  %v1617 = vsel %vm64, %v1610, 0
  %v1619 = vsel %vm64, %v1612, 0
  %1621 = vmatprep.subr.mxu0 0.0
  %1622 = vmatpush1.xpose.msra.mxu0 %v1617
  %1623 = vmatprep.subr.mxu0 0.0
  %1624 = vmatpush1.xpose.msra.mxu0 %v1619
  %1625 = vmatprep.subr.mxu0 0.0
  %1626 = vmatpush1.xpose.msra.mxu0 0.0
  %1627 = vmatprep.subr.mxu0 0.0
  %1628 = vmatpush1.xpose.msra.mxu0 0.0
  %1629 = vmatprep.subr.mxu0 0.0
  %1630 = vmatpush1.xpose.msra.mxu0 0.0
  %1631 = vmatprep.subr.mxu0 0.0
  %1632 = vmatpush1.xpose.msra.mxu0 0.0
  %1633 = vmatprep.subr.mxu0 0.0
  %1634 = vmatpush1.xpose.msra.mxu0 0.0
  %1635 = vmatprep.subr.mxu0 0.0
  %1636 = vmatpush1.xpose.msra.mxu0 0.0
  %1637 = vmatprep.subr.mxu0 0.0
  %1638 = vmatpush1.xpose.msra.mxu0 0.0
  %1639 = vmatprep.subr.mxu0 0.0
  %1640 = vmatpush1.xpose.msra.mxu0 0.0
  %1641 = vmatprep.subr.mxu0 0.0
  %1642 = vmatpush1.xpose.msra.mxu0 0.0
  %1643 = vmatprep.subr.mxu0 0.0
  %1644 = vmatpush1.xpose.msra.mxu0 0.0
  %1645 = vmatprep.subr.mxu0 0.0
  %1646 = vmatpush1.xpose.msra.mxu0 0.0
  %1647 = vmatprep.subr.mxu0 0.0
  %1648 = vmatpush1.xpose.msra.mxu0 0.0
  %1649 = vmatprep.subr.mxu0 0.0
  %1650 = vmatpush1.xpose.msra.mxu0 0.0
  %1651 = vmatprep.subr.mxu0 0.0
  %1652 = vmatpush1.xpose.msra.mxu0 0.0
  %1653 = vmatprep.subr.mxu0 0.0
  %1654 = vmatpush1.xpose.msra.mxu0 0.0
  %1655 = vmatprep.subr.mxu0 0.0
  %1656 = vmatpush1.xpose.msra.mxu0 0.0
  %1657 = vmatprep.subr.mxu0 0.0
  %1658 = vmatpush1.xpose.msra.mxu0 0.0
  %1659 = vmatprep.subr.mxu0 0.0
  %1660 = vmatpush1.xpose.msra.mxu0 0.0
  %1661 = vmatprep.subr.mxu0 0.0
  %1662 = vmatpush1.xpose.msra.mxu0 0.0
  %1663 = vmatprep.subr.mxu0 0.0
  %1664 = vmatpush1.xpose.msra.mxu0 0.0
  %1665 = vmatprep.subr.mxu0 0.0
  %1666 = vmatpush1.xpose.msra.mxu0 0.0
  %1667 = vmatprep.subr.mxu0 0.0
  %1668 = vmatpush1.xpose.msra.mxu0 0.0
  %1669 = vmatprep.subr.mxu0 0.0
  %1670 = vmatpush1.xpose.msra.mxu0 0.0
  %1671 = vmatprep.subr.mxu0 0.0
  %1672 = vmatpush1.xpose.msra.mxu0 0.0
  %1673 = vmatprep.subr.mxu0 0.0
  %1674 = vmatpush1.xpose.msra.mxu0 0.0
  %1675 = vmatprep.subr.mxu0 0.0
  %1676 = vmatpush1.xpose.msra.mxu0 0.0
  %1677 = vmatprep.subr.mxu0 0.0
  %1678 = vmatpush1.xpose.msra.mxu0 0.0
  %1679 = vmatprep.subr.mxu0 0.0
  %1680 = vmatpush1.xpose.msra.mxu0 0.0
  %1681 = vmatprep.subr.mxu0 0.0
  %1682 = vmatpush1.xpose.msra.mxu0 0.0
  %1683 = vmatprep.subr.mxu0 0.0
  %1684 = vmatpush1.xpose.msra.mxu0 0.0
  %1685 = vmatprep.mubr.f32.mxu0 0.0
  %1686 = vmatmul.mubr.f32.gmra.mrb[0].mxu0 %v1613
  %v1687 = vpop.f32.mrb[0].mxu0
  %v1688 = vadd.f32 0.0, %v1687
  %v1689 = vpop.f32.mrb[0].mxu0
  %1690 = vmatprep.mubr.f32.mxu0 0.0
  %1691 = vmatmul.mubr.f32.gmra.mrb[0].mxu0 %v1615
  %v1692 = vpop.f32.mrb[0].mxu0
  %v1693 = vadd.f32 0.0, %v1692
  %v1694 = vpop.f32.mrb[0].mxu0
  %1695 = vdwg.mxu0
  %v1696 = vsel %vm64, %v1688, -inf
  %1697 = vmax.xlane.f32.xlu0 %v1696
  %v1698 = vpop.xlane.xlu0 %1697
  %v1699 = vsel %vm64, %v1693, -inf
  %1700 = vmax.xlane.f32.xlu0 %v1699
  %v1701 = vpop.xlane.xlu0 %1700
  %v1702 = vsub.f32 %v1688, %v1698
  %v1703 = vsub.f32 %v1693, %v1701
  %v1704 = vmul.f32 %v1702, 1.442695
  %v1705 = vpow.pop %v1704
  %v1706 = vmul.f32 %v1703, 1.442695
  %v1707 = vpow.pop %v1706
  %v1708 = vsel %vm64, %v1705, 0.0
  %1709 = vadd.xlane.f32.xlu0 %v1708
  %v1710 = vpop.xlane.xlu0 %1709
  %v1711 = vsel %vm64, %v1707, 0.0
  %1712 = vadd.xlane.f32.xlu0 %v1711
  %v1713 = vpop.xlane.xlu0 %1712
  %v1714 = vrcp.pop %v1710
  %v1715 = vrcp.pop %v1713
  %v1716 = vmul.f32 %v1705, %v1714
  %v1717 = vmul.f32 %v1707, %v1715
  %1720 = vrot.lane.b32.xlu0 %v1411, 112
  %v1721 = vpop.permute.xlu0 %1720
  %1722 = vrot.lane.b32.xlu0 %v1412, 112
  %v1723 = vpop.permute.xlu0 %1722
  %v1727 = vsel %vm64, %v1716, 0
  %v1730 = vsel %vm64, %v1717, 0
  %1732 = vmatprep.subr.mxu0 0.0
  %1733 = vmatpush1.msra.mxu0 %v1721
  %1734 = vmatprep.subr.mxu0 0.0
  %1735 = vmatpush1.msra.mxu0 %v1723
  %1736 = vmatprep.subr.mxu0 0.0
  %1737 = vmatpush1.msra.mxu0 0.0
  %1738 = vmatprep.subr.mxu0 0.0
  %1739 = vmatpush1.msra.mxu0 0.0
  %1740 = vmatprep.subr.mxu0 0.0
  %1741 = vmatpush1.msra.mxu0 0.0
  %1742 = vmatprep.subr.mxu0 0.0
  %1743 = vmatpush1.msra.mxu0 0.0
  %1744 = vmatprep.subr.mxu0 0.0
  %1745 = vmatpush1.msra.mxu0 0.0
  %1746 = vmatprep.subr.mxu0 0.0
  %1747 = vmatpush1.msra.mxu0 0.0
  %1748 = vmatprep.subr.mxu0 0.0
  %1749 = vmatpush1.msra.mxu0 0.0
  %1750 = vmatprep.subr.mxu0 0.0
  %1751 = vmatpush1.msra.mxu0 0.0
  %1752 = vmatprep.subr.mxu0 0.0
  %1753 = vmatpush1.msra.mxu0 0.0
  %1754 = vmatprep.subr.mxu0 0.0
  %1755 = vmatpush1.msra.mxu0 0.0
  %1756 = vmatprep.subr.mxu0 0.0
  %1757 = vmatpush1.msra.mxu0 0.0
  %1758 = vmatprep.subr.mxu0 0.0
  %1759 = vmatpush1.msra.mxu0 0.0
  %1760 = vmatprep.subr.mxu0 0.0
  %1761 = vmatpush1.msra.mxu0 0.0
  %1762 = vmatprep.subr.mxu0 0.0
  %1763 = vmatpush1.msra.mxu0 0.0
  %1764 = vmatprep.subr.mxu0 0.0
  %1765 = vmatpush1.msra.mxu0 0.0
  %1766 = vmatprep.subr.mxu0 0.0
  %1767 = vmatpush1.msra.mxu0 0.0
  %1768 = vmatprep.subr.mxu0 0.0
  %1769 = vmatpush1.msra.mxu0 0.0
  %1770 = vmatprep.subr.mxu0 0.0
  %1771 = vmatpush1.msra.mxu0 0.0
  %1772 = vmatprep.subr.mxu0 0.0
  %1773 = vmatpush1.msra.mxu0 0.0
  %1774 = vmatprep.subr.mxu0 0.0
  %1775 = vmatpush1.msra.mxu0 0.0
  %1776 = vmatprep.subr.mxu0 0.0
  %1777 = vmatpush1.msra.mxu0 0.0
  %1778 = vmatprep.subr.mxu0 0.0
  %1779 = vmatpush1.msra.mxu0 0.0
  %1780 = vmatprep.subr.mxu0 0.0
  %1781 = vmatpush1.msra.mxu0 0.0
  %1782 = vmatprep.subr.mxu0 0.0
  %1783 = vmatpush1.msra.mxu0 0.0
  %1784 = vmatprep.subr.mxu0 0.0
  %1785 = vmatpush1.msra.mxu0 0.0
  %1786 = vmatprep.subr.mxu0 0.0
  %1787 = vmatpush1.msra.mxu0 0.0
  %1788 = vmatprep.subr.mxu0 0.0
  %1789 = vmatpush1.msra.mxu0 0.0
  %1790 = vmatprep.subr.mxu0 0.0
  %1791 = vmatpush1.msra.mxu0 0.0
  %1792 = vmatprep.subr.mxu0 0.0
  %1793 = vmatpush1.msra.mxu0 0.0
  %1794 = vmatprep.subr.mxu0 0.0
  %1795 = vmatpush1.msra.mxu0 0.0
  %1796 = vmatprep.mubr.f32.mxu0 0.0
  %1797 = vmatmul.mubr.f32.gmra.mrb[0].mxu0 %v1727
  %v1798 = vpop.f32.mrb[0].mxu0
  %v1799 = vadd.f32 0.0, %v1798
  %v1800 = vpop.f32.mrb[0].mxu0
  %1801 = vmatprep.mubr.f32.mxu0 0.0
  %1802 = vmatmul.mubr.f32.gmra.mrb[0].mxu0 %v1730
  %v1803 = vpop.f32.mrb[0].mxu0
  %v1804 = vadd.f32 0.0, %v1803
  %v1805 = vpop.f32.mrb[0].mxu0
  %1806 = vdwg.mxu0
  %1807 = vrot.lane.b32.xlu0 %v1413, 96
  %v1808 = vpop.permute.xlu0 %1807
  %1809 = vrot.lane.b32.xlu0 %v1414, 96
  %v1810 = vpop.permute.xlu0 %1809
  %1811 = vrot.lane.b32.xlu0 %v1401, 96
  %v1812 = vpop.permute.xlu0 %1811
  %1813 = vrot.lane.b32.xlu0 %v1402, 96
  %v1814 = vpop.permute.xlu0 %1813
  %v1815 = vsel %vm64, %v1808, 0
  %v1817 = vsel %vm64, %v1810, 0
  %v1819 = vsel %vm64, %v1812, 0
  %v1821 = vsel %vm64, %v1814, 0
  %1823 = vmatprep.subr.mxu0 0.0
  %1824 = vmatpush1.xpose.msra.mxu0 %v1819
  %1825 = vmatprep.subr.mxu0 0.0
  %1826 = vmatpush1.xpose.msra.mxu0 %v1821
  %1827 = vmatprep.subr.mxu0 0.0
  %1828 = vmatpush1.xpose.msra.mxu0 0.0
  %1829 = vmatprep.subr.mxu0 0.0
  %1830 = vmatpush1.xpose.msra.mxu0 0.0
  %1831 = vmatprep.subr.mxu0 0.0
  %1832 = vmatpush1.xpose.msra.mxu0 0.0
  %1833 = vmatprep.subr.mxu0 0.0
  %1834 = vmatpush1.xpose.msra.mxu0 0.0
  %1835 = vmatprep.subr.mxu0 0.0
  %1836 = vmatpush1.xpose.msra.mxu0 0.0
  %1837 = vmatprep.subr.mxu0 0.0
  %1838 = vmatpush1.xpose.msra.mxu0 0.0
  %1839 = vmatprep.subr.mxu0 0.0
  %1840 = vmatpush1.xpose.msra.mxu0 0.0
  %1841 = vmatprep.subr.mxu0 0.0
  %1842 = vmatpush1.xpose.msra.mxu0 0.0
  %1843 = vmatprep.subr.mxu0 0.0
  %1844 = vmatpush1.xpose.msra.mxu0 0.0
  %1845 = vmatprep.subr.mxu0 0.0
  %1846 = vmatpush1.xpose.msra.mxu0 0.0
  %1847 = vmatprep.subr.mxu0 0.0
  %1848 = vmatpush1.xpose.msra.mxu0 0.0
  %1849 = vmatprep.subr.mxu0 0.0
  %1850 = vmatpush1.xpose.msra.mxu0 0.0
  %1851 = vmatprep.subr.mxu0 0.0
  %1852 = vmatpush1.xpose.msra.mxu0 0.0
  %1853 = vmatprep.subr.mxu0 0.0
  %1854 = vmatpush1.xpose.msra.mxu0 0.0
  %1855 = vmatprep.subr.mxu0 0.0
  %1856 = vmatpush1.xpose.msra.mxu0 0.0
  %1857 = vmatprep.subr.mxu0 0.0
  %1858 = vmatpush1.xpose.msra.mxu0 0.0
  %1859 = vmatprep.subr.mxu0 0.0
  %1860 = vmatpush1.xpose.msra.mxu0 0.0
  %1861 = vmatprep.subr.mxu0 0.0
  %1862 = vmatpush1.xpose.msra.mxu0 0.0
  %1863 = vmatprep.subr.mxu0 0.0
  %1864 = vmatpush1.xpose.msra.mxu0 0.0
  %1865 = vmatprep.subr.mxu0 0.0
  %1866 = vmatpush1.xpose.msra.mxu0 0.0
  %1867 = vmatprep.subr.mxu0 0.0
  %1868 = vmatpush1.xpose.msra.mxu0 0.0
  %1869 = vmatprep.subr.mxu0 0.0
  %1870 = vmatpush1.xpose.msra.mxu0 0.0
  %1871 = vmatprep.subr.mxu0 0.0
  %1872 = vmatpush1.xpose.msra.mxu0 0.0
  %1873 = vmatprep.subr.mxu0 0.0
  %1874 = vmatpush1.xpose.msra.mxu0 0.0
  %1875 = vmatprep.subr.mxu0 0.0
  %1876 = vmatpush1.xpose.msra.mxu0 0.0
  %1877 = vmatprep.subr.mxu0 0.0
  %1878 = vmatpush1.xpose.msra.mxu0 0.0
  %1879 = vmatprep.subr.mxu0 0.0
  %1880 = vmatpush1.xpose.msra.mxu0 0.0
  %1881 = vmatprep.subr.mxu0 0.0
  %1882 = vmatpush1.xpose.msra.mxu0 0.0
  %1883 = vmatprep.subr.mxu0 0.0
  %1884 = vmatpush1.xpose.msra.mxu0 0.0
  %1885 = vmatprep.subr.mxu0 0.0
  %1886 = vmatpush1.xpose.msra.mxu0 0.0
  %1887 = vmatprep.mubr.f32.mxu0 0.0
  %1888 = vmatmul.mubr.f32.gmra.mrb[0].mxu0 %v1815
  %v1889 = vpop.f32.mrb[0].mxu0
  %v1890 = vadd.f32 0.0, %v1889
  %v1891 = vpop.f32.mrb[0].mxu0
  %1892 = vmatprep.mubr.f32.mxu0 0.0
  %1893 = vmatmul.mubr.f32.gmra.mrb[0].mxu0 %v1817
  %v1894 = vpop.f32.mrb[0].mxu0
  %v1895 = vadd.f32 0.0, %v1894
  %v1896 = vpop.f32.mrb[0].mxu0
  %1897 = vdwg.mxu0
  %v1898 = vsel %vm64, %v1890, -inf
  %1899 = vmax.xlane.f32.xlu0 %v1898
  %v1900 = vpop.xlane.xlu0 %1899
  %v1901 = vsel %vm64, %v1895, -inf
  %1902 = vmax.xlane.f32.xlu0 %v1901
  %v1903 = vpop.xlane.xlu0 %1902
  %v1904 = vsub.f32 %v1890, %v1900
  %v1905 = vsub.f32 %v1895, %v1903
  %v1906 = vmul.f32 %v1904, 1.442695
  %v1907 = vpow.pop %v1906
  %v1908 = vmul.f32 %v1905, 1.442695
  %v1909 = vpow.pop %v1908
  %v1910 = vsel %vm64, %v1907, 0.0
  %1911 = vadd.xlane.f32.xlu0 %v1910
  %v1912 = vpop.xlane.xlu0 %1911
  %v1913 = vsel %vm64, %v1909, 0.0
  %1914 = vadd.xlane.f32.xlu0 %v1913
  %v1915 = vpop.xlane.xlu0 %1914
  %v1916 = vrcp.pop %v1912
  %v1917 = vrcp.pop %v1915
  %v1918 = vmul.f32 %v1907, %v1916
  %v1919 = vmul.f32 %v1909, %v1917
  %1920 = vrot.lane.b32.xlu0 %v1411, 96
  %v1921 = vpop.permute.xlu0 %1920
  %1922 = vrot.lane.b32.xlu0 %v1412, 96
  %v1923 = vpop.permute.xlu0 %1922
  %v1927 = vsel %vm64, %v1918, 0
  %v1930 = vsel %vm64, %v1919, 0
  %1932 = vmatprep.subr.mxu0 0.0
  %1933 = vmatpush1.msra.mxu0 %v1921
  %1934 = vmatprep.subr.mxu0 0.0
  %1935 = vmatpush1.msra.mxu0 %v1923
  %1936 = vmatprep.subr.mxu0 0.0
  %1937 = vmatpush1.msra.mxu0 0.0
  %1938 = vmatprep.subr.mxu0 0.0
  %1939 = vmatpush1.msra.mxu0 0.0
  %1940 = vmatprep.subr.mxu0 0.0
  %1941 = vmatpush1.msra.mxu0 0.0
  %1942 = vmatprep.subr.mxu0 0.0
  %1943 = vmatpush1.msra.mxu0 0.0
  %1944 = vmatprep.subr.mxu0 0.0
  %1945 = vmatpush1.msra.mxu0 0.0
  %1946 = vmatprep.subr.mxu0 0.0
  %1947 = vmatpush1.msra.mxu0 0.0
  %1948 = vmatprep.subr.mxu0 0.0
  %1949 = vmatpush1.msra.mxu0 0.0
  %1950 = vmatprep.subr.mxu0 0.0
  %1951 = vmatpush1.msra.mxu0 0.0
  %1952 = vmatprep.subr.mxu0 0.0
  %1953 = vmatpush1.msra.mxu0 0.0
  %1954 = vmatprep.subr.mxu0 0.0
  %1955 = vmatpush1.msra.mxu0 0.0
  %1956 = vmatprep.subr.mxu0 0.0
  %1957 = vmatpush1.msra.mxu0 0.0
  %1958 = vmatprep.subr.mxu0 0.0
  %1959 = vmatpush1.msra.mxu0 0.0
  %1960 = vmatprep.subr.mxu0 0.0
  %1961 = vmatpush1.msra.mxu0 0.0
  %1962 = vmatprep.subr.mxu0 0.0
  %1963 = vmatpush1.msra.mxu0 0.0
  %1964 = vmatprep.subr.mxu0 0.0
  %1965 = vmatpush1.msra.mxu0 0.0
  %1966 = vmatprep.subr.mxu0 0.0
  %1967 = vmatpush1.msra.mxu0 0.0
  %1968 = vmatprep.subr.mxu0 0.0
  %1969 = vmatpush1.msra.mxu0 0.0
  %1970 = vmatprep.subr.mxu0 0.0
  %1971 = vmatpush1.msra.mxu0 0.0
  %1972 = vmatprep.subr.mxu0 0.0
  %1973 = vmatpush1.msra.mxu0 0.0
  %1974 = vmatprep.subr.mxu0 0.0
  %1975 = vmatpush1.msra.mxu0 0.0
  %1976 = vmatprep.subr.mxu0 0.0
  %1977 = vmatpush1.msra.mxu0 0.0
  %1978 = vmatprep.subr.mxu0 0.0
  %1979 = vmatpush1.msra.mxu0 0.0
  %1980 = vmatprep.subr.mxu0 0.0
  %1981 = vmatpush1.msra.mxu0 0.0
  %1982 = vmatprep.subr.mxu0 0.0
  %1983 = vmatpush1.msra.mxu0 0.0
  %1984 = vmatprep.subr.mxu0 0.0
  %1985 = vmatpush1.msra.mxu0 0.0
  %1986 = vmatprep.subr.mxu0 0.0
  %1987 = vmatpush1.msra.mxu0 0.0
  %1988 = vmatprep.subr.mxu0 0.0
  %1989 = vmatpush1.msra.mxu0 0.0
  %1990 = vmatprep.subr.mxu0 0.0
  %1991 = vmatpush1.msra.mxu0 0.0
  %1992 = vmatprep.subr.mxu0 0.0
  %1993 = vmatpush1.msra.mxu0 0.0
  %1994 = vmatprep.subr.mxu0 0.0
  %1995 = vmatpush1.msra.mxu0 0.0
  %1996 = vmatprep.mubr.f32.mxu0 0.0
  %1997 = vmatmul.mubr.f32.gmra.mrb[0].mxu0 %v1927
  %v1998 = vpop.f32.mrb[0].mxu0
  %v1999 = vadd.f32 0.0, %v1998
  %v2000 = vpop.f32.mrb[0].mxu0
  %2001 = vmatprep.mubr.f32.mxu0 0.0
  %2002 = vmatmul.mubr.f32.gmra.mrb[0].mxu0 %v1930
  %v2003 = vpop.f32.mrb[0].mxu0
  %v2004 = vadd.f32 0.0, %v2003
  %v2005 = vpop.f32.mrb[0].mxu0
  %2006 = vdwg.mxu0
  %2007 = vrot.lane.b32.xlu0 %v1413, 80
  %v2008 = vpop.permute.xlu0 %2007
  %2009 = vrot.lane.b32.xlu0 %v1414, 80
  %v2010 = vpop.permute.xlu0 %2009
  %2011 = vrot.lane.b32.xlu0 %v1401, 80
  %v2012 = vpop.permute.xlu0 %2011
  %2013 = vrot.lane.b32.xlu0 %v1402, 80
  %v2014 = vpop.permute.xlu0 %2013
  %v2015 = vsel %vm64, %v2008, 0
  %v2017 = vsel %vm64, %v2010, 0
  %v2019 = vsel %vm64, %v2012, 0
  %v2021 = vsel %vm64, %v2014, 0
  %2023 = vmatprep.subr.mxu0 0.0
  %2024 = vmatpush1.xpose.msra.mxu0 %v2019
  %2025 = vmatprep.subr.mxu0 0.0
  %2026 = vmatpush1.xpose.msra.mxu0 %v2021
  %2027 = vmatprep.subr.mxu0 0.0
  %2028 = vmatpush1.xpose.msra.mxu0 0.0
  %2029 = vmatprep.subr.mxu0 0.0
  %2030 = vmatpush1.xpose.msra.mxu0 0.0
  %2031 = vmatprep.subr.mxu0 0.0
  %2032 = vmatpush1.xpose.msra.mxu0 0.0
  %2033 = vmatprep.subr.mxu0 0.0
  %2034 = vmatpush1.xpose.msra.mxu0 0.0
  %2035 = vmatprep.subr.mxu0 0.0
  %2036 = vmatpush1.xpose.msra.mxu0 0.0
  %2037 = vmatprep.subr.mxu0 0.0
  %2038 = vmatpush1.xpose.msra.mxu0 0.0
  %2039 = vmatprep.subr.mxu0 0.0
  %2040 = vmatpush1.xpose.msra.mxu0 0.0
  %2041 = vmatprep.subr.mxu0 0.0
  %2042 = vmatpush1.xpose.msra.mxu0 0.0
  %2043 = vmatprep.subr.mxu0 0.0
  %2044 = vmatpush1.xpose.msra.mxu0 0.0
  %2045 = vmatprep.subr.mxu0 0.0
  %2046 = vmatpush1.xpose.msra.mxu0 0.0
  %2047 = vmatprep.subr.mxu0 0.0
  %2048 = vmatpush1.xpose.msra.mxu0 0.0
  %2049 = vmatprep.subr.mxu0 0.0
  %2050 = vmatpush1.xpose.msra.mxu0 0.0
  %2051 = vmatprep.subr.mxu0 0.0
  %2052 = vmatpush1.xpose.msra.mxu0 0.0
  %2053 = vmatprep.subr.mxu0 0.0
  %2054 = vmatpush1.xpose.msra.mxu0 0.0
  %2055 = vmatprep.subr.mxu0 0.0
  %2056 = vmatpush1.xpose.msra.mxu0 0.0
  %2057 = vmatprep.subr.mxu0 0.0
  %2058 = vmatpush1.xpose.msra.mxu0 0.0
  %2059 = vmatprep.subr.mxu0 0.0
  %2060 = vmatpush1.xpose.msra.mxu0 0.0
  %2061 = vmatprep.subr.mxu0 0.0
  %2062 = vmatpush1.xpose.msra.mxu0 0.0
  %2063 = vmatprep.subr.mxu0 0.0
  %2064 = vmatpush1.xpose.msra.mxu0 0.0
  %2065 = vmatprep.subr.mxu0 0.0
  %2066 = vmatpush1.xpose.msra.mxu0 0.0
  %2067 = vmatprep.subr.mxu0 0.0
  %2068 = vmatpush1.xpose.msra.mxu0 0.0
  %2069 = vmatprep.subr.mxu0 0.0
  %2070 = vmatpush1.xpose.msra.mxu0 0.0
  %2071 = vmatprep.subr.mxu0 0.0
  %2072 = vmatpush1.xpose.msra.mxu0 0.0
  %2073 = vmatprep.subr.mxu0 0.0
  %2074 = vmatpush1.xpose.msra.mxu0 0.0
  %2075 = vmatprep.subr.mxu0 0.0
  %2076 = vmatpush1.xpose.msra.mxu0 0.0
  %2077 = vmatprep.subr.mxu0 0.0
  %2078 = vmatpush1.xpose.msra.mxu0 0.0
  %2079 = vmatprep.subr.mxu0 0.0
  %2080 = vmatpush1.xpose.msra.mxu0 0.0
  %2081 = vmatprep.subr.mxu0 0.0
  %2082 = vmatpush1.xpose.msra.mxu0 0.0
  %2083 = vmatprep.subr.mxu0 0.0
  %2084 = vmatpush1.xpose.msra.mxu0 0.0
  %2085 = vmatprep.subr.mxu0 0.0
  %2086 = vmatpush1.xpose.msra.mxu0 0.0
  %2087 = vmatprep.mubr.f32.mxu0 0.0
  %2088 = vmatmul.mubr.f32.gmra.mrb[0].mxu0 %v2015
  %v2089 = vpop.f32.mrb[0].mxu0
  %v2090 = vadd.f32 0.0, %v2089
  %v2091 = vpop.f32.mrb[0].mxu0
  %2092 = vmatprep.mubr.f32.mxu0 0.0
  %2093 = vmatmul.mubr.f32.gmra.mrb[0].mxu0 %v2017
  %v2094 = vpop.f32.mrb[0].mxu0
  %v2095 = vadd.f32 0.0, %v2094
  %v2096 = vpop.f32.mrb[0].mxu0
  %2097 = vdwg.mxu0
  %v2098 = vsel %vm64, %v2090, -inf
  %2099 = vmax.xlane.f32.xlu0 %v2098
  %v2100 = vpop.xlane.xlu0 %2099
  %v2101 = vsel %vm64, %v2095, -inf
  %2102 = vmax.xlane.f32.xlu0 %v2101
  %v2103 = vpop.xlane.xlu0 %2102
  %v2104 = vsub.f32 %v2090, %v2100
  %v2105 = vsub.f32 %v2095, %v2103
  %v2106 = vmul.f32 %v2104, 1.442695
  %v2107 = vpow.pop %v2106
  %v2108 = vmul.f32 %v2105, 1.442695
  %v2109 = vpow.pop %v2108
  %v2110 = vsel %vm64, %v2107, 0.0
  %2111 = vadd.xlane.f32.xlu0 %v2110
  %v2112 = vpop.xlane.xlu0 %2111
  %v2113 = vsel %vm64, %v2109, 0.0
  %2114 = vadd.xlane.f32.xlu0 %v2113
  %v2115 = vpop.xlane.xlu0 %2114
  %v2116 = vrcp.pop %v2112
  %v2117 = vrcp.pop %v2115
  %v2118 = vmul.f32 %v2107, %v2116
  %v2119 = vmul.f32 %v2109, %v2117
  %2120 = vrot.lane.b32.xlu0 %v1411, 80
  %v2121 = vpop.permute.xlu0 %2120
  %2122 = vrot.lane.b32.xlu0 %v1412, 80
  %v2123 = vpop.permute.xlu0 %2122
  %v2127 = vsel %vm64, %v2118, 0
  %v2130 = vsel %vm64, %v2119, 0
  %2132 = vmatprep.subr.mxu0 0.0
  %2133 = vmatpush1.msra.mxu0 %v2121
  %2134 = vmatprep.subr.mxu0 0.0
  %2135 = vmatpush1.msra.mxu0 %v2123
  %2136 = vmatprep.subr.mxu0 0.0
  %2137 = vmatpush1.msra.mxu0 0.0
  %2138 = vmatprep.subr.mxu0 0.0
  %2139 = vmatpush1.msra.mxu0 0.0
  %2140 = vmatprep.subr.mxu0 0.0
  %2141 = vmatpush1.msra.mxu0 0.0
  %2142 = vmatprep.subr.mxu0 0.0
  %2143 = vmatpush1.msra.mxu0 0.0
  %2144 = vmatprep.subr.mxu0 0.0
  %2145 = vmatpush1.msra.mxu0 0.0
  %2146 = vmatprep.subr.mxu0 0.0
  %2147 = vmatpush1.msra.mxu0 0.0
  %2148 = vmatprep.subr.mxu0 0.0
  %2149 = vmatpush1.msra.mxu0 0.0
  %2150 = vmatprep.subr.mxu0 0.0
  %2151 = vmatpush1.msra.mxu0 0.0
  %2152 = vmatprep.subr.mxu0 0.0
  %2153 = vmatpush1.msra.mxu0 0.0
  %2154 = vmatprep.subr.mxu0 0.0
  %2155 = vmatpush1.msra.mxu0 0.0
  %2156 = vmatprep.subr.mxu0 0.0
  %2157 = vmatpush1.msra.mxu0 0.0
  %2158 = vmatprep.subr.mxu0 0.0
  %2159 = vmatpush1.msra.mxu0 0.0
  %2160 = vmatprep.subr.mxu0 0.0
  %2161 = vmatpush1.msra.mxu0 0.0
  %2162 = vmatprep.subr.mxu0 0.0
  %2163 = vmatpush1.msra.mxu0 0.0
  %2164 = vmatprep.subr.mxu0 0.0
  %2165 = vmatpush1.msra.mxu0 0.0
  %2166 = vmatprep.subr.mxu0 0.0
  %2167 = vmatpush1.msra.mxu0 0.0
  %2168 = vmatprep.subr.mxu0 0.0
  %2169 = vmatpush1.msra.mxu0 0.0
  %2170 = vmatprep.subr.mxu0 0.0
  %2171 = vmatpush1.msra.mxu0 0.0
  %2172 = vmatprep.subr.mxu0 0.0
  %2173 = vmatpush1.msra.mxu0 0.0
  %2174 = vmatprep.subr.mxu0 0.0
  %2175 = vmatpush1.msra.mxu0 0.0
  %2176 = vmatprep.subr.mxu0 0.0
  %2177 = vmatpush1.msra.mxu0 0.0
  %2178 = vmatprep.subr.mxu0 0.0
  %2179 = vmatpush1.msra.mxu0 0.0
  %2180 = vmatprep.subr.mxu0 0.0
  %2181 = vmatpush1.msra.mxu0 0.0
  %2182 = vmatprep.subr.mxu0 0.0
  %2183 = vmatpush1.msra.mxu0 0.0
  %2184 = vmatprep.subr.mxu0 0.0
  %2185 = vmatpush1.msra.mxu0 0.0
  %2186 = vmatprep.subr.mxu0 0.0
  %2187 = vmatpush1.msra.mxu0 0.0
  %2188 = vmatprep.subr.mxu0 0.0
  %2189 = vmatpush1.msra.mxu0 0.0
  %2190 = vmatprep.subr.mxu0 0.0
  %2191 = vmatpush1.msra.mxu0 0.0
  %2192 = vmatprep.subr.mxu0 0.0
  %2193 = vmatpush1.msra.mxu0 0.0
  %2194 = vmatprep.subr.mxu0 0.0
  %2195 = vmatpush1.msra.mxu0 0.0
  %2196 = vmatprep.mubr.f32.mxu0 0.0
  %2197 = vmatmul.mubr.f32.gmra.mrb[0].mxu0 %v2127
  %v2198 = vpop.f32.mrb[0].mxu0
  %v2199 = vadd.f32 0.0, %v2198
  %v2200 = vpop.f32.mrb[0].mxu0
  %2201 = vmatprep.mubr.f32.mxu0 0.0
  %2202 = vmatmul.mubr.f32.gmra.mrb[0].mxu0 %v2130
  %v2203 = vpop.f32.mrb[0].mxu0
  %v2204 = vadd.f32 0.0, %v2203
  %v2205 = vpop.f32.mrb[0].mxu0
  %2206 = vdwg.mxu0
  %2209 = vrot.lane.b32.xlu0 %v1799, 16
  %v2210 = vpop.permute.xlu0 %2209
  %2211 = vrot.lane.b32.xlu0 %v1804, 16
  %v2212 = vpop.permute.xlu0 %2211
  %2217 = vrot.lane.b32.xlu0 %v1999, 32
  %v2218 = vpop.permute.xlu0 %2217
  %2219 = vrot.lane.b32.xlu0 %v2004, 32
  %v2220 = vpop.permute.xlu0 %2219
  %2225 = vrot.lane.b32.xlu0 %v2199, 48
  %v2226 = vpop.permute.xlu0 %2225
  %2227 = vrot.lane.b32.xlu0 %v2204, 48
  %v2228 = vpop.permute.xlu0 %2227
  %v2231 = vsel %vm64, %v1597, %v2210
  %v2232 = vsel %vm64, %v1602, %v2212
  %v2233 = vsel %vm883, %v2231, %v2218
  %v2234 = vsel %vm883, %v2232, %v2220
  %v2235 = vsel %vm886, %v2233, %v2226
  %v2236 = vsel %vm886, %v2234, %v2228
  %v2237 = vsub.f32 %v1411, %v2235
  %v2238 = vsub.f32 %v1412, %v2236
  %v2239 = vadd.f32 %v1406, %v894
  %v2240 = vadd.f32 %v1407, %v894
  %v2242 = vsel %vm897, %v2237, 0
  %v2245 = vsel %vm897, %v2238, 0
  %2247 = vmatprep.subr.mxu0 0.0
  %2248 = vmatpush1.msra.mxu0 %v22
  %2249 = vmatprep.subr.mxu0 0.0
  %2250 = vmatpush1.msra.mxu0 %v23
  %2251 = vmatprep.subr.mxu0 0.0
  %2252 = vmatpush1.msra.mxu0 %v24
  %2253 = vmatprep.subr.mxu0 0.0
  %2254 = vmatpush1.msra.mxu0 %v25
  %2255 = vmatprep.subr.mxu0 0.0
  %2256 = vmatpush1.msra.mxu0 %v26
  %2257 = vmatprep.subr.mxu0 0.0
  %2258 = vmatpush1.msra.mxu0 %v27
  %2259 = vmatprep.subr.mxu0 0.0
  %2260 = vmatpush1.msra.mxu0 %v28
  %2261 = vmatprep.subr.mxu0 0.0
  %2262 = vmatpush1.msra.mxu0 %v29
  %2263 = vmatprep.subr.mxu0 0.0
  %2264 = vmatpush1.msra.mxu0 0.0
  %2265 = vmatprep.subr.mxu0 0.0
  %2266 = vmatpush1.msra.mxu0 0.0
  %2267 = vmatprep.subr.mxu0 0.0
  %2268 = vmatpush1.msra.mxu0 0.0
  %2269 = vmatprep.subr.mxu0 0.0
  %2270 = vmatpush1.msra.mxu0 0.0
  %2271 = vmatprep.subr.mxu0 0.0
  %2272 = vmatpush1.msra.mxu0 0.0
  %2273 = vmatprep.subr.mxu0 0.0
  %2274 = vmatpush1.msra.mxu0 0.0
  %2275 = vmatprep.subr.mxu0 0.0
  %2276 = vmatpush1.msra.mxu0 0.0
  %2277 = vmatprep.subr.mxu0 0.0
  %2278 = vmatpush1.msra.mxu0 0.0
  %2279 = vmatprep.subr.mxu0 0.0
  %2280 = vmatpush1.msra.mxu0 0.0
  %2281 = vmatprep.subr.mxu0 0.0
  %2282 = vmatpush1.msra.mxu0 0.0
  %2283 = vmatprep.subr.mxu0 0.0
  %2284 = vmatpush1.msra.mxu0 0.0
  %2285 = vmatprep.subr.mxu0 0.0
  %2286 = vmatpush1.msra.mxu0 0.0
  %2287 = vmatprep.subr.mxu0 0.0
  %2288 = vmatpush1.msra.mxu0 0.0
  %2289 = vmatprep.subr.mxu0 0.0
  %2290 = vmatpush1.msra.mxu0 0.0
  %2291 = vmatprep.subr.mxu0 0.0
  %2292 = vmatpush1.msra.mxu0 0.0
  %2293 = vmatprep.subr.mxu0 0.0
  %2294 = vmatpush1.msra.mxu0 0.0
  %2295 = vmatprep.subr.mxu0 0.0
  %2296 = vmatpush1.msra.mxu0 0.0
  %2297 = vmatprep.subr.mxu0 0.0
  %2298 = vmatpush1.msra.mxu0 0.0
  %2299 = vmatprep.subr.mxu0 0.0
  %2300 = vmatpush1.msra.mxu0 0.0
  %2301 = vmatprep.subr.mxu0 0.0
  %2302 = vmatpush1.msra.mxu0 0.0
  %2303 = vmatprep.subr.mxu0 0.0
  %2304 = vmatpush1.msra.mxu0 0.0
  %2305 = vmatprep.subr.mxu0 0.0
  %2306 = vmatpush1.msra.mxu0 0.0
  %2307 = vmatprep.subr.mxu0 0.0
  %2308 = vmatpush1.msra.mxu0 0.0
  %2309 = vmatprep.subr.mxu0 0.0
  %2310 = vmatpush1.msra.mxu0 0.0
  %2311 = vmatprep.mubr.f32.mxu0 0.0
  %2312 = vmatmul.mubr.f32.gmra.mrb[0].mxu0 %v2242
  %v2313 = vpop.f32.mrb[0].mxu0
  %v2314 = vadd.f32 %v2239, %v2313
  %v2315 = vpop.f32.mrb[0].mxu0
  %2316 = vmatprep.mubr.f32.mxu0 0.0
  %2317 = vmatmul.mubr.f32.gmra.mrb[0].mxu0 %v2245
  %v2318 = vpop.f32.mrb[0].mxu0
  %v2319 = vadd.f32 %v2240, %v2318
  %v2320 = vpop.f32.mrb[0].mxu0
  %2321 = vdwg.mxu0
  %v2323 = vsel %vm64, %v2314, 0
  %v2326 = vsel %vm64, %v2319, 0
  %2328 = vmatprep.subr.mxu0 %v32
  %2329 = vmatpush1.msra.mxu0 %v31
  %2330 = vmatprep.subr.mxu0 %v34
  %2331 = vmatpush1.msra.mxu0 %v33
  %2332 = vmatprep.subr.mxu0 0.0
  %2333 = vmatpush1.msra.mxu0 0.0
  %2334 = vmatprep.subr.mxu0 0.0
  %2335 = vmatpush1.msra.mxu0 0.0
  %2336 = vmatprep.subr.mxu0 0.0
  %2337 = vmatpush1.msra.mxu0 0.0
  %2338 = vmatprep.subr.mxu0 0.0
  %2339 = vmatpush1.msra.mxu0 0.0
  %2340 = vmatprep.subr.mxu0 0.0
  %2341 = vmatpush1.msra.mxu0 0.0
  %2342 = vmatprep.subr.mxu0 0.0
  %2343 = vmatpush1.msra.mxu0 0.0
  %2344 = vmatprep.subr.mxu0 0.0
  %2345 = vmatpush1.msra.mxu0 0.0
  %2346 = vmatprep.subr.mxu0 0.0
  %2347 = vmatpush1.msra.mxu0 0.0
  %2348 = vmatprep.subr.mxu0 0.0
  %2349 = vmatpush1.msra.mxu0 0.0
  %2350 = vmatprep.subr.mxu0 0.0
  %2351 = vmatpush1.msra.mxu0 0.0
  %2352 = vmatprep.subr.mxu0 0.0
  %2353 = vmatpush1.msra.mxu0 0.0
  %2354 = vmatprep.subr.mxu0 0.0
  %2355 = vmatpush1.msra.mxu0 0.0
  %2356 = vmatprep.subr.mxu0 0.0
  %2357 = vmatpush1.msra.mxu0 0.0
  %2358 = vmatprep.subr.mxu0 0.0
  %2359 = vmatpush1.msra.mxu0 0.0
  %2360 = vmatprep.subr.mxu0 0.0
  %2361 = vmatpush1.msra.mxu0 0.0
  %2362 = vmatprep.subr.mxu0 0.0
  %2363 = vmatpush1.msra.mxu0 0.0
  %2364 = vmatprep.subr.mxu0 0.0
  %2365 = vmatpush1.msra.mxu0 0.0
  %2366 = vmatprep.subr.mxu0 0.0
  %2367 = vmatpush1.msra.mxu0 0.0
  %2368 = vmatprep.subr.mxu0 0.0
  %2369 = vmatpush1.msra.mxu0 0.0
  %2370 = vmatprep.subr.mxu0 0.0
  %2371 = vmatpush1.msra.mxu0 0.0
  %2372 = vmatprep.subr.mxu0 0.0
  %2373 = vmatpush1.msra.mxu0 0.0
  %2374 = vmatprep.subr.mxu0 0.0
  %2375 = vmatpush1.msra.mxu0 0.0
  %2376 = vmatprep.subr.mxu0 0.0
  %2377 = vmatpush1.msra.mxu0 0.0
  %2378 = vmatprep.subr.mxu0 0.0
  %2379 = vmatpush1.msra.mxu0 0.0
  %2380 = vmatprep.subr.mxu0 0.0
  %2381 = vmatpush1.msra.mxu0 0.0
  %2382 = vmatprep.subr.mxu0 0.0
  %2383 = vmatpush1.msra.mxu0 0.0
  %2384 = vmatprep.subr.mxu0 0.0
  %2385 = vmatpush1.msra.mxu0 0.0
  %2386 = vmatprep.subr.mxu0 0.0
  %2387 = vmatpush1.msra.mxu0 0.0
  %2388 = vmatprep.subr.mxu0 0.0
  %2389 = vmatpush1.msra.mxu0 0.0
  %2390 = vmatprep.subr.mxu0 0.0
  %2391 = vmatpush1.msra.mxu0 0.0
  %2392 = vmatprep.mubr.f32.mxu0 0.0
  %2393 = vmatmul.mubr.f32.gmra.mrb[0].mxu0 %v2323
  %v2394 = vpop.f32.mrb[0].mxu0
  %v2395 = vadd.f32 0.0, %v2394
  %v2396 = vpop.f32.mrb[0].mxu0
  %v2397 = vadd.f32 0.0, %v2396
  %2398 = vmatprep.mubr.f32.mxu0 0.0
  %2399 = vmatmul.mubr.f32.gmra.mrb[0].mxu0 %v2326
  %v2400 = vpop.f32.mrb[0].mxu0
  %v2401 = vadd.f32 0.0, %v2400
  %v2402 = vpop.f32.mrb[0].mxu0
  %v2403 = vadd.f32 0.0, %v2402
  %2404 = vdwg.mxu0
  %v2405 = vmul.f32 %v35, %v2395
  %v2406 = vmul.f32 %v36, %v2397
  %v2407 = vmul.f32 %v37, %v2401
  %v2408 = vmul.f32 %v38, %v2403
  %v2409 = vadd.f32 %v2405, %v2407
  %v2410 = vrot.slane %v2409, 4
  %v2411 = vadd.f32 %v2409, %v2410
  %v2412 = vrot.slane %v2411, 2
  %v2413 = vadd.f32 %v2411, %v2412
  %v2414 = vrot.slane %v2413, 1
  %v2415 = vadd.f32 %v2413, %v2414
  %v2416 = vadd.f32 %v2406, %v2408
  %v2417 = vrot.slane %v2416, 4
  %v2418 = vadd.f32 %v2416, %v2417
  %v2419 = vrot.slane %v2418, 2
  %v2420 = vadd.f32 %v2418, %v2419
  %v2421 = vrot.slane %v2420, 1
  %v2422 = vadd.f32 %v2420, %v2421
  %2423 = vrot.lane.b32.xlu0 %v2314, 112
  %v2424 = vpop.permute.xlu0 %2423
  %2425 = vrot.lane.b32.xlu0 %v2319, 112
  %v2426 = vpop.permute.xlu0 %2425
  %v2427 = vsel %vm64, %v2424, 0
  %v2429 = vsel %vm64, %v2426, 0
  %2431 = vmatprep.subr.mxu0 %v32
  %2432 = vmatpush1.msra.mxu0 %v31
  %2433 = vmatprep.subr.mxu0 %v34
  %2434 = vmatpush1.msra.mxu0 %v33
  %2435 = vmatprep.subr.mxu0 0.0
  %2436 = vmatpush1.msra.mxu0 0.0
  %2437 = vmatprep.subr.mxu0 0.0
  %2438 = vmatpush1.msra.mxu0 0.0
  %2439 = vmatprep.subr.mxu0 0.0
  %2440 = vmatpush1.msra.mxu0 0.0
  %2441 = vmatprep.subr.mxu0 0.0
  %2442 = vmatpush1.msra.mxu0 0.0
  %2443 = vmatprep.subr.mxu0 0.0
  %2444 = vmatpush1.msra.mxu0 0.0
  %2445 = vmatprep.subr.mxu0 0.0
  %2446 = vmatpush1.msra.mxu0 0.0
  %2447 = vmatprep.subr.mxu0 0.0
  %2448 = vmatpush1.msra.mxu0 0.0
  %2449 = vmatprep.subr.mxu0 0.0
  %2450 = vmatpush1.msra.mxu0 0.0
  %2451 = vmatprep.subr.mxu0 0.0
  %2452 = vmatpush1.msra.mxu0 0.0
  %2453 = vmatprep.subr.mxu0 0.0
  %2454 = vmatpush1.msra.mxu0 0.0
  %2455 = vmatprep.subr.mxu0 0.0
  %2456 = vmatpush1.msra.mxu0 0.0
  %2457 = vmatprep.subr.mxu0 0.0
  %2458 = vmatpush1.msra.mxu0 0.0
  %2459 = vmatprep.subr.mxu0 0.0
  %2460 = vmatpush1.msra.mxu0 0.0
  %2461 = vmatprep.subr.mxu0 0.0
  %2462 = vmatpush1.msra.mxu0 0.0
  %2463 = vmatprep.subr.mxu0 0.0
  %2464 = vmatpush1.msra.mxu0 0.0
  %2465 = vmatprep.subr.mxu0 0.0
  %2466 = vmatpush1.msra.mxu0 0.0
  %2467 = vmatprep.subr.mxu0 0.0
  %2468 = vmatpush1.msra.mxu0 0.0
  %2469 = vmatprep.subr.mxu0 0.0
  %2470 = vmatpush1.msra.mxu0 0.0
  %2471 = vmatprep.subr.mxu0 0.0
  %2472 = vmatpush1.msra.mxu0 0.0
  %2473 = vmatprep.subr.mxu0 0.0
  %2474 = vmatpush1.msra.mxu0 0.0
  %2475 = vmatprep.subr.mxu0 0.0
  %2476 = vmatpush1.msra.mxu0 0.0
  %2477 = vmatprep.subr.mxu0 0.0
  %2478 = vmatpush1.msra.mxu0 0.0
  %2479 = vmatprep.subr.mxu0 0.0
  %2480 = vmatpush1.msra.mxu0 0.0
  %2481 = vmatprep.subr.mxu0 0.0
  %2482 = vmatpush1.msra.mxu0 0.0
  %2483 = vmatprep.subr.mxu0 0.0
  %2484 = vmatpush1.msra.mxu0 0.0
  %2485 = vmatprep.subr.mxu0 0.0
  %2486 = vmatpush1.msra.mxu0 0.0
  %2487 = vmatprep.subr.mxu0 0.0
  %2488 = vmatpush1.msra.mxu0 0.0
  %2489 = vmatprep.subr.mxu0 0.0
  %2490 = vmatpush1.msra.mxu0 0.0
  %2491 = vmatprep.subr.mxu0 0.0
  %2492 = vmatpush1.msra.mxu0 0.0
  %2493 = vmatprep.subr.mxu0 0.0
  %2494 = vmatpush1.msra.mxu0 0.0
  %2495 = vmatprep.mubr.f32.mxu0 0.0
  %2496 = vmatmul.mubr.f32.gmra.mrb[0].mxu0 %v2427
  %v2497 = vpop.f32.mrb[0].mxu0
  %v2498 = vadd.f32 0.0, %v2497
  %v2499 = vpop.f32.mrb[0].mxu0
  %v2500 = vadd.f32 0.0, %v2499
  %2501 = vmatprep.mubr.f32.mxu0 0.0
  %2502 = vmatmul.mubr.f32.gmra.mrb[0].mxu0 %v2429
  %v2503 = vpop.f32.mrb[0].mxu0
  %v2504 = vadd.f32 0.0, %v2503
  %v2505 = vpop.f32.mrb[0].mxu0
  %v2506 = vadd.f32 0.0, %v2505
  %2507 = vdwg.mxu0
  %v2508 = vmul.f32 %v35, %v2498
  %v2509 = vmul.f32 %v36, %v2500
  %v2510 = vmul.f32 %v37, %v2504
  %v2511 = vmul.f32 %v38, %v2506
  %v2512 = vadd.f32 %v2508, %v2510
  %v2513 = vrot.slane %v2512, 4
  %v2514 = vadd.f32 %v2512, %v2513
  %v2515 = vrot.slane %v2514, 2
  %v2516 = vadd.f32 %v2514, %v2515
  %v2517 = vrot.slane %v2516, 1
  %v2518 = vadd.f32 %v2516, %v2517
  %v2519 = vadd.f32 %v2509, %v2511
  %v2520 = vrot.slane %v2519, 4
  %v2521 = vadd.f32 %v2519, %v2520
  %v2522 = vrot.slane %v2521, 2
  %v2523 = vadd.f32 %v2521, %v2522
  %v2524 = vrot.slane %v2523, 1
  %v2525 = vadd.f32 %v2523, %v2524
  %2526 = vrot.lane.b32.xlu0 %v2314, 96
  %v2527 = vpop.permute.xlu0 %2526
  %2528 = vrot.lane.b32.xlu0 %v2319, 96
  %v2529 = vpop.permute.xlu0 %2528
  %v2530 = vsel %vm64, %v2527, 0
  %v2532 = vsel %vm64, %v2529, 0
  %2534 = vmatprep.subr.mxu0 %v32
  %2535 = vmatpush1.msra.mxu0 %v31
  %2536 = vmatprep.subr.mxu0 %v34
  %2537 = vmatpush1.msra.mxu0 %v33
  %2538 = vmatprep.subr.mxu0 0.0
  %2539 = vmatpush1.msra.mxu0 0.0
  %2540 = vmatprep.subr.mxu0 0.0
  %2541 = vmatpush1.msra.mxu0 0.0
  %2542 = vmatprep.subr.mxu0 0.0
  %2543 = vmatpush1.msra.mxu0 0.0
  %2544 = vmatprep.subr.mxu0 0.0
  %2545 = vmatpush1.msra.mxu0 0.0
  %2546 = vmatprep.subr.mxu0 0.0
  %2547 = vmatpush1.msra.mxu0 0.0
  %2548 = vmatprep.subr.mxu0 0.0
  %2549 = vmatpush1.msra.mxu0 0.0
  %2550 = vmatprep.subr.mxu0 0.0
  %2551 = vmatpush1.msra.mxu0 0.0
  %2552 = vmatprep.subr.mxu0 0.0
  %2553 = vmatpush1.msra.mxu0 0.0
  %2554 = vmatprep.subr.mxu0 0.0
  %2555 = vmatpush1.msra.mxu0 0.0
  %2556 = vmatprep.subr.mxu0 0.0
  %2557 = vmatpush1.msra.mxu0 0.0
  %2558 = vmatprep.subr.mxu0 0.0
  %2559 = vmatpush1.msra.mxu0 0.0
  %2560 = vmatprep.subr.mxu0 0.0
  %2561 = vmatpush1.msra.mxu0 0.0
  %2562 = vmatprep.subr.mxu0 0.0
  %2563 = vmatpush1.msra.mxu0 0.0
  %2564 = vmatprep.subr.mxu0 0.0
  %2565 = vmatpush1.msra.mxu0 0.0
  %2566 = vmatprep.subr.mxu0 0.0
  %2567 = vmatpush1.msra.mxu0 0.0
  %2568 = vmatprep.subr.mxu0 0.0
  %2569 = vmatpush1.msra.mxu0 0.0
  %2570 = vmatprep.subr.mxu0 0.0
  %2571 = vmatpush1.msra.mxu0 0.0
  %2572 = vmatprep.subr.mxu0 0.0
  %2573 = vmatpush1.msra.mxu0 0.0
  %2574 = vmatprep.subr.mxu0 0.0
  %2575 = vmatpush1.msra.mxu0 0.0
  %2576 = vmatprep.subr.mxu0 0.0
  %2577 = vmatpush1.msra.mxu0 0.0
  %2578 = vmatprep.subr.mxu0 0.0
  %2579 = vmatpush1.msra.mxu0 0.0
  %2580 = vmatprep.subr.mxu0 0.0
  %2581 = vmatpush1.msra.mxu0 0.0
  %2582 = vmatprep.subr.mxu0 0.0
  %2583 = vmatpush1.msra.mxu0 0.0
  %2584 = vmatprep.subr.mxu0 0.0
  %2585 = vmatpush1.msra.mxu0 0.0
  %2586 = vmatprep.subr.mxu0 0.0
  %2587 = vmatpush1.msra.mxu0 0.0
  %2588 = vmatprep.subr.mxu0 0.0
  %2589 = vmatpush1.msra.mxu0 0.0
  %2590 = vmatprep.subr.mxu0 0.0
  %2591 = vmatpush1.msra.mxu0 0.0
  %2592 = vmatprep.subr.mxu0 0.0
  %2593 = vmatpush1.msra.mxu0 0.0
  %2594 = vmatprep.subr.mxu0 0.0
  %2595 = vmatpush1.msra.mxu0 0.0
  %2596 = vmatprep.subr.mxu0 0.0
  %2597 = vmatpush1.msra.mxu0 0.0
  %2598 = vmatprep.mubr.f32.mxu0 0.0
  %2599 = vmatmul.mubr.f32.gmra.mrb[0].mxu0 %v2530
  %v2600 = vpop.f32.mrb[0].mxu0
  %v2601 = vadd.f32 0.0, %v2600
  %v2602 = vpop.f32.mrb[0].mxu0
  %v2603 = vadd.f32 0.0, %v2602
  %2604 = vmatprep.mubr.f32.mxu0 0.0
  %2605 = vmatmul.mubr.f32.gmra.mrb[0].mxu0 %v2532
  %v2606 = vpop.f32.mrb[0].mxu0
  %v2607 = vadd.f32 0.0, %v2606
  %v2608 = vpop.f32.mrb[0].mxu0
  %v2609 = vadd.f32 0.0, %v2608
  %2610 = vdwg.mxu0
  %v2611 = vmul.f32 %v35, %v2601
  %v2612 = vmul.f32 %v36, %v2603
  %v2613 = vmul.f32 %v37, %v2607
  %v2614 = vmul.f32 %v38, %v2609
  %v2615 = vadd.f32 %v2611, %v2613
  %v2616 = vrot.slane %v2615, 4
  %v2617 = vadd.f32 %v2615, %v2616
  %v2618 = vrot.slane %v2617, 2
  %v2619 = vadd.f32 %v2617, %v2618
  %v2620 = vrot.slane %v2619, 1
  %v2621 = vadd.f32 %v2619, %v2620
  %v2622 = vadd.f32 %v2612, %v2614
  %v2623 = vrot.slane %v2622, 4
  %v2624 = vadd.f32 %v2622, %v2623
  %v2625 = vrot.slane %v2624, 2
  %v2626 = vadd.f32 %v2624, %v2625
  %v2627 = vrot.slane %v2626, 1
  %v2628 = vadd.f32 %v2626, %v2627
  %2629 = vrot.lane.b32.xlu0 %v2314, 80
  %v2630 = vpop.permute.xlu0 %2629
  %2631 = vrot.lane.b32.xlu0 %v2319, 80
  %v2632 = vpop.permute.xlu0 %2631
  %v2633 = vsel %vm64, %v2630, 0
  %v2635 = vsel %vm64, %v2632, 0
  %2637 = vmatprep.subr.mxu0 %v32
  %2638 = vmatpush1.msra.mxu0 %v31
  %2639 = vmatprep.subr.mxu0 %v34
  %2640 = vmatpush1.msra.mxu0 %v33
  %2641 = vmatprep.subr.mxu0 0.0
  %2642 = vmatpush1.msra.mxu0 0.0
  %2643 = vmatprep.subr.mxu0 0.0
  %2644 = vmatpush1.msra.mxu0 0.0
  %2645 = vmatprep.subr.mxu0 0.0
  %2646 = vmatpush1.msra.mxu0 0.0
  %2647 = vmatprep.subr.mxu0 0.0
  %2648 = vmatpush1.msra.mxu0 0.0
  %2649 = vmatprep.subr.mxu0 0.0
  %2650 = vmatpush1.msra.mxu0 0.0
  %2651 = vmatprep.subr.mxu0 0.0
  %2652 = vmatpush1.msra.mxu0 0.0
  %2653 = vmatprep.subr.mxu0 0.0
  %2654 = vmatpush1.msra.mxu0 0.0
  %2655 = vmatprep.subr.mxu0 0.0
  %2656 = vmatpush1.msra.mxu0 0.0
  %2657 = vmatprep.subr.mxu0 0.0
  %2658 = vmatpush1.msra.mxu0 0.0
  %2659 = vmatprep.subr.mxu0 0.0
  %2660 = vmatpush1.msra.mxu0 0.0
  %2661 = vmatprep.subr.mxu0 0.0
  %2662 = vmatpush1.msra.mxu0 0.0
  %2663 = vmatprep.subr.mxu0 0.0
  %2664 = vmatpush1.msra.mxu0 0.0
  %2665 = vmatprep.subr.mxu0 0.0
  %2666 = vmatpush1.msra.mxu0 0.0
  %2667 = vmatprep.subr.mxu0 0.0
  %2668 = vmatpush1.msra.mxu0 0.0
  %2669 = vmatprep.subr.mxu0 0.0
  %2670 = vmatpush1.msra.mxu0 0.0
  %2671 = vmatprep.subr.mxu0 0.0
  %2672 = vmatpush1.msra.mxu0 0.0
  %2673 = vmatprep.subr.mxu0 0.0
  %2674 = vmatpush1.msra.mxu0 0.0
  %2675 = vmatprep.subr.mxu0 0.0
  %2676 = vmatpush1.msra.mxu0 0.0
  %2677 = vmatprep.subr.mxu0 0.0
  %2678 = vmatpush1.msra.mxu0 0.0
  %2679 = vmatprep.subr.mxu0 0.0
  %2680 = vmatpush1.msra.mxu0 0.0
  %2681 = vmatprep.subr.mxu0 0.0
  %2682 = vmatpush1.msra.mxu0 0.0
  %2683 = vmatprep.subr.mxu0 0.0
  %2684 = vmatpush1.msra.mxu0 0.0
  %2685 = vmatprep.subr.mxu0 0.0
  %2686 = vmatpush1.msra.mxu0 0.0
  %2687 = vmatprep.subr.mxu0 0.0
  %2688 = vmatpush1.msra.mxu0 0.0
  %2689 = vmatprep.subr.mxu0 0.0
  %2690 = vmatpush1.msra.mxu0 0.0
  %2691 = vmatprep.subr.mxu0 0.0
  %2692 = vmatpush1.msra.mxu0 0.0
  %2693 = vmatprep.subr.mxu0 0.0
  %2694 = vmatpush1.msra.mxu0 0.0
  %2695 = vmatprep.subr.mxu0 0.0
  %2696 = vmatpush1.msra.mxu0 0.0
  %2697 = vmatprep.subr.mxu0 0.0
  %2698 = vmatpush1.msra.mxu0 0.0
  %2699 = vmatprep.subr.mxu0 0.0
  %2700 = vmatpush1.msra.mxu0 0.0
  %2701 = vmatprep.mubr.f32.mxu0 0.0
  %2702 = vmatmul.mubr.f32.gmra.mrb[0].mxu0 %v2633
  %v2703 = vpop.f32.mrb[0].mxu0
  %v2704 = vadd.f32 0.0, %v2703
  %v2705 = vpop.f32.mrb[0].mxu0
  %v2706 = vadd.f32 0.0, %v2705
  %2707 = vmatprep.mubr.f32.mxu0 0.0
  %2708 = vmatmul.mubr.f32.gmra.mrb[0].mxu0 %v2635
  %v2709 = vpop.f32.mrb[0].mxu0
  %v2710 = vadd.f32 0.0, %v2709
  %v2711 = vpop.f32.mrb[0].mxu0
  %v2712 = vadd.f32 0.0, %v2711
  %2713 = vdwg.mxu0
  %v2714 = vmul.f32 %v35, %v2704
  %v2715 = vmul.f32 %v36, %v2706
  %v2716 = vmul.f32 %v37, %v2710
  %v2717 = vmul.f32 %v38, %v2712
  %v2718 = vadd.f32 %v2714, %v2716
  %v2719 = vrot.slane %v2718, 4
  %v2720 = vadd.f32 %v2718, %v2719
  %v2721 = vrot.slane %v2720, 2
  %v2722 = vadd.f32 %v2720, %v2721
  %v2723 = vrot.slane %v2722, 1
  %v2724 = vadd.f32 %v2722, %v2723
  %v2725 = vadd.f32 %v2715, %v2717
  %v2726 = vrot.slane %v2725, 4
  %v2727 = vadd.f32 %v2725, %v2726
  %v2728 = vrot.slane %v2727, 2
  %v2729 = vadd.f32 %v2727, %v2728
  %v2730 = vrot.slane %v2729, 1
  %v2731 = vadd.f32 %v2729, %v2730
  %v2732 = vsel %vm1389, %v2415, %v2518
  %v2733 = vsel %vm1389, %v2422, %v2525
  %v2734 = vsel %vm1392, %v2732, %v2621
  %v2735 = vsel %vm1392, %v2733, %v2628
  %v2736 = vsel %vm1395, %v2734, %v2724
  %v2737 = vsel %vm1395, %v2735, %v2731
  %2739 = vrot.lane.b32.xlu0 %v2737, 17
  %v2740 = vpop.permute.xlu0 %2739
  %2745 = vrot.lane.b32.xlu0 %v1396, 17
  %v2746 = vpop.permute.xlu0 %2745
  %2747 = vrot.lane.b32.xlu0 %v1397, 17
  %v2748 = vpop.permute.xlu0 %2747
  %2749 = vrot.lane.b32.xlu0 %v2736, 17
  %v2750 = vpop.permute.xlu0 %2749
  %vm2751 = vcmask 138240
  %v2752 = vsel %vm2751, %v2746, %v2748
  %v2753 = vsel %vm2751, %v2748, %v2750
  %v2754 = vsel %vm2751, %v2750, %v2740
  %v2759 = vsel %vm2751, %v2740, %v2746
  %v2760 = vlaneseq
  %v2761 = vshrl.u32 %v2760, 7
  %v2762 = vsub.s32 0, %v2761
  %v2763 = vrot.slane %v39, %v2762
  %v2764 = vlaneseq
  %v2765 = vshrl.u32 %v2764, 7
  %v2766 = vsub.s32 0, %v2765
  %v2767 = vrot.slane %v40, %v2766
  %v2768 = vlaneseq
  %v2769 = vshrl.u32 %v2768, 7
  %v2770 = vsub.s32 0, %v2769
  %v2771 = vrot.slane %v41, %v2770
  %v2772 = vlaneseq
  %v2773 = vshrl.u32 %v2772, 7
  %v2774 = vsub.s32 0, %v2773
  %v2775 = vrot.slane %v42, %v2774
  %v2776 = vmul.f32 %v2759, %v2763
  %v2777 = vmul.f32 %v2752, %v2767
  %v2778 = vmul.f32 %v2753, %v2771
  %v2779 = vmul.f32 %v2754, %v2775
  %2780 = vrot.lane.b32.xlu0 %v2737, 16
  %v2781 = vpop.permute.xlu0 %2780
  %2783 = vrot.lane.b32.xlu0 %v1396, 16
  %v2784 = vpop.permute.xlu0 %2783
  %2785 = vrot.lane.b32.xlu0 %v1397, 16
  %v2786 = vpop.permute.xlu0 %2785
  %2787 = vrot.lane.b32.xlu0 %v2736, 16
  %v2788 = vpop.permute.xlu0 %2787
  %v2789 = vsel %vm64, %v2784, %v2786
  %v2790 = vsel %vm64, %v2786, %v2788
  %v2791 = vsel %vm64, %v2788, %v2781
  %v2796 = vsel %vm64, %v2781, %v2784
  %v2797 = vlaneseq
  %v2798 = vshrl.u32 %v2797, 7
  %v2799 = vsub.s32 1, %v2798
  %v2800 = vrot.slane %v39, %v2799
  %v2801 = vlaneseq
  %v2802 = vshrl.u32 %v2801, 7
  %v2803 = vsub.s32 1, %v2802
  %v2804 = vrot.slane %v40, %v2803
  %v2805 = vlaneseq
  %v2806 = vshrl.u32 %v2805, 7
  %v2807 = vsub.s32 1, %v2806
  %v2808 = vrot.slane %v41, %v2807
  %v2809 = vlaneseq
  %v2810 = vshrl.u32 %v2809, 7
  %v2811 = vsub.s32 1, %v2810
  %v2812 = vrot.slane %v42, %v2811
  %v2813 = vmul.f32 %v2796, %v2800
  %v2814 = vmul.f32 %v2789, %v2804
  %v2815 = vmul.f32 %v2790, %v2808
  %v2816 = vmul.f32 %v2791, %v2812
  %2817 = vrot.lane.b32.xlu0 %v2737, 15
  %v2818 = vpop.permute.xlu0 %2817
  %2820 = vrot.lane.b32.xlu0 %v1396, 15
  %v2821 = vpop.permute.xlu0 %2820
  %2822 = vrot.lane.b32.xlu0 %v1397, 15
  %v2823 = vpop.permute.xlu0 %2822
  %2824 = vrot.lane.b32.xlu0 %v2736, 15
  %v2825 = vpop.permute.xlu0 %2824
  %vm2826 = vcmask 121856
  %v2827 = vsel %vm2826, %v2821, %v2823
  %v2828 = vsel %vm2826, %v2823, %v2825
  %v2829 = vsel %vm2826, %v2825, %v2818
  %v2834 = vsel %vm2826, %v2818, %v2821
  %v2835 = vlaneseq
  %v2836 = vshrl.u32 %v2835, 7
  %v2837 = vsub.s32 2, %v2836
  %v2838 = vrot.slane %v39, %v2837
  %v2839 = vlaneseq
  %v2840 = vshrl.u32 %v2839, 7
  %v2841 = vsub.s32 2, %v2840
  %v2842 = vrot.slane %v40, %v2841
  %v2843 = vlaneseq
  %v2844 = vshrl.u32 %v2843, 7
  %v2845 = vsub.s32 2, %v2844
  %v2846 = vrot.slane %v41, %v2845
  %v2847 = vlaneseq
  %v2848 = vshrl.u32 %v2847, 7
  %v2849 = vsub.s32 2, %v2848
  %v2850 = vrot.slane %v42, %v2849
  %v2851 = vmul.f32 %v2834, %v2838
  %v2852 = vmul.f32 %v2827, %v2842
  %v2853 = vmul.f32 %v2828, %v2846
  %v2854 = vmul.f32 %v2829, %v2850
  %2855 = vrot.lane.b32.xlu0 %v2737, 1
  %v2856 = vpop.permute.xlu0 %2855
  %2858 = vrot.lane.b32.xlu0 %v1396, 1
  %v2859 = vpop.permute.xlu0 %2858
  %2860 = vrot.lane.b32.xlu0 %v1397, 1
  %v2861 = vpop.permute.xlu0 %2860
  %2862 = vrot.lane.b32.xlu0 %v2736, 1
  %v2863 = vpop.permute.xlu0 %2862
  %vm2864 = vcmask 7168
  %v2865 = vsel %vm2864, %v2859, %v2861
  %v2866 = vsel %vm2864, %v2861, %v2863
  %v2867 = vsel %vm2864, %v2863, %v2856
  %v2872 = vsel %vm2864, %v2856, %v2859
  %v2873 = vlaneseq
  %v2874 = vshrl.u32 %v2873, 7
  %v2875 = vsub.s32 3, %v2874
  %v2876 = vrot.slane %v39, %v2875
  %v2877 = vlaneseq
  %v2878 = vshrl.u32 %v2877, 7
  %v2879 = vsub.s32 3, %v2878
  %v2880 = vrot.slane %v40, %v2879
  %v2881 = vlaneseq
  %v2882 = vshrl.u32 %v2881, 7
  %v2883 = vsub.s32 3, %v2882
  %v2884 = vrot.slane %v41, %v2883
  %v2885 = vlaneseq
  %v2886 = vshrl.u32 %v2885, 7
  %v2887 = vsub.s32 3, %v2886
  %v2888 = vrot.slane %v42, %v2887
  %v2889 = vmul.f32 %v2872, %v2876
  %v2890 = vmul.f32 %v2865, %v2880
  %v2891 = vmul.f32 %v2866, %v2884
  %v2892 = vmul.f32 %v2867, %v2888
  %v2893 = vlaneseq
  %v2894 = vshrl.u32 %v2893, 7
  %v2895 = vsub.s32 4, %v2894
  %v2896 = vrot.slane %v39, %v2895
  %v2897 = vlaneseq
  %v2898 = vshrl.u32 %v2897, 7
  %v2899 = vsub.s32 4, %v2898
  %v2900 = vrot.slane %v40, %v2899
  %v2901 = vlaneseq
  %v2902 = vshrl.u32 %v2901, 7
  %v2903 = vsub.s32 4, %v2902
  %v2904 = vrot.slane %v41, %v2903
  %v2905 = vlaneseq
  %v2906 = vshrl.u32 %v2905, 7
  %v2907 = vsub.s32 4, %v2906
  %v2908 = vrot.slane %v42, %v2907
  %v2909 = vmul.f32 %v1396, %v2896
  %v2910 = vmul.f32 %v1397, %v2900
  %v2911 = vmul.f32 %v2736, %v2904
  %v2912 = vmul.f32 %v2737, %v2908
  %2913 = vrot.lane.b32.xlu0 %v1396, 127
  %v2914 = vpop.permute.xlu0 %2913
  %2915 = vrot.lane.b32.xlu0 %v1397, 127
  %v2916 = vpop.permute.xlu0 %2915
  %2917 = vrot.lane.b32.xlu0 %v2736, 127
  %v2918 = vpop.permute.xlu0 %2917
  %2919 = vrot.lane.b32.xlu0 %v2737, 127
  %v2920 = vpop.permute.xlu0 %2919
  %vm2921 = vcmask 1039360
  %v2922 = vsel %vm2921, %v2914, %v2916
  %v2923 = vsel %vm2921, %v2916, %v2918
  %v2924 = vsel %vm2921, %v2918, %v2920
  %v2930 = vsel %vm2921, %v2920, %v2914
  %v2931 = vlaneseq
  %v2932 = vshrl.u32 %v2931, 7
  %v2933 = vsub.s32 5, %v2932
  %v2934 = vrot.slane %v39, %v2933
  %v2935 = vlaneseq
  %v2936 = vshrl.u32 %v2935, 7
  %v2937 = vsub.s32 5, %v2936
  %v2938 = vrot.slane %v40, %v2937
  %v2939 = vlaneseq
  %v2940 = vshrl.u32 %v2939, 7
  %v2941 = vsub.s32 5, %v2940
  %v2942 = vrot.slane %v41, %v2941
  %v2943 = vlaneseq
  %v2944 = vshrl.u32 %v2943, 7
  %v2945 = vsub.s32 5, %v2944
  %v2946 = vrot.slane %v42, %v2945
  %v2947 = vmul.f32 %v2922, %v2934
  %v2948 = vmul.f32 %v2923, %v2938
  %v2949 = vmul.f32 %v2924, %v2942
  %v2950 = vmul.f32 %v2930, %v2946
  %2951 = vrot.lane.b32.xlu0 %v1396, 113
  %v2952 = vpop.permute.xlu0 %2951
  %2953 = vrot.lane.b32.xlu0 %v1397, 113
  %v2954 = vpop.permute.xlu0 %2953
  %2955 = vrot.lane.b32.xlu0 %v2736, 113
  %v2956 = vpop.permute.xlu0 %2955
  %2957 = vrot.lane.b32.xlu0 %v2737, 113
  %v2958 = vpop.permute.xlu0 %2957
  %vm2959 = vcmask 924672
  %v2960 = vsel %vm2959, %v2952, %v2954
  %v2961 = vsel %vm2959, %v2954, %v2956
  %v2962 = vsel %vm2959, %v2956, %v2958
  %v2968 = vsel %vm2959, %v2958, %v2952
  %v2969 = vlaneseq
  %v2970 = vshrl.u32 %v2969, 7
  %v2971 = vsub.s32 6, %v2970
  %v2972 = vrot.slane %v39, %v2971
  %v2973 = vlaneseq
  %v2974 = vshrl.u32 %v2973, 7
  %v2975 = vsub.s32 6, %v2974
  %v2976 = vrot.slane %v40, %v2975
  %v2977 = vlaneseq
  %v2978 = vshrl.u32 %v2977, 7
  %v2979 = vsub.s32 6, %v2978
  %v2980 = vrot.slane %v41, %v2979
  %v2981 = vlaneseq
  %v2982 = vshrl.u32 %v2981, 7
  %v2983 = vsub.s32 6, %v2982
  %v2984 = vrot.slane %v42, %v2983
  %v2985 = vmul.f32 %v2960, %v2972
  %v2986 = vmul.f32 %v2961, %v2976
  %v2987 = vmul.f32 %v2962, %v2980
  %v2988 = vmul.f32 %v2968, %v2984
  %2989 = vrot.lane.b32.xlu0 %v1396, 112
  %v2990 = vpop.permute.xlu0 %2989
  %2991 = vrot.lane.b32.xlu0 %v1397, 112
  %v2992 = vpop.permute.xlu0 %2991
  %2993 = vrot.lane.b32.xlu0 %v2736, 112
  %v2994 = vpop.permute.xlu0 %2993
  %2995 = vrot.lane.b32.xlu0 %v2737, 112
  %v2996 = vpop.permute.xlu0 %2995
  %vm2997 = vcmask 916480
  %v2998 = vsel %vm2997, %v2990, %v2992
  %v2999 = vsel %vm2997, %v2992, %v2994
  %v3000 = vsel %vm2997, %v2994, %v2996
  %v3006 = vsel %vm2997, %v2996, %v2990
  %v3007 = vlaneseq
  %v3008 = vshrl.u32 %v3007, 7
  %v3009 = vsub.s32 7, %v3008
  %v3010 = vrot.slane %v39, %v3009
  %v3011 = vlaneseq
  %v3012 = vshrl.u32 %v3011, 7
  %v3013 = vsub.s32 7, %v3012
  %v3014 = vrot.slane %v40, %v3013
  %v3015 = vlaneseq
  %v3016 = vshrl.u32 %v3015, 7
  %v3017 = vsub.s32 7, %v3016
  %v3018 = vrot.slane %v41, %v3017
  %v3019 = vlaneseq
  %v3020 = vshrl.u32 %v3019, 7
  %v3021 = vsub.s32 7, %v3020
  %v3022 = vrot.slane %v42, %v3021
  %v3023 = vmul.f32 %v2998, %v3010
  %v3024 = vmul.f32 %v2999, %v3014
  %v3025 = vmul.f32 %v3000, %v3018
  %v3026 = vmul.f32 %v3006, %v3022
  %3027 = vrot.lane.b32.xlu0 %v1396, 111
  %v3028 = vpop.permute.xlu0 %3027
  %3029 = vrot.lane.b32.xlu0 %v1397, 111
  %v3030 = vpop.permute.xlu0 %3029
  %3031 = vrot.lane.b32.xlu0 %v2736, 111
  %v3032 = vpop.permute.xlu0 %3031
  %3033 = vrot.lane.b32.xlu0 %v2737, 111
  %v3034 = vpop.permute.xlu0 %3033
  %vm3035 = vcmask 908288
  %v3036 = vsel %vm3035, %v3028, %v3030
  %v3037 = vsel %vm3035, %v3030, %v3032
  %v3038 = vsel %vm3035, %v3032, %v3034
  %v3044 = vsel %vm3035, %v3034, %v3028
  %v3045 = vlaneseq
  %v3046 = vshrl.u32 %v3045, 7
  %v3047 = vsub.s32 0, %v3046
  %v3048 = vrot.slane %v43, %v3047
  %v3049 = vlaneseq
  %v3050 = vshrl.u32 %v3049, 7
  %v3051 = vsub.s32 0, %v3050
  %v3052 = vrot.slane %v44, %v3051
  %v3053 = vlaneseq
  %v3054 = vshrl.u32 %v3053, 7
  %v3055 = vsub.s32 0, %v3054
  %v3056 = vrot.slane %v45, %v3055
  %v3057 = vlaneseq
  %v3058 = vshrl.u32 %v3057, 7
  %v3059 = vsub.s32 0, %v3058
  %v3060 = vrot.slane %v46, %v3059
  %v3061 = vmul.f32 %v3036, %v3048
  %v3062 = vmul.f32 %v3037, %v3052
  %v3063 = vmul.f32 %v3038, %v3056
  %v3064 = vmul.f32 %v3044, %v3060
  %v3069 = vrot.slane %v2813, 4
  %v3070 = vrot.slane %v2814, 4
  %v3071 = vrot.slane %v2815, 4
  %v3072 = vrot.slane %v2816, 4
  %v3081 = vrot.slane %v2889, 4
  %v3082 = vrot.slane %v2890, 4
  %v3083 = vrot.slane %v2891, 4
  %v3084 = vrot.slane %v2892, 4
  %v3093 = vrot.slane %v2947, 4
  %v3094 = vrot.slane %v2948, 4
  %v3095 = vrot.slane %v2949, 4
  %v3096 = vrot.slane %v2950, 4
  %v3105 = vrot.slane %v3023, 4
  %v3106 = vrot.slane %v3024, 4
  %v3107 = vrot.slane %v3025, 4
  %v3108 = vrot.slane %v3026, 4
  %vm3113 = vcmask 1043456
  %v3114 = vsel %vm3113, %v2776, %v3069
  %v3115 = vsel %vm3113, %v2777, %v3070
  %v3116 = vsel %vm3113, %v2778, %v3071
  %v3117 = vsel %vm3113, %v2779, %v3072
  %v3118 = vsel %vm3113, %v2851, %v3081
  %v3119 = vsel %vm3113, %v2852, %v3082
  %v3120 = vsel %vm3113, %v2853, %v3083
  %v3121 = vsel %vm3113, %v2854, %v3084
  %v3122 = vsel %vm3113, %v2909, %v3093
  %v3123 = vsel %vm3113, %v2910, %v3094
  %v3124 = vsel %vm3113, %v2911, %v3095
  %v3125 = vsel %vm3113, %v2912, %v3096
  %v3126 = vsel %vm3113, %v2985, %v3105
  %v3127 = vsel %vm3113, %v2986, %v3106
  %v3128 = vsel %vm3113, %v2987, %v3107
  %v3129 = vsel %vm3113, %v2988, %v3108
  %3131 = vset.pattern.permute.xlu0 36
  %3132 = vperm.xlu0 %3131, %v47
  %v3133 = vpop.permute.xlu0 %3132
  %vm3135 = vcmask 293888
  %v3136 = vsel %vm3135, %v47, 0
  %v3139 = vsel %vm3113, %v3061, 0
  %v3142 = vsel %vm3113, %v3062, 0
  %v3145 = vsel %vm3113, %v3063, 0
  %v3148 = vsel %vm3113, %v3064, 0
  %3150 = vmatprep.subr.mxu0 %v3115
  %3151 = vmatpush1.msra.mxu0 %v3114
  %3152 = vmatprep.subr.mxu0 %v3119
  %3153 = vmatpush1.msra.mxu0 %v3118
  %3154 = vmatprep.subr.mxu0 %v3123
  %3155 = vmatpush1.msra.mxu0 %v3122
  %3156 = vmatprep.subr.mxu0 %v3127
  %3157 = vmatpush1.msra.mxu0 %v3126
  %3158 = vmatprep.subr.mxu0 %v3142
  %3159 = vmatpush1.msra.mxu0 %v3139
  %3160 = vmatprep.subr.mxu0 0.0
  %3161 = vmatpush1.msra.mxu0 0.0
  %3162 = vmatprep.subr.mxu0 0.0
  %3163 = vmatpush1.msra.mxu0 0.0
  %3164 = vmatprep.subr.mxu0 0.0
  %3165 = vmatpush1.msra.mxu0 0.0
  %3166 = vmatprep.subr.mxu0 0.0
  %3167 = vmatpush1.msra.mxu0 0.0
  %3168 = vmatprep.subr.mxu0 0.0
  %3169 = vmatpush1.msra.mxu0 0.0
  %3170 = vmatprep.subr.mxu0 0.0
  %3171 = vmatpush1.msra.mxu0 0.0
  %3172 = vmatprep.subr.mxu0 0.0
  %3173 = vmatpush1.msra.mxu0 0.0
  %3174 = vmatprep.subr.mxu0 0.0
  %3175 = vmatpush1.msra.mxu0 0.0
  %3176 = vmatprep.subr.mxu0 0.0
  %3177 = vmatpush1.msra.mxu0 0.0
  %3178 = vmatprep.subr.mxu0 0.0
  %3179 = vmatpush1.msra.mxu0 0.0
  %3180 = vmatprep.subr.mxu0 0.0
  %3181 = vmatpush1.msra.mxu0 0.0
  %3182 = vmatprep.subr.mxu0 0.0
  %3183 = vmatpush1.msra.mxu0 0.0
  %3184 = vmatprep.subr.mxu0 0.0
  %3185 = vmatpush1.msra.mxu0 0.0
  %3186 = vmatprep.subr.mxu0 0.0
  %3187 = vmatpush1.msra.mxu0 0.0
  %3188 = vmatprep.subr.mxu0 0.0
  %3189 = vmatpush1.msra.mxu0 0.0
  %3190 = vmatprep.subr.mxu0 0.0
  %3191 = vmatpush1.msra.mxu0 0.0
  %3192 = vmatprep.subr.mxu0 0.0
  %3193 = vmatpush1.msra.mxu0 0.0
  %3194 = vmatprep.subr.mxu0 0.0
  %3195 = vmatpush1.msra.mxu0 0.0
  %3196 = vmatprep.subr.mxu0 0.0
  %3197 = vmatpush1.msra.mxu0 0.0
  %3198 = vmatprep.subr.mxu0 0.0
  %3199 = vmatpush1.msra.mxu0 0.0
  %3200 = vmatprep.subr.mxu0 0.0
  %3201 = vmatpush1.msra.mxu0 0.0
  %3202 = vmatprep.subr.mxu0 0.0
  %3203 = vmatpush1.msra.mxu0 0.0
  %3204 = vmatprep.subr.mxu0 0.0
  %3205 = vmatpush1.msra.mxu0 0.0
  %3206 = vmatprep.subr.mxu0 0.0
  %3207 = vmatpush1.msra.mxu0 0.0
  %3208 = vmatprep.subr.mxu0 0.0
  %3209 = vmatpush1.msra.mxu0 0.0
  %3210 = vmatprep.subr.mxu0 0.0
  %3211 = vmatpush1.msra.mxu0 0.0
  %3212 = vmatprep.subr.mxu0 0.0
  %3213 = vmatpush1.msra.mxu0 0.0
  %3214 = vmatprep.mubr.f32.mxu0 0.0
  %3215 = vmatmul.mubr.f32.gmra.mrb[0].mxu0 %v3136
  %v3216 = vpop.f32.mrb[0].mxu0
  %v3217 = vadd.f32 %v3133, %v3216
  %v3218 = vpop.f32.mrb[0].mxu0
  %v3219 = vadd.f32 %v3133, %v3218
  %3220 = vdwg.mxu0
  %3221 = vmatprep.subr.mxu0 %v3117
  %3222 = vmatpush1.msra.mxu0 %v3116
  %3223 = vmatprep.subr.mxu0 %v3121
  %3224 = vmatpush1.msra.mxu0 %v3120
  %3225 = vmatprep.subr.mxu0 %v3125
  %3226 = vmatpush1.msra.mxu0 %v3124
  %3227 = vmatprep.subr.mxu0 %v3129
  %3228 = vmatpush1.msra.mxu0 %v3128
  %3229 = vmatprep.subr.mxu0 %v3148
  %3230 = vmatpush1.msra.mxu0 %v3145
  %3231 = vmatprep.subr.mxu0 0.0
  %3232 = vmatpush1.msra.mxu0 0.0
  %3233 = vmatprep.subr.mxu0 0.0
  %3234 = vmatpush1.msra.mxu0 0.0
  %3235 = vmatprep.subr.mxu0 0.0
  %3236 = vmatpush1.msra.mxu0 0.0
  %3237 = vmatprep.subr.mxu0 0.0
  %3238 = vmatpush1.msra.mxu0 0.0
  %3239 = vmatprep.subr.mxu0 0.0
  %3240 = vmatpush1.msra.mxu0 0.0
  %3241 = vmatprep.subr.mxu0 0.0
  %3242 = vmatpush1.msra.mxu0 0.0
  %3243 = vmatprep.subr.mxu0 0.0
  %3244 = vmatpush1.msra.mxu0 0.0
  %3245 = vmatprep.subr.mxu0 0.0
  %3246 = vmatpush1.msra.mxu0 0.0
  %3247 = vmatprep.subr.mxu0 0.0
  %3248 = vmatpush1.msra.mxu0 0.0
  %3249 = vmatprep.subr.mxu0 0.0
  %3250 = vmatpush1.msra.mxu0 0.0
  %3251 = vmatprep.subr.mxu0 0.0
  %3252 = vmatpush1.msra.mxu0 0.0
  %3253 = vmatprep.subr.mxu0 0.0
  %3254 = vmatpush1.msra.mxu0 0.0
  %3255 = vmatprep.subr.mxu0 0.0
  %3256 = vmatpush1.msra.mxu0 0.0
  %3257 = vmatprep.subr.mxu0 0.0
  %3258 = vmatpush1.msra.mxu0 0.0
  %3259 = vmatprep.subr.mxu0 0.0
  %3260 = vmatpush1.msra.mxu0 0.0
  %3261 = vmatprep.subr.mxu0 0.0
  %3262 = vmatpush1.msra.mxu0 0.0
  %3263 = vmatprep.subr.mxu0 0.0
  %3264 = vmatpush1.msra.mxu0 0.0
  %3265 = vmatprep.subr.mxu0 0.0
  %3266 = vmatpush1.msra.mxu0 0.0
  %3267 = vmatprep.subr.mxu0 0.0
  %3268 = vmatpush1.msra.mxu0 0.0
  %3269 = vmatprep.subr.mxu0 0.0
  %3270 = vmatpush1.msra.mxu0 0.0
  %3271 = vmatprep.subr.mxu0 0.0
  %3272 = vmatpush1.msra.mxu0 0.0
  %3273 = vmatprep.subr.mxu0 0.0
  %3274 = vmatpush1.msra.mxu0 0.0
  %3275 = vmatprep.subr.mxu0 0.0
  %3276 = vmatpush1.msra.mxu0 0.0
  %3277 = vmatprep.subr.mxu0 0.0
  %3278 = vmatpush1.msra.mxu0 0.0
  %3279 = vmatprep.subr.mxu0 0.0
  %3280 = vmatpush1.msra.mxu0 0.0
  %3281 = vmatprep.subr.mxu0 0.0
  %3282 = vmatpush1.msra.mxu0 0.0
  %3283 = vmatprep.subr.mxu0 0.0
  %3284 = vmatpush1.msra.mxu0 0.0
  %3285 = vmatprep.mubr.f32.mxu0 0.0
  %3286 = vmatmul.mubr.f32.gmra.mrb[0].mxu0 %v3136
  %v3287 = vpop.f32.mrb[0].mxu0
  %v3288 = vadd.f32 %v3133, %v3287
  %v3289 = vpop.f32.mrb[0].mxu0
  %v3290 = vadd.f32 %v3133, %v3289
  %3291 = vdwg.mxu0
  %v3292 = vsel %vm3113, %v3217, 0.0
  %v3293 = vsel %vm3113, %v3219, 0.0
  %v3294 = vadd.f32 %v3292, %v3293
  %3295 = vadd.xlane.f32.xlu0 %v3294
  %v3296 = vpop.xlane.xlu0 %3295
  %v3297 = vrot.slane %v3296, 4
  %v3298 = vadd.f32 %v3296, %v3297
  %v3299 = vrot.slane %v3298, 2
  %v3300 = vadd.f32 %v3298, %v3299
  %v3301 = vrot.slane %v3300, 1
  %v3302 = vadd.f32 %v3300, %v3301
  %s3303 = vtos %v3302
  %s3304 = smul.f32 %s3303, 0.0009765625
  %v3305 = vmul.f32 %v3217, %v3217
  %v3306 = vmul.f32 %v3219, %v3219
  %v3307 = vsel %vm3113, %v3305, 0.0
  %v3308 = vsel %vm3113, %v3306, 0.0
  %v3309 = vadd.f32 %v3307, %v3308
  %3310 = vadd.xlane.f32.xlu0 %v3309
  %v3311 = vpop.xlane.xlu0 %3310
  %v3312 = vrot.slane %v3311, 4
  %v3313 = vadd.f32 %v3311, %v3312
  %v3314 = vrot.slane %v3313, 2
  %v3315 = vadd.f32 %v3313, %v3314
  %v3316 = vrot.slane %v3315, 1
  %v3317 = vadd.f32 %v3315, %v3316
  %s3318 = vtos %v3317
  %s3319 = smul.f32 %s3318, 0.0009765625
  %v3320 = vstv %s3304
  %v3321 = vsub.f32 %v3217, %v3320
  %v3322 = vsub.f32 %v3219, %v3320
  %s3323 = smul.f32 %s3304, %s3304
  %s3324 = ssub.f32 %s3319, %s3323
  %s3325 = sadd.f32 %s3324, 1e-06
  %v3326 = vstv %s3325
  %v3327 = vrsqrt.pop %v3326
  %s3328 = vtos %v3327
  %v3329 = vstv %s3328
  %v3330 = vmul.f32 %v3321, %v3329
  %v3331 = vmul.f32 %v3322, %v3329
  %v3332 = vsel %vm3113, %v3288, 0.0
  %v3333 = vsel %vm3113, %v3290, 0.0
  %v3334 = vadd.f32 %v3332, %v3333
  %3335 = vadd.xlane.f32.xlu0 %v3334
  %v3336 = vpop.xlane.xlu0 %3335
  %v3337 = vrot.slane %v3336, 4
  %v3338 = vadd.f32 %v3336, %v3337
  %v3339 = vrot.slane %v3338, 2
  %v3340 = vadd.f32 %v3338, %v3339
  %v3341 = vrot.slane %v3340, 1
  %v3342 = vadd.f32 %v3340, %v3341
  %s3343 = vtos %v3342
  %s3344 = smul.f32 %s3343, 0.0009765625
  %v3345 = vmul.f32 %v3288, %v3288
  %v3346 = vmul.f32 %v3290, %v3290
  %v3347 = vsel %vm3113, %v3345, 0.0
  %v3348 = vsel %vm3113, %v3346, 0.0
  %v3349 = vadd.f32 %v3347, %v3348
  %3350 = vadd.xlane.f32.xlu0 %v3349
  %v3351 = vpop.xlane.xlu0 %3350
  %v3352 = vrot.slane %v3351, 4
  %v3353 = vadd.f32 %v3351, %v3352
  %v3354 = vrot.slane %v3353, 2
  %v3355 = vadd.f32 %v3353, %v3354
  %v3356 = vrot.slane %v3355, 1
  %v3357 = vadd.f32 %v3355, %v3356
  %s3358 = vtos %v3357
  %s3359 = smul.f32 %s3358, 0.0009765625
  %v3360 = vstv %s3344
  %v3361 = vsub.f32 %v3288, %v3360
  %v3362 = vsub.f32 %v3290, %v3360
  %s3363 = smul.f32 %s3344, %s3344
  %s3364 = ssub.f32 %s3359, %s3363
  %s3365 = sadd.f32 %s3364, 1e-06
  %v3366 = vstv %s3365
  %v3367 = vrsqrt.pop %v3366
  %s3368 = vtos %v3367
  %v3369 = vstv %s3368
  %v3370 = vmul.f32 %v3361, %v3369
  %v3371 = vmul.f32 %v3362, %v3369
  %v3372 = vsub.f32 0.0, %v3330
  %v3373 = vsub.f32 0.0, %v3331
  %v3374 = vsub.f32 0.0, %v3370
  %v3375 = vsub.f32 0.0, %v3371
  %v3376 = vmul.f32 %v3372, 1.442695
  %v3377 = vpow.pop %v3376
  %v3378 = vmul.f32 %v3373, 1.442695
  %v3379 = vpow.pop %v3378
  %v3380 = vmul.f32 %v3374, 1.442695
  %v3381 = vpow.pop %v3380
  %v3382 = vmul.f32 %v3375, 1.442695
  %v3383 = vpow.pop %v3382
  %v3384 = vadd.f32 %v3377, 1.0
  %v3385 = vadd.f32 %v3379, 1.0
  %v3386 = vadd.f32 %v3381, 1.0
  %v3387 = vadd.f32 %v3383, 1.0
  %v3388 = vrcp.pop %v3384
  %v3389 = vmul.f32 1.0, %v3388
  %v3390 = vrcp.pop %v3385
  %v3391 = vmul.f32 1.0, %v3390
  %v3392 = vrcp.pop %v3386
  %v3393 = vmul.f32 1.0, %v3392
  %v3394 = vrcp.pop %v3387
  %v3395 = vmul.f32 1.0, %v3394
  %v3396 = vmul.f32 %v3330, %v3389
  %v3397 = vmul.f32 %v3331, %v3391
  %v3398 = vmul.f32 %v3370, %v3393
  %v3399 = vmul.f32 %v3371, %v3395
  %3401 = vrot.lane.b32.xlu0 %v3399, 17
  %v3402 = vpop.permute.xlu0 %3401
  %3407 = vrot.lane.b32.xlu0 %v3396, 17
  %v3408 = vpop.permute.xlu0 %3407
  %3409 = vrot.lane.b32.xlu0 %v3397, 17
  %v3410 = vpop.permute.xlu0 %3409
  %3411 = vrot.lane.b32.xlu0 %v3398, 17
  %v3412 = vpop.permute.xlu0 %3411
  %v3413 = vsel %vm2751, %v3408, %v3410
  %v3414 = vsel %vm2751, %v3410, %v3412
  %v3415 = vsel %vm2751, %v3412, %v3402
  %v3420 = vsel %vm2751, %v3402, %v3408
  %v3421 = vmul.f32 %v3420, %v2763
  %v3422 = vmul.f32 %v3413, %v2767
  %v3423 = vmul.f32 %v3414, %v2771
  %v3424 = vmul.f32 %v3415, %v2775
  %3425 = vrot.lane.b32.xlu0 %v3399, 16
  %v3426 = vpop.permute.xlu0 %3425
  %3428 = vrot.lane.b32.xlu0 %v3396, 16
  %v3429 = vpop.permute.xlu0 %3428
  %3430 = vrot.lane.b32.xlu0 %v3397, 16
  %v3431 = vpop.permute.xlu0 %3430
  %3432 = vrot.lane.b32.xlu0 %v3398, 16
  %v3433 = vpop.permute.xlu0 %3432
  %v3434 = vsel %vm64, %v3429, %v3431
  %v3435 = vsel %vm64, %v3431, %v3433
  %v3436 = vsel %vm64, %v3433, %v3426
  %v3441 = vsel %vm64, %v3426, %v3429
  %v3442 = vmul.f32 %v3441, %v2800
  %v3443 = vmul.f32 %v3434, %v2804
  %v3444 = vmul.f32 %v3435, %v2808
  %v3445 = vmul.f32 %v3436, %v2812
  %3446 = vrot.lane.b32.xlu0 %v3399, 15
  %v3447 = vpop.permute.xlu0 %3446
  %3449 = vrot.lane.b32.xlu0 %v3396, 15
  %v3450 = vpop.permute.xlu0 %3449
  %3451 = vrot.lane.b32.xlu0 %v3397, 15
  %v3452 = vpop.permute.xlu0 %3451
  %3453 = vrot.lane.b32.xlu0 %v3398, 15
  %v3454 = vpop.permute.xlu0 %3453
  %v3455 = vsel %vm2826, %v3450, %v3452
  %v3456 = vsel %vm2826, %v3452, %v3454
  %v3457 = vsel %vm2826, %v3454, %v3447
  %v3462 = vsel %vm2826, %v3447, %v3450
  %v3463 = vmul.f32 %v3462, %v2838
  %v3464 = vmul.f32 %v3455, %v2842
  %v3465 = vmul.f32 %v3456, %v2846
  %v3466 = vmul.f32 %v3457, %v2850
  %3467 = vrot.lane.b32.xlu0 %v3399, 1
  %v3468 = vpop.permute.xlu0 %3467
  %3470 = vrot.lane.b32.xlu0 %v3396, 1
  %v3471 = vpop.permute.xlu0 %3470
  %3472 = vrot.lane.b32.xlu0 %v3397, 1
  %v3473 = vpop.permute.xlu0 %3472
  %3474 = vrot.lane.b32.xlu0 %v3398, 1
  %v3475 = vpop.permute.xlu0 %3474
  %v3476 = vsel %vm2864, %v3471, %v3473
  %v3477 = vsel %vm2864, %v3473, %v3475
  %v3478 = vsel %vm2864, %v3475, %v3468
  %v3483 = vsel %vm2864, %v3468, %v3471
  %v3484 = vmul.f32 %v3483, %v2876
  %v3485 = vmul.f32 %v3476, %v2880
  %v3486 = vmul.f32 %v3477, %v2884
  %v3487 = vmul.f32 %v3478, %v2888
  %v3488 = vmul.f32 %v3396, %v2896
  %v3489 = vmul.f32 %v3397, %v2900
  %v3490 = vmul.f32 %v3398, %v2904
  %v3491 = vmul.f32 %v3399, %v2908
  %3492 = vrot.lane.b32.xlu0 %v3396, 127
  %v3493 = vpop.permute.xlu0 %3492
  %3494 = vrot.lane.b32.xlu0 %v3397, 127
  %v3495 = vpop.permute.xlu0 %3494
  %3496 = vrot.lane.b32.xlu0 %v3398, 127
  %v3497 = vpop.permute.xlu0 %3496
  %3498 = vrot.lane.b32.xlu0 %v3399, 127
  %v3499 = vpop.permute.xlu0 %3498
  %v3500 = vsel %vm2921, %v3493, %v3495
  %v3501 = vsel %vm2921, %v3495, %v3497
  %v3502 = vsel %vm2921, %v3497, %v3499
  %v3508 = vsel %vm2921, %v3499, %v3493
  %v3509 = vmul.f32 %v3500, %v2934
  %v3510 = vmul.f32 %v3501, %v2938
  %v3511 = vmul.f32 %v3502, %v2942
  %v3512 = vmul.f32 %v3508, %v2946
  %3513 = vrot.lane.b32.xlu0 %v3396, 113
  %v3514 = vpop.permute.xlu0 %3513
  %3515 = vrot.lane.b32.xlu0 %v3397, 113
  %v3516 = vpop.permute.xlu0 %3515
  %3517 = vrot.lane.b32.xlu0 %v3398, 113
  %v3518 = vpop.permute.xlu0 %3517
  %3519 = vrot.lane.b32.xlu0 %v3399, 113
  %v3520 = vpop.permute.xlu0 %3519
  %v3521 = vsel %vm2959, %v3514, %v3516
  %v3522 = vsel %vm2959, %v3516, %v3518
  %v3523 = vsel %vm2959, %v3518, %v3520
  %v3529 = vsel %vm2959, %v3520, %v3514
  %v3530 = vmul.f32 %v3521, %v2972
  %v3531 = vmul.f32 %v3522, %v2976
  %v3532 = vmul.f32 %v3523, %v2980
  %v3533 = vmul.f32 %v3529, %v2984
  %3534 = vrot.lane.b32.xlu0 %v3396, 112
  %v3535 = vpop.permute.xlu0 %3534
  %3536 = vrot.lane.b32.xlu0 %v3397, 112
  %v3537 = vpop.permute.xlu0 %3536
  %3538 = vrot.lane.b32.xlu0 %v3398, 112
  %v3539 = vpop.permute.xlu0 %3538
  %3540 = vrot.lane.b32.xlu0 %v3399, 112
  %v3541 = vpop.permute.xlu0 %3540
  %v3542 = vsel %vm2997, %v3535, %v3537
  %v3543 = vsel %vm2997, %v3537, %v3539
  %v3544 = vsel %vm2997, %v3539, %v3541
  %v3550 = vsel %vm2997, %v3541, %v3535
  %v3551 = vmul.f32 %v3542, %v3010
  %v3552 = vmul.f32 %v3543, %v3014
  %v3553 = vmul.f32 %v3544, %v3018
  %v3554 = vmul.f32 %v3550, %v3022
  %3555 = vrot.lane.b32.xlu0 %v3396, 111
  %v3556 = vpop.permute.xlu0 %3555
  %3557 = vrot.lane.b32.xlu0 %v3397, 111
  %v3558 = vpop.permute.xlu0 %3557
  %3559 = vrot.lane.b32.xlu0 %v3398, 111
  %v3560 = vpop.permute.xlu0 %3559
  %3561 = vrot.lane.b32.xlu0 %v3399, 111
  %v3562 = vpop.permute.xlu0 %3561
  %v3563 = vsel %vm3035, %v3556, %v3558
  %v3564 = vsel %vm3035, %v3558, %v3560
  %v3565 = vsel %vm3035, %v3560, %v3562
  %v3571 = vsel %vm3035, %v3562, %v3556
  %v3572 = vmul.f32 %v3563, %v3048
  %v3573 = vmul.f32 %v3564, %v3052
  %v3574 = vmul.f32 %v3565, %v3056
  %v3575 = vmul.f32 %v3571, %v3060
  %v3580 = vrot.slane %v3442, 4
  %v3581 = vrot.slane %v3443, 4
  %v3582 = vrot.slane %v3444, 4
  %v3583 = vrot.slane %v3445, 4
  %v3592 = vrot.slane %v3484, 4
  %v3593 = vrot.slane %v3485, 4
  %v3594 = vrot.slane %v3486, 4
  %v3595 = vrot.slane %v3487, 4
  %v3604 = vrot.slane %v3509, 4
  %v3605 = vrot.slane %v3510, 4
  %v3606 = vrot.slane %v3511, 4
  %v3607 = vrot.slane %v3512, 4
  %v3616 = vrot.slane %v3551, 4
  %v3617 = vrot.slane %v3552, 4
  %v3618 = vrot.slane %v3553, 4
  %v3619 = vrot.slane %v3554, 4
  %v3624 = vsel %vm3113, %v3421, %v3580
  %v3625 = vsel %vm3113, %v3422, %v3581
  %v3626 = vsel %vm3113, %v3423, %v3582
  %v3627 = vsel %vm3113, %v3424, %v3583
  %v3628 = vsel %vm3113, %v3463, %v3592
  %v3629 = vsel %vm3113, %v3464, %v3593
  %v3630 = vsel %vm3113, %v3465, %v3594
  %v3631 = vsel %vm3113, %v3466, %v3595
  %v3632 = vsel %vm3113, %v3488, %v3604
  %v3633 = vsel %vm3113, %v3489, %v3605
  %v3634 = vsel %vm3113, %v3490, %v3606
  %v3635 = vsel %vm3113, %v3491, %v3607
  %v3636 = vsel %vm3113, %v3530, %v3616
  %v3637 = vsel %vm3113, %v3531, %v3617
  %v3638 = vsel %vm3113, %v3532, %v3618
  %v3639 = vsel %vm3113, %v3533, %v3619
  %3640 = vset.pattern.permute.xlu0 73
  %3641 = vperm.xlu0 %3640, %v47
  %v3642 = vpop.permute.xlu0 %3641
  %3644 = vrot.lane.b32.xlu0 %v47, 91
  %v3645 = vpop.permute.xlu0 %3644
  %v3646 = vsel %vm3135, %v3645, 0
  %v3649 = vsel %vm3113, %v3572, 0
  %v3652 = vsel %vm3113, %v3573, 0
  %v3655 = vsel %vm3113, %v3574, 0
  %v3658 = vsel %vm3113, %v3575, 0
  %3660 = vmatprep.subr.mxu0 %v3625
  %3661 = vmatpush1.msra.mxu0 %v3624
  %3662 = vmatprep.subr.mxu0 %v3629
  %3663 = vmatpush1.msra.mxu0 %v3628
  %3664 = vmatprep.subr.mxu0 %v3633
  %3665 = vmatpush1.msra.mxu0 %v3632
  %3666 = vmatprep.subr.mxu0 %v3637
  %3667 = vmatpush1.msra.mxu0 %v3636
  %3668 = vmatprep.subr.mxu0 %v3652
  %3669 = vmatpush1.msra.mxu0 %v3649
  %3670 = vmatprep.subr.mxu0 0.0
  %3671 = vmatpush1.msra.mxu0 0.0
  %3672 = vmatprep.subr.mxu0 0.0
  %3673 = vmatpush1.msra.mxu0 0.0
  %3674 = vmatprep.subr.mxu0 0.0
  %3675 = vmatpush1.msra.mxu0 0.0
  %3676 = vmatprep.subr.mxu0 0.0
  %3677 = vmatpush1.msra.mxu0 0.0
  %3678 = vmatprep.subr.mxu0 0.0
  %3679 = vmatpush1.msra.mxu0 0.0
  %3680 = vmatprep.subr.mxu0 0.0
  %3681 = vmatpush1.msra.mxu0 0.0
  %3682 = vmatprep.subr.mxu0 0.0
  %3683 = vmatpush1.msra.mxu0 0.0
  %3684 = vmatprep.subr.mxu0 0.0
  %3685 = vmatpush1.msra.mxu0 0.0
  %3686 = vmatprep.subr.mxu0 0.0
  %3687 = vmatpush1.msra.mxu0 0.0
  %3688 = vmatprep.subr.mxu0 0.0
  %3689 = vmatpush1.msra.mxu0 0.0
  %3690 = vmatprep.subr.mxu0 0.0
  %3691 = vmatpush1.msra.mxu0 0.0
  %3692 = vmatprep.subr.mxu0 0.0
  %3693 = vmatpush1.msra.mxu0 0.0
  %3694 = vmatprep.subr.mxu0 0.0
  %3695 = vmatpush1.msra.mxu0 0.0
  %3696 = vmatprep.subr.mxu0 0.0
  %3697 = vmatpush1.msra.mxu0 0.0
  %3698 = vmatprep.subr.mxu0 0.0
  %3699 = vmatpush1.msra.mxu0 0.0
  %3700 = vmatprep.subr.mxu0 0.0
  %3701 = vmatpush1.msra.mxu0 0.0
  %3702 = vmatprep.subr.mxu0 0.0
  %3703 = vmatpush1.msra.mxu0 0.0
  %3704 = vmatprep.subr.mxu0 0.0
  %3705 = vmatpush1.msra.mxu0 0.0
  %3706 = vmatprep.subr.mxu0 0.0
  %3707 = vmatpush1.msra.mxu0 0.0
  %3708 = vmatprep.subr.mxu0 0.0
  %3709 = vmatpush1.msra.mxu0 0.0
  %3710 = vmatprep.subr.mxu0 0.0
  %3711 = vmatpush1.msra.mxu0 0.0
  %3712 = vmatprep.subr.mxu0 0.0
  %3713 = vmatpush1.msra.mxu0 0.0
  %3714 = vmatprep.subr.mxu0 0.0
  %3715 = vmatpush1.msra.mxu0 0.0
  %3716 = vmatprep.subr.mxu0 0.0
  %3717 = vmatpush1.msra.mxu0 0.0
  %3718 = vmatprep.subr.mxu0 0.0
  %3719 = vmatpush1.msra.mxu0 0.0
  %3720 = vmatprep.subr.mxu0 0.0
  %3721 = vmatpush1.msra.mxu0 0.0
  %3722 = vmatprep.subr.mxu0 0.0
  %3723 = vmatpush1.msra.mxu0 0.0
  %3724 = vmatprep.mubr.f32.mxu0 0.0
  %3725 = vmatmul.mubr.f32.gmra.mrb[0].mxu0 %v3646
  %v3726 = vpop.f32.mrb[0].mxu0
  %v3727 = vadd.f32 %v3642, %v3726
  %v3728 = vpop.f32.mrb[0].mxu0
  %v3729 = vadd.f32 %v3642, %v3728
  %3730 = vdwg.mxu0
  %3731 = vmatprep.subr.mxu0 %v3627
  %3732 = vmatpush1.msra.mxu0 %v3626
  %3733 = vmatprep.subr.mxu0 %v3631
  %3734 = vmatpush1.msra.mxu0 %v3630
  %3735 = vmatprep.subr.mxu0 %v3635
  %3736 = vmatpush1.msra.mxu0 %v3634
  %3737 = vmatprep.subr.mxu0 %v3639
  %3738 = vmatpush1.msra.mxu0 %v3638
  %3739 = vmatprep.subr.mxu0 %v3658
  %3740 = vmatpush1.msra.mxu0 %v3655
  %3741 = vmatprep.subr.mxu0 0.0
  %3742 = vmatpush1.msra.mxu0 0.0
  %3743 = vmatprep.subr.mxu0 0.0
  %3744 = vmatpush1.msra.mxu0 0.0
  %3745 = vmatprep.subr.mxu0 0.0
  %3746 = vmatpush1.msra.mxu0 0.0
  %3747 = vmatprep.subr.mxu0 0.0
  %3748 = vmatpush1.msra.mxu0 0.0
  %3749 = vmatprep.subr.mxu0 0.0
  %3750 = vmatpush1.msra.mxu0 0.0
  %3751 = vmatprep.subr.mxu0 0.0
  %3752 = vmatpush1.msra.mxu0 0.0
  %3753 = vmatprep.subr.mxu0 0.0
  %3754 = vmatpush1.msra.mxu0 0.0
  %3755 = vmatprep.subr.mxu0 0.0
  %3756 = vmatpush1.msra.mxu0 0.0
  %3757 = vmatprep.subr.mxu0 0.0
  %3758 = vmatpush1.msra.mxu0 0.0
  %3759 = vmatprep.subr.mxu0 0.0
  %3760 = vmatpush1.msra.mxu0 0.0
  %3761 = vmatprep.subr.mxu0 0.0
  %3762 = vmatpush1.msra.mxu0 0.0
  %3763 = vmatprep.subr.mxu0 0.0
  %3764 = vmatpush1.msra.mxu0 0.0
  %3765 = vmatprep.subr.mxu0 0.0
  %3766 = vmatpush1.msra.mxu0 0.0
  %3767 = vmatprep.subr.mxu0 0.0
  %3768 = vmatpush1.msra.mxu0 0.0
  %3769 = vmatprep.subr.mxu0 0.0
  %3770 = vmatpush1.msra.mxu0 0.0
  %3771 = vmatprep.subr.mxu0 0.0
  %3772 = vmatpush1.msra.mxu0 0.0
  %3773 = vmatprep.subr.mxu0 0.0
  %3774 = vmatpush1.msra.mxu0 0.0
  %3775 = vmatprep.subr.mxu0 0.0
  %3776 = vmatpush1.msra.mxu0 0.0
  %3777 = vmatprep.subr.mxu0 0.0
  %3778 = vmatpush1.msra.mxu0 0.0
  %3779 = vmatprep.subr.mxu0 0.0
  %3780 = vmatpush1.msra.mxu0 0.0
  %3781 = vmatprep.subr.mxu0 0.0
  %3782 = vmatpush1.msra.mxu0 0.0
  %3783 = vmatprep.subr.mxu0 0.0
  %3784 = vmatpush1.msra.mxu0 0.0
  %3785 = vmatprep.subr.mxu0 0.0
  %3786 = vmatpush1.msra.mxu0 0.0
  %3787 = vmatprep.subr.mxu0 0.0
  %3788 = vmatpush1.msra.mxu0 0.0
  %3789 = vmatprep.subr.mxu0 0.0
  %3790 = vmatpush1.msra.mxu0 0.0
  %3791 = vmatprep.subr.mxu0 0.0
  %3792 = vmatpush1.msra.mxu0 0.0
  %3793 = vmatprep.subr.mxu0 0.0
  %3794 = vmatpush1.msra.mxu0 0.0
  %3795 = vmatprep.mubr.f32.mxu0 0.0
  %3796 = vmatmul.mubr.f32.gmra.mrb[0].mxu0 %v3646
  %v3797 = vpop.f32.mrb[0].mxu0
  %v3798 = vadd.f32 %v3642, %v3797
  %v3799 = vpop.f32.mrb[0].mxu0
  %v3800 = vadd.f32 %v3642, %v3799
  %3801 = vdwg.mxu0
  %v3806 = vcombine.low %v3727, %v3729
  %v3807 = vcombine.low %v3798, %v3800
  %3810 = vst [vmem:[%s5] sm:$0xff] %v3806
  %3811 = vst [vmem:[%s5 + $0x8] sm:$0xff] %v3807
  // Predicated region
  $region22: #{forward_pallas.1} parent=0 // pred_check
    _
  $region23: #{forward_pallas.1} parent=0 // pred_check_branch
    %3813 = sbr.rel (0) target = $region25
  $region24: #{forward_pallas.1} parent=0 // pred_region
    _
  $region25: #{forward_pallas.1} parent=0 // pred_fallthru
    _
  // Predicated region
  $region26: #{forward_pallas.1} parent=0 // pred_check
    _
  $region27: #{forward_pallas.1} parent=0 // pred_check_branch
    %3815 = sbr.rel (0) target = $region29
  $region28: #{forward_pallas.1} parent=0 // pred_region
    _
  $region29: #{forward_pallas.1} parent=0 // pred_fallthru
    _

</llo_original>
